<compile_context>
chip_gen: v7x
topology: tpu7x:2x2x1
jax: 0.10.0
libtpu: 0.0.40
codegen_flags: <defaults>
</compile_context>

<pallas_src>
import functools

import jax
import jax.numpy as jnp
from jax.experimental import pallas as pl
from jax.experimental.pallas import tpu as pltpu


def _upsample_conv_kernel(x_ref, l_ref, aw_ref, b_ref, out_ref):
    """One batch element of (nearest-upsample -> zero-pad -> KxK complex conv).

    x_ref  : (2*Cin*H, W)               stacked [real; imag] input, rows = (ci, h)
    l_ref  : (K, 2*Cout*Hout, 2*Cin*H)  per-kx weight (+ row-gather) matrices
    aw_ref : (K, W, Wout)               per-kx 0/1 column-gather (upsample+pad) maps
    b_ref  : (2*Cout*Hout, 1)           bias expanded over output rows
    out_ref: (2*Cout*Hout, Wout)        stacked [real; imag] conv output (NCHW-flat)
    """
    k = aw_ref.shape[0]

    # VMEM-resident accumulator = the output block itself (keeps vreg pressure flat).
    out_ref[...] = jnp.broadcast_to(b_ref[...], out_ref.shape)

    x = x_ref[...]
    for kx in range(k):                      # static unroll, K = 3
        # column gather (upsample + pad along width) for this kx
        c_kx = jnp.dot(x, aw_ref[kx], preferred_element_type=jnp.float32)
        # complex-block weight x row-gather, contraction over (ci, h) = 2Cin*H
        out_ref[...] += jnp.dot(l_ref[kx], c_kx,
                                preferred_element_type=jnp.float32)


def _upsample_conv_pallas(x2, lsum, aw, b_exp):
    """x2: (N, 2Cin*H, W) f32 -> (N, 2Cout*Hout, Wout) f32."""
    n, rows_in, w_in = x2.shape
    rows_out = lsum.shape[1]
    w_out = aw.shape[2]

    return pl.pallas_call(
        _upsample_conv_kernel,
        out_shape=jax.ShapeDtypeStruct((n, rows_out, w_out), jnp.float32),
        grid_spec=pltpu.PrefetchScalarGridSpec(
            num_scalar_prefetch=0,
            grid=(n,),
            in_specs=[
                pl.BlockSpec((None, rows_in, w_in), lambda i: (i, 0, 0)),
                pl.BlockSpec(lsum.shape, lambda i: (0, 0, 0)),   # grid-invariant
                pl.BlockSpec(aw.shape, lambda i: (0, 0, 0)),     # grid-invariant
                pl.BlockSpec(b_exp.shape, lambda i: (0, 0)),     # grid-invariant
            ],
            out_specs=pl.BlockSpec((None, rows_out, w_out), lambda i: (i, 0, 0)),
        ),
        compiler_params=pltpu.CompilerParams(
            dimension_semantics=("parallel",),       # batch shards across v7x's 2 TCs
            vmem_limit_bytes=32 * 1024 * 1024,       # ample here; <= every gen's VMEM
        ),
    )(x2, lsum, aw, b_exp)


def _axis_gather(k, n_src, n_up, scale, pad):
    """(n_src, n_up) 0/1 matrix: [h, y] = 1 iff padded-upsampled coordinate (y + k)
    lands inside the image and its nearest-neighbour source row/col is h."""
    pos = jnp.arange(n_up) + k - pad
    valid = (pos >= 0) & (pos < n_up)
    src = jnp.clip(pos, 0, n_up - 1) // scale
    return ((jnp.arange(n_src)[:, None] == src[None, :])
            & valid[None, :]).astype(jnp.float32)


@functools.partial(jax.jit, static_argnames=("scale_factor", "padding"))
def upsampling_forward(x, weight, bias, scale_factor, padding=1):
    """Forward pass matching Upsampling.forward for dim=2 (4-D NCHW input).

    x      : (N, Cin, H, W) complex64
    weight : (Cout, Cin, K, K) complex64   (PyTorch Conv2d layout)
    bias   : (Cout,) complex64
    returns: (N, Cout, H*scale, W*scale) complex64
    """
    n, cin, h, w = x.shape
    cout, _, k, _ = weight.shape
    s, p = scale_factor, padding
    h_out, w_out = h * s, w * s

    # input: stack real/imag along channels, rows = (ci, h), lanes = w
    xr = jnp.real(x).astype(jnp.float32)
    xi = jnp.imag(x).astype(jnp.float32)
    x2 = jnp.concatenate([xr, xi], axis=1).reshape(n, 2 * cin * h, w)

    # complex weights -> real block form [[wr, -wi], [wi, wr]]
    wr = jnp.real(weight).astype(jnp.float32)
    wi = jnp.imag(weight).astype(jnp.float32)
    w_blk = jnp.concatenate(
        [jnp.concatenate([wr, -wi], axis=1),
         jnp.concatenate([wi, wr], axis=1)], axis=0)      # (2Cout, 2Cin, K, K)

    # per-axis 0/1 gather matrices folding nearest-upsample + zero-pad + window shift
    ah = jnp.stack([_axis_gather(ky, h, h_out, s, p) for ky in range(k)])  # (K,H,Hout)
    aw = jnp.stack([_axis_gather(kx, w, w_out, s, p) for kx in range(k)])  # (K,W,Wout)

    # fold the row gather + the ky sum into the weight: one matrix per kx
    #   lsum[kx, co*Hout + y, ci*H + h] = sum_ky w_blk[co,ci,ky,kx] * ah[ky,h,y]
    lsum = jnp.einsum("ocak,ahy->koych", w_blk, ah).reshape(
        k, 2 * cout * h_out, 2 * cin * h)

    # bias expanded over output rows (co, y)
    b2 = jnp.concatenate([jnp.real(bias), jnp.imag(bias)]).astype(jnp.float32)
    b_exp = jnp.repeat(b2, h_out).reshape(2 * cout * h_out, 1)

    out = _upsample_conv_pallas(x2, lsum, aw, b_exp)      # (N, 2Cout*Hout, Wout)
    out = out.reshape(n, 2 * cout, h_out, w_out)          # free contiguous reshape
    return jax.lax.complex(out[:, :cout], out[:, cout:])  # NCHW complex64


def _reference_forward(x, weight, bias, scale_factor, padding=1):
    """Pure-JAX reference (no Pallas) for numerical validation."""
    xr = jnp.real(x).astype(jnp.float32)
    xi = jnp.imag(x).astype(jnp.float32)
    xr = jnp.repeat(jnp.repeat(xr, scale_factor, axis=2), scale_factor, axis=3)
    xi = jnp.repeat(jnp.repeat(xi, scale_factor, axis=2), scale_factor, axis=3)
    wr = jnp.real(weight).astype(jnp.float32)
    wi = jnp.imag(weight).astype(jnp.float32)

    conv = functools.partial(
        jax.lax.conv_general_dilated,
        window_strides=(1, 1),
        padding=((padding, padding), (padding, padding)),
        dimension_numbers=("NCHW", "OIHW", "NCHW"),
    )
    out_r = conv(xr, wr) - conv(xi, wi) + jnp.real(bias)[None, :, None, None]
    out_i = conv(xr, wi) + conv(xi, wr) + jnp.imag(bias)[None, :, None, None]
    return jax.lax.complex(out_r, out_i)


if __name__ == "__main__":
    # small, module-consistent shapes
    N, Cin, Cout = 2, 4, 8
    H = W = 16
    scale_factor = 2
    K, padding = 3, 1

    key = jax.random.PRNGKey(0)
    k_xr, k_xi, k_wr, k_wi, k_br, k_bi = jax.random.split(key, 6)

    x = jax.lax.complex(
        jax.random.normal(k_xr, (N, Cin, H, W), jnp.float32),
        jax.random.normal(k_xi, (N, Cin, H, W), jnp.float32),
    )

    # deterministic synthetic Conv2d parameters (complex64, PyTorch OIHW layout)
    w_scale = 1.0 / (Cin * K * K) ** 0.5
    weight = jax.lax.complex(
        jax.random.uniform(k_wr, (Cout, Cin, K, K), jnp.float32, -w_scale, w_scale),
        jax.random.uniform(k_wi, (Cout, Cin, K, K), jnp.float32, -w_scale, w_scale),
    )
    bias = jax.lax.complex(
        jax.random.uniform(k_br, (Cout,), jnp.float32, -w_scale, w_scale),
        jax.random.uniform(k_bi, (Cout,), jnp.float32, -w_scale, w_scale),
    )

    out = upsampling_forward(x, weight, bias, scale_factor=scale_factor,
                             padding=padding)
    out = jax.block_until_ready(out)

    assert out.shape == (N, Cout, H * scale_factor, W * scale_factor), out.shape
    assert out.dtype == jnp.complex64, out.dtype

    ref = jax.block_until_ready(
        _reference_forward(x, weight, bias, scale_factor, padding))
    assert jnp.allclose(out, ref, atol=1e-4, rtol=1e-4), \
        float(jnp.max(jnp.abs(out - ref)))

    print("KERNEL_OK")
</pallas_src>

<mosaic_0001>
module attributes {stable_mosaic.version = 11 : i64} {
  func.func @_upsample_conv_kernel(%arg0: i32, %arg1: memref<1x128x16xf32, #tpu.memory_space<vmem>>, %arg2: memref<3x512x128xf32, #tpu.memory_space<vmem>>, %arg3: memref<3x16x32xf32, #tpu.memory_space<vmem>>, %arg4: memref<512x1xf32, #tpu.memory_space<vmem>>, %arg5: memref<1x512x32xf32, #tpu.memory_space<vmem>>) attributes {dimension_semantics = [#tpu.dimension_semantics<parallel>], iteration_bounds = array<i64: 2>, scalar_prefetch = 0 : i64, scratch_operands = 0 : i64, tpu.core_type = #tpu.core_type<tc>, window_params = [{transform_indices = @transform_0, window_bounds = array<i64: 1, 128, 16>}, {pipeline_mode = #tpu.pipeline_mode<synchronous>, transform_indices = @transform_1, window_bounds = array<i64: 3, 512, 128>}, {pipeline_mode = #tpu.pipeline_mode<synchronous>, transform_indices = @transform_2, window_bounds = array<i64: 3, 16, 32>}, {pipeline_mode = #tpu.pipeline_mode<synchronous>, transform_indices = @transform_3, window_bounds = array<i64: 512, 1>}, {transform_indices = @transform_4, window_bounds = array<i64: 1, 512, 32>}]} {
    %c0 = arith.constant 0 : index
    %c0_0 = arith.constant 0 : index
    %0 = vector.load %arg4[%c0, %c0_0] : memref<512x1xf32, #tpu.memory_space<vmem>>, vector<512x1xf32>
    %1 = vector.shape_cast %0 : vector<512x1xf32> to vector<512x1xf32>
    %2 = vector.broadcast %1 : vector<512x1xf32> to vector<512x32xf32>
    %c0_1 = arith.constant 0 : index
    %c0_2 = arith.constant 0 : index
    %c0_3 = arith.constant 0 : index
    %3 = vector.load %arg5[%c0_1, %c0_2, %c0_3] : memref<1x512x32xf32, #tpu.memory_space<vmem>>, vector<1x512x32xf32>
    %4 = vector.shape_cast %3 : vector<1x512x32xf32> to vector<512x32xf32>
    %5 = vector.shape_cast %2 : vector<512x32xf32> to vector<1x512x32xf32>
    tpu.vector_store %arg5[%c0_1, %c0_2, %c0_3], %5 {strides = array<i32>} : memref<1x512x32xf32, #tpu.memory_space<vmem>>, vector<1x512x32xf32>,
    %c0_4 = arith.constant 0 : index
    %c0_5 = arith.constant 0 : index
    %c0_6 = arith.constant 0 : index
    %6 = vector.load %arg1[%c0_4, %c0_5, %c0_6] : memref<1x128x16xf32, #tpu.memory_space<vmem>>, vector<1x128x16xf32>
    %7 = vector.shape_cast %6 : vector<1x128x16xf32> to vector<128x16xf32>
    %c0_7 = arith.constant 0 : index
    %c0_8 = arith.constant 0 : index
    %c0_9 = arith.constant 0 : index
    %8 = vector.load %arg3[%c0_7, %c0_8, %c0_9] : memref<3x16x32xf32, #tpu.memory_space<vmem>>, vector<1x16x32xf32>
    %9 = vector.shape_cast %8 : vector<1x16x32xf32> to vector<16x32xf32>
    %cst = arith.constant dense<0.000000e+00> : vector<128x32xf32>
    %10 = tpu.matmul %7, %9, %cst {dimension_numbers = #tpu.dot_dimension_numbers<[1], [0], [0], [1], [0, 0, 1, 1], [], []>} : vector<128x16xf32>, vector<16x32xf32>, vector<128x32xf32> -> vector<128x32xf32>
    %c0_10 = arith.constant 0 : index
    %c0_11 = arith.constant 0 : index
    %c0_12 = arith.constant 0 : index
    %11 = vector.load %arg5[%c0_10, %c0_11, %c0_12] : memref<1x512x32xf32, #tpu.memory_space<vmem>>, vector<1x512x32xf32>
    %12 = vector.shape_cast %11 : vector<1x512x32xf32> to vector<512x32xf32>
    %c0_13 = arith.constant 0 : index
    %c0_14 = arith.constant 0 : index
    %c0_15 = arith.constant 0 : index
    %13 = vector.load %arg2[%c0_13, %c0_14, %c0_15] : memref<3x512x128xf32, #tpu.memory_space<vmem>>, vector<1x512x128xf32>
    %14 = vector.shape_cast %13 : vector<1x512x128xf32> to vector<512x128xf32>
    %cst_16 = arith.constant dense<0.000000e+00> : vector<512x32xf32>
    %15 = tpu.matmul %14, %10, %cst_16 {dimension_numbers = #tpu.dot_dimension_numbers<[1], [0], [0], [1], [0, 0, 1, 1], [], []>} : vector<512x128xf32>, vector<128x32xf32>, vector<512x32xf32> -> vector<512x32xf32>
    %16 = arith.addf %12, %15 : vector<512x32xf32>
    %c0_17 = arith.constant 0 : index
    %c0_18 = arith.constant 0 : index
    %c0_19 = arith.constant 0 : index
    %17 = vector.load %arg5[%c0_17, %c0_18, %c0_19] : memref<1x512x32xf32, #tpu.memory_space<vmem>>, vector<1x512x32xf32>
    %18 = vector.shape_cast %17 : vector<1x512x32xf32> to vector<512x32xf32>
    %19 = vector.shape_cast %16 : vector<512x32xf32> to vector<1x512x32xf32>
    tpu.vector_store %arg5[%c0_17, %c0_18, %c0_19], %19 {strides = array<i32>} : memref<1x512x32xf32, #tpu.memory_space<vmem>>, vector<1x512x32xf32>,
    %c1 = arith.constant 1 : index
    %c0_20 = arith.constant 0 : index
    %c0_21 = arith.constant 0 : index
    %20 = vector.load %arg3[%c1, %c0_20, %c0_21] : memref<3x16x32xf32, #tpu.memory_space<vmem>>, vector<1x16x32xf32>
    %21 = vector.shape_cast %20 : vector<1x16x32xf32> to vector<16x32xf32>
    %cst_22 = arith.constant dense<0.000000e+00> : vector<128x32xf32>
    %22 = tpu.matmul %7, %21, %cst_22 {dimension_numbers = #tpu.dot_dimension_numbers<[1], [0], [0], [1], [0, 0, 1, 1], [], []>} : vector<128x16xf32>, vector<16x32xf32>, vector<128x32xf32> -> vector<128x32xf32>
    %c0_23 = arith.constant 0 : index
    %c0_24 = arith.constant 0 : index
    %c0_25 = arith.constant 0 : index
    %23 = vector.load %arg5[%c0_23, %c0_24, %c0_25] : memref<1x512x32xf32, #tpu.memory_space<vmem>>, vector<1x512x32xf32>
    %24 = vector.shape_cast %23 : vector<1x512x32xf32> to vector<512x32xf32>
    %c1_26 = arith.constant 1 : index
    %c0_27 = arith.constant 0 : index
    %c0_28 = arith.constant 0 : index
    %25 = vector.load %arg2[%c1_26, %c0_27, %c0_28] : memref<3x512x128xf32, #tpu.memory_space<vmem>>, vector<1x512x128xf32>
    %26 = vector.shape_cast %25 : vector<1x512x128xf32> to vector<512x128xf32>
    %cst_29 = arith.constant dense<0.000000e+00> : vector<512x32xf32>
    %27 = tpu.matmul %26, %22, %cst_29 {dimension_numbers = #tpu.dot_dimension_numbers<[1], [0], [0], [1], [0, 0, 1, 1], [], []>} : vector<512x128xf32>, vector<128x32xf32>, vector<512x32xf32> -> vector<512x32xf32>
    %28 = arith.addf %24, %27 : vector<512x32xf32>
    %c0_30 = arith.constant 0 : index
    %c0_31 = arith.constant 0 : index
    %c0_32 = arith.constant 0 : index
    %29 = vector.load %arg5[%c0_30, %c0_31, %c0_32] : memref<1x512x32xf32, #tpu.memory_space<vmem>>, vector<1x512x32xf32>
    %30 = vector.shape_cast %29 : vector<1x512x32xf32> to vector<512x32xf32>
    %31 = vector.shape_cast %28 : vector<512x32xf32> to vector<1x512x32xf32>
    tpu.vector_store %arg5[%c0_30, %c0_31, %c0_32], %31 {strides = array<i32>} : memref<1x512x32xf32, #tpu.memory_space<vmem>>, vector<1x512x32xf32>,
    %c2 = arith.constant 2 : index
    %c0_33 = arith.constant 0 : index
    %c0_34 = arith.constant 0 : index
    %32 = vector.load %arg3[%c2, %c0_33, %c0_34] : memref<3x16x32xf32, #tpu.memory_space<vmem>>, vector<1x16x32xf32>
    %33 = vector.shape_cast %32 : vector<1x16x32xf32> to vector<16x32xf32>
    %cst_35 = arith.constant dense<0.000000e+00> : vector<128x32xf32>
    %34 = tpu.matmul %7, %33, %cst_35 {dimension_numbers = #tpu.dot_dimension_numbers<[1], [0], [0], [1], [0, 0, 1, 1], [], []>} : vector<128x16xf32>, vector<16x32xf32>, vector<128x32xf32> -> vector<128x32xf32>
    %c0_36 = arith.constant 0 : index
    %c0_37 = arith.constant 0 : index
    %c0_38 = arith.constant 0 : index
    %35 = vector.load %arg5[%c0_36, %c0_37, %c0_38] : memref<1x512x32xf32, #tpu.memory_space<vmem>>, vector<1x512x32xf32>
    %36 = vector.shape_cast %35 : vector<1x512x32xf32> to vector<512x32xf32>
    %c2_39 = arith.constant 2 : index
    %c0_40 = arith.constant 0 : index
    %c0_41 = arith.constant 0 : index
    %37 = vector.load %arg2[%c2_39, %c0_40, %c0_41] : memref<3x512x128xf32, #tpu.memory_space<vmem>>, vector<1x512x128xf32>
    %38 = vector.shape_cast %37 : vector<1x512x128xf32> to vector<512x128xf32>
    %cst_42 = arith.constant dense<0.000000e+00> : vector<512x32xf32>
    %39 = tpu.matmul %38, %34, %cst_42 {dimension_numbers = #tpu.dot_dimension_numbers<[1], [0], [0], [1], [0, 0, 1, 1], [], []>} : vector<512x128xf32>, vector<128x32xf32>, vector<512x32xf32> -> vector<512x32xf32>
    %40 = arith.addf %36, %39 : vector<512x32xf32>
    %c0_43 = arith.constant 0 : index
    %c0_44 = arith.constant 0 : index
    %c0_45 = arith.constant 0 : index
    %41 = vector.load %arg5[%c0_43, %c0_44, %c0_45] : memref<1x512x32xf32, #tpu.memory_space<vmem>>, vector<1x512x32xf32>
    %42 = vector.shape_cast %41 : vector<1x512x32xf32> to vector<512x32xf32>
    %43 = vector.shape_cast %40 : vector<512x32xf32> to vector<1x512x32xf32>
    tpu.vector_store %arg5[%c0_43, %c0_44, %c0_45], %43 {strides = array<i32>} : memref<1x512x32xf32, #tpu.memory_space<vmem>>, vector<1x512x32xf32>,
    return
  }
  func.func @transform_0(%arg0: i32) -> (i32, i32, i32) {
    %c0_i32 = arith.constant 0 : i32
    %c0_i32_0 = arith.constant 0 : i32
    %c0_i32_1 = arith.constant 0 : i32
    return %arg0, %c0_i32, %c0_i32_0 : i32, i32, i32
  }
  func.func @transform_1(%arg0: i32) -> (i32, i32, i32) {
    %c0_i32 = arith.constant 0 : i32
    %c0_i32_0 = arith.constant 0 : i32
    %c0_i32_1 = arith.constant 0 : i32
    %c0_i32_2 = arith.constant 0 : i32
    return %c0_i32, %c0_i32_0, %c0_i32_1 : i32, i32, i32
  }
  func.func @transform_2(%arg0: i32) -> (i32, i32, i32) {
    %c0_i32 = arith.constant 0 : i32
    %c0_i32_0 = arith.constant 0 : i32
    %c0_i32_1 = arith.constant 0 : i32
    %c0_i32_2 = arith.constant 0 : i32
    return %c0_i32, %c0_i32_0, %c0_i32_1 : i32, i32, i32
  }
  func.func @transform_3(%arg0: i32) -> (i32, i32) {
    %c0_i32 = arith.constant 0 : i32
    %c0_i32_0 = arith.constant 0 : i32
    %c0_i32_1 = arith.constant 0 : i32
    return %c0_i32, %c0_i32_0 : i32, i32
  }
  func.func @transform_4(%arg0: i32) -> (i32, i32, i32) {
    %c0_i32 = arith.constant 0 : i32
    %c0_i32_0 = arith.constant 0 : i32
    %c0_i32_1 = arith.constant 0 : i32
    return %arg0, %c0_i32, %c0_i32_0 : i32, i32, i32
  }
}

</mosaic_0001>

<llo_original>
// kernel: custom-call.3
$region0: #{custom-call.3}
  %s0 = inlined_call_operand.vmem [shape: c64[8,4,3,3], index: 0, kind: input, shape index: {}]
  %s1 = inlined_call_operand.vmem [shape: f32[8,4,3,3], index: 1, kind: output, shape index: {}]
  %s2 = scalar_lea.vmem %s0, 48
  %v3 = vld [vmem:[%s2] sm:$0xff]
  %4 = vst [vmem:[%s1] sm:$0xff] %v3
  %s5 = scalar_lea.vmem %s1, 8
  %s6 = scalar_lea.vmem %s2, 8
  %v7 = vld [vmem:[%s6] sm:$0xff]
  %8 = vst [vmem:[%s5] sm:$0xff] %v7
  %s9 = scalar_lea.vmem %s1, 16
  %s10 = scalar_lea.vmem %s2, 16
  %v11 = vld [vmem:[%s10] sm:$0xff]
  %12 = vst [vmem:[%s9] sm:$0xff] %v11
  %s13 = scalar_lea.vmem %s1, 24
  %s14 = scalar_lea.vmem %s2, 24
  %v15 = vld [vmem:[%s14] sm:$0xff]
  %16 = vst [vmem:[%s13] sm:$0xff] %v15
  %s17 = scalar_lea.vmem %s1, 32
  %s18 = scalar_lea.vmem %s2, 32
  %v19 = vld [vmem:[%s18] sm:$0xff]
  %20 = vst [vmem:[%s17] sm:$0xff] %v19
  %s21 = scalar_lea.vmem %s1, 40
  %s22 = scalar_lea.vmem %s2, 40
  %v23 = vld [vmem:[%s22] sm:$0xff]
  %24 = vst [vmem:[%s21] sm:$0xff] %v23

// kernel: neg.1
$region0: #{neg.1}
  #allocation0 [shape = 's32[1]{0}', space=sflag, size = 0x4, scoped, tag = 'scoped memory for neg.1']
  %s0 = inlined_call_operand.vmem [shape: f32[8,4,3,3], index: 0, kind: input, shape index: {}]
  %s1 = inlined_call_operand.vmem [shape: bf16[8,4,3,3], index: 1, kind: output, shape index: {}]
  %v2 = vld [vmem:[%s0] sm:$0x7]
  %3 = xla_tuple %v2
  %4 = xla_tuple %3
  %v5 = vxor.u32 %v2, 2147483648
  %6 = xla_tuple %v5
  %v7 = vpack.c.bf16 0.0, %v5
  %8 = vst [vmem:[%s1] sm:$0x3] %v7
  %s9 = scalar_lea.vmem %s0, 12
  %v10 = vld [vmem:[%s9] sm:$0x7]
  %11 = xla_tuple %v10
  %12 = xla_tuple %11
  %v13 = vxor.u32 %v10, 2147483648
  %14 = xla_tuple %v13
  %s15 = scalar_lea.vmem %s1, 6
  %v16 = vpack.c.bf16 0.0, %v13
  %17 = vst [vmem:[%s15] sm:$0x3] %v16
  %s18 = scalar_lea.vmem %s0, 24
  %v19 = vld [vmem:[%s18] sm:$0x7]
  %20 = xla_tuple %v19
  %21 = xla_tuple %20
  %v22 = vxor.u32 %v19, 2147483648
  %23 = xla_tuple %v22
  %s24 = scalar_lea.vmem %s1, 12
  %v25 = vpack.c.bf16 0.0, %v22
  %26 = vst [vmem:[%s24] sm:$0x3] %v25
  %s27 = scalar_lea.vmem %s0, 36
  %v28 = vld [vmem:[%s27] sm:$0x7]
  %29 = xla_tuple %v28
  %30 = xla_tuple %29
  %v31 = vxor.u32 %v28, 2147483648
  %32 = xla_tuple %v31
  %s33 = scalar_lea.vmem %s1, 18
  %v34 = vpack.c.bf16 0.0, %v31
  %35 = vst [vmem:[%s33] sm:$0x3] %v34
  %s36 = scalar_lea.vmem %s0, 4
  %v37 = vld [vmem:[%s36] sm:$0x7]
  %38 = xla_tuple %v37
  %39 = xla_tuple %38
  %v40 = vxor.u32 %v37, 2147483648
  %41 = xla_tuple %v40
  %s42 = scalar_lea.vmem %s1, 2
  %v43 = vpack.c.bf16 0.0, %v40
  %44 = vst [vmem:[%s42] sm:$0x3] %v43
  %s45 = scalar_lea.vmem %s0, 16
  %v46 = vld [vmem:[%s45] sm:$0x7]
  %47 = xla_tuple %v46
  %48 = xla_tuple %47
  %v49 = vxor.u32 %v46, 2147483648
  %50 = xla_tuple %v49
  %s51 = scalar_lea.vmem %s1, 8
  %v52 = vpack.c.bf16 0.0, %v49
  %53 = vst [vmem:[%s51] sm:$0x3] %v52
  %s54 = scalar_lea.vmem %s0, 28
  %v55 = vld [vmem:[%s54] sm:$0x7]
  %56 = xla_tuple %v55
  %57 = xla_tuple %56
  %v58 = vxor.u32 %v55, 2147483648
  %59 = xla_tuple %v58
  %s60 = scalar_lea.vmem %s1, 14
  %v61 = vpack.c.bf16 0.0, %v58
  %62 = vst [vmem:[%s60] sm:$0x3] %v61
  %s63 = scalar_lea.vmem %s0, 40
  %v64 = vld [vmem:[%s63] sm:$0x7]
  %65 = xla_tuple %v64
  %66 = xla_tuple %65
  %v67 = vxor.u32 %v64, 2147483648
  %68 = xla_tuple %v67
  %s69 = scalar_lea.vmem %s1, 20
  %v70 = vpack.c.bf16 0.0, %v67
  %71 = vst [vmem:[%s69] sm:$0x3] %v70
  %s72 = scalar_lea.vmem %s0, 8
  %v73 = vld [vmem:[%s72] sm:$0x7]
  %74 = xla_tuple %v73
  %75 = xla_tuple %74
  %v76 = vxor.u32 %v73, 2147483648
  %77 = xla_tuple %v76
  %s78 = scalar_lea.vmem %s1, 4
  %v79 = vpack.c.bf16 0.0, %v76
  %80 = vst [vmem:[%s78] sm:$0x3] %v79
  %s81 = scalar_lea.vmem %s0, 20
  %v82 = vld [vmem:[%s81] sm:$0x7]
  %83 = xla_tuple %v82
  %84 = xla_tuple %83
  %v85 = vxor.u32 %v82, 2147483648
  %86 = xla_tuple %v85
  %s87 = scalar_lea.vmem %s1, 10
  %v88 = vpack.c.bf16 0.0, %v85
  %89 = vst [vmem:[%s87] sm:$0x3] %v88
  %s90 = scalar_lea.vmem %s0, 32
  %v91 = vld [vmem:[%s90] sm:$0x7]
  %92 = xla_tuple %v91
  %93 = xla_tuple %92
  %v94 = vxor.u32 %v91, 2147483648
  %95 = xla_tuple %v94
  %s96 = scalar_lea.vmem %s1, 16
  %v97 = vpack.c.bf16 0.0, %v94
  %98 = vst [vmem:[%s96] sm:$0x3] %v97
  %s99 = scalar_lea.vmem %s0, 44
  %v100 = vld [vmem:[%s99] sm:$0x7]
  %101 = xla_tuple %v100
  %102 = xla_tuple %101
  %v103 = vxor.u32 %v100, 2147483648
  %104 = xla_tuple %v103
  %s105 = scalar_lea.vmem %s1, 22
  %v106 = vpack.c.bf16 0.0, %v103
  %107 = vst [vmem:[%s105] sm:$0x3] %v106

// kernel: custom-call.2
$region0: #{custom-call.2}
  %s0 = inlined_call_operand.vmem [shape: c64[8,4,3,3], index: 0, kind: input, shape index: {}]
  %s1 = inlined_call_operand.vmem [shape: f32[8,4,3,3], index: 1, kind: output, shape index: {}]
  %v2 = vld [vmem:[%s0] sm:$0xff]
  %3 = vst [vmem:[%s1] sm:$0xff] %v2
  %s4 = scalar_lea.vmem %s1, 8
  %s5 = scalar_lea.vmem %s0, 8
  %v6 = vld [vmem:[%s5] sm:$0xff]
  %7 = vst [vmem:[%s4] sm:$0xff] %v6
  %s8 = scalar_lea.vmem %s1, 16
  %s9 = scalar_lea.vmem %s0, 16
  %v10 = vld [vmem:[%s9] sm:$0xff]
  %11 = vst [vmem:[%s8] sm:$0xff] %v10
  %s12 = scalar_lea.vmem %s1, 24
  %s13 = scalar_lea.vmem %s0, 24
  %v14 = vld [vmem:[%s13] sm:$0xff]
  %15 = vst [vmem:[%s12] sm:$0xff] %v14
  %s16 = scalar_lea.vmem %s1, 32
  %s17 = scalar_lea.vmem %s0, 32
  %v18 = vld [vmem:[%s17] sm:$0xff]
  %19 = vst [vmem:[%s16] sm:$0xff] %v18
  %s20 = scalar_lea.vmem %s1, 40
  %s21 = scalar_lea.vmem %s0, 40
  %v22 = vld [vmem:[%s21] sm:$0xff]
  %23 = vst [vmem:[%s20] sm:$0xff] %v22

// kernel: custom-call.4
$region0: #{custom-call.4}
  %s0 = inlined_call_operand.hbm [shape: c64[8], index: 0, kind: input, shape index: {}]
  %s1 = inlined_call_operand.vmem [shape: f32[8], index: 1, kind: output, shape index: {}]
  $region1: #{custom-call.4} parent=0
    #allocation0 [shape = 's32[1]{0}', space=sflag, size = 0x4, scoped, tag = 'scoped memory for custom-call.4']
    %2 = vsyncpa [#allocation0], 0
    %s3 = sshll.u32 %s1, 4
    %s4 = int_to_ptr.vmem [resolvable:$true] %s3
    %6 = dma.hbm_to_vmem [thread:$0]  %s0, 16, %s4, [#allocation0]
    %7 = dma.done [#allocation0], 16
    %8 = vsyncpa [#allocation0], 1

// kernel: custom-call.5
$region0: #{custom-call.5}
  %s0 = inlined_call_operand.hbm [shape: c64[8], index: 0, kind: input, shape index: {}]
  %s1 = inlined_call_operand.vmem [shape: f32[8], index: 1, kind: output, shape index: {}]
  %s2 = scalar_lea.hbm %s0, 16
  $region1: #{custom-call.5} parent=0
    #allocation0 [shape = 's32[1]{0}', space=sflag, size = 0x4, scoped, tag = 'scoped memory for custom-call.5']
    %3 = vsyncpa [#allocation0], 0
    %s4 = sshll.u32 %s1, 4
    %s5 = int_to_ptr.vmem [resolvable:$true] %s4
    %7 = dma.hbm_to_vmem [thread:$0]  %s2, 16, %s5, [#allocation0]
    %8 = dma.done [#allocation0], 16
    %9 = vsyncpa [#allocation0], 1

// kernel: custom-call
$region0: #{custom-call}
  %s0 = inlined_call_operand.hbm [shape: c64[2,4,16,16], index: 0, kind: input, shape index: {}]
  %s1 = inlined_call_operand.vmem [shape: f32[2,4,16,16], index: 1, kind: output, shape index: {}]
  $region1: #{custom-call} parent=0
    #allocation0 [shape = 's32[1]{0}', space=sflag, size = 0x4, scoped, tag = 'scoped memory for custom-call']
    %2 = vsyncpa [#allocation0], 0
    %s3 = sshll.u32 %s1, 4
    %s4 = int_to_ptr.vmem [resolvable:$true] %s3
    %6 = dma.hbm_to_vmem [thread:$0]  %s0, 2048, %s4, [#allocation0]
    %7 = dma.done [#allocation0], 2048
    %8 = vsyncpa [#allocation0], 1

// kernel: custom-call.1
$region0: #{custom-call.1}
  %s0 = inlined_call_operand.hbm [shape: c64[2,4,16,16], index: 0, kind: input, shape index: {}]
  %s1 = inlined_call_operand.vmem [shape: f32[2,4,16,16], index: 1, kind: output, shape index: {}]
  %s2 = scalar_lea.hbm %s0, 2048
  $region1: #{custom-call.1} parent=0
    #allocation0 [shape = 's32[1]{0}', space=sflag, size = 0x4, scoped, tag = 'scoped memory for custom-call.1']
    %3 = vsyncpa [#allocation0], 0
    %s4 = sshll.u32 %s1, 4
    %s5 = int_to_ptr.vmem [resolvable:$true] %s4
    %7 = dma.hbm_to_vmem [thread:$0]  %s2, 2048, %s5, [#allocation0]
    %8 = dma.done [#allocation0], 2048
    %9 = vsyncpa [#allocation0], 1

// kernel: custom-call.6
$region0: #{custom-call.6}
  %s0 = inlined_call_operand.vmem [shape: f32[2,8,32,32], index: 0, kind: input, shape index: {}]
  %s1 = inlined_call_operand.vmem [shape: f32[2,8,32,32], index: 1, kind: input, shape index: {}]
  %s2 = inlined_call_operand.hbm [shape: c64[2,8,32,32], index: 2, kind: output, shape index: {}]
  %s3 = scalar_lea.hbm %s2, 8192
  $region1: #{custom-call.6} parent=0
    #allocation0 [shape = 's32[1]{0}', space=sflag, size = 0x4, scoped, tag = 'scoped memory for custom-call.6']
    %4 = vsyncpa [#allocation0], 0
    %s5 = sshll.u32 %s0, 4
    %s6 = int_to_ptr.vmem [resolvable:$true] %s5
    %8 = dma.vmem_to_hbm [thread:$0]  %s6, 8192, %s2, [#allocation0]
    %9 = dma.done [#allocation0], 8192
    %10 = vsyncpa [#allocation0], 1
  $region2: #{custom-call.6} parent=0
    #allocation1 [shape = 's32[1]{0}', space=sflag, size = 0x4, scoped, tag = 'scoped memory for custom-call.6']
    %11 = vsyncpa [#allocation1], 0
    %s12 = sshll.u32 %s1, 4
    %s13 = int_to_ptr.vmem [resolvable:$true] %s12
    %15 = dma.vmem_to_hbm [thread:$0]  %s13, 8192, %s3, [#allocation1]
    %16 = dma.done [#allocation1], 8192
    %17 = vsyncpa [#allocation1], 1

// kernel: upsampling_forward.1
$region0: #{upsampling_forward.1}
  #allocation0 [shape = 'u32[]', space=smem, size = 0x4, offset = 0x4, fixed_abs, tag = 'smem constant byte address 0x4 - core index']
  #allocation1 [shape = 'u32[144,128]{1,0:T(1,128)}', space=vmem, size = 0x12000, scoped, tag = 'internal scratch']
  %s0 = inlined_call_operand.vmem [shape: f32[2,128,16], index: 0, kind: input, shape index: {}]
  %s1 = inlined_call_operand.vmem [shape: f32[3,512,128], index: 1, kind: input, shape index: {}]
  %s2 = inlined_call_operand.vmem [shape: f32[3,16,32], index: 2, kind: input, shape index: {}]
  %s3 = inlined_call_operand.vmem [shape: f32[512,1], index: 3, kind: input, shape index: {}]
  %s4 = inlined_call_operand.vmem [shape: f32[2,512,32], index: 4, kind: output, shape index: {}]
  %s5 = sld [smem:[#allocation0]]
  $region49: #{upsampling_forward.1} parent=0
    _
  %s7 = ssub.s32 1, %s5
  %s8 = scalar_select 0, %s7, %s5
  loop: start=0, step=1, limit=4
  $region2: #{upsampling_forward.1} parent=0 // loop_pre_header
    _
  $region3: #{upsampling_forward.1} parent=0 // loop_header
    %s10 = sphi 0, %s14
    %p11 = scmp.ge.s32.totalorder %s10, 4
    %s20 = sphi 0, %s22
    %s23 = sphi 0, %s20
    %s24 = sphi 0, %s23
    %s40 = sphi 0, %s24
    %s44 = sphi 0, %s44
    %s46 = sphi 0, %s44
    %s47 = sphi 0, %s46
    %s61 = sphi 0, %s47
    %s65 = sphi 0, %s65
    %s67 = sphi 0, %s65
    %s68 = sphi 0, %s67
    %s82 = sphi 0, %s68
    %s86 = sphi 0, %s86
    %s88 = sphi 0, %s86
    %s89 = sphi 0, %s88
    %s103 = sphi 0, %s89
    %s109 = sphi 0, %s111
    %s112 = sphi 0, %s109
    %s113 = sphi 0, %s112
    %s129 = sphi 0, %s113
  $region4: #{upsampling_forward.1} parent=0 // loop_header_branch
    %13 = sbr.rel (%p11) target = $region8
  $region5: #{upsampling_forward.1} parent=0 // loop_body
    %s15 = ssub.s32 %s10, 1
    %s16 = ssub.s32 %s10, 2
    %s17 = sadd.s32 %s10, 1
    %s18 = ssub.s32 %s10, %s17
    %p19 = scmp.eq.s32.totalorder %s18, 0
    %s21 = sadd.s32 %s20, 1
    %s22 = scalar_select %p19, %s20, %s21
    %p25 = pneg %p19
    %p26 = scmp.eq.s32.totalorder %s10, 1
    %p27 = por %p25, %p26
    %p28 = scmp.ne.s32.totalorder %s20, %s23
    %p29 = scmp.eq.s32.totalorder %s10, 0
    %p30 = por %p28, %p29
    %p31 = scmp.ne.s32.totalorder %s20, %s23
    %p32 = scmp.eq.s32.totalorder %s15, 1
    %p33 = por %p31, %p32
    %p34 = scmp.ne.s32.totalorder %s23, %s24
    %p35 = scmp.eq.s32.totalorder %s15, 0
    %p36 = por %p34, %p35
    %p37 = scmp.ne.s32.totalorder %s23, %s24
    %p38 = scmp.eq.s32.totalorder %s16, 1
    %p39 = por %p37, %p38
    %p41 = scmp.ne.s32.totalorder %s24, %s40
    %p42 = scmp.eq.s32.totalorder %s16, 0
    %p43 = por %p41, %p42
    %s45 = sadd.s32 %s44, 1
    %p48 = scmp.eq.s32.totalorder %s10, 1
    %p49 = scmp.ne.s32.totalorder %s44, %s46
    %p50 = scmp.eq.s32.totalorder %s10, 0
    %p51 = por %p49, %p50
    %p52 = scmp.ne.s32.totalorder %s44, %s46
    %p53 = scmp.eq.s32.totalorder %s15, 1
    %p54 = por %p52, %p53
    %p55 = scmp.ne.s32.totalorder %s46, %s47
    %p56 = scmp.eq.s32.totalorder %s15, 0
    %p57 = por %p55, %p56
    %p58 = scmp.ne.s32.totalorder %s46, %s47
    %p59 = scmp.eq.s32.totalorder %s16, 1
    %p60 = por %p58, %p59
    %p62 = scmp.ne.s32.totalorder %s47, %s61
    %p63 = scmp.eq.s32.totalorder %s16, 0
    %p64 = por %p62, %p63
    %s66 = sadd.s32 %s65, 1
    %p69 = scmp.eq.s32.totalorder %s10, 1
    %p70 = scmp.ne.s32.totalorder %s65, %s67
    %p71 = scmp.eq.s32.totalorder %s10, 0
    %p72 = por %p70, %p71
    %p73 = scmp.ne.s32.totalorder %s65, %s67
    %p74 = scmp.eq.s32.totalorder %s15, 1
    %p75 = por %p73, %p74
    %p76 = scmp.ne.s32.totalorder %s67, %s68
    %p77 = scmp.eq.s32.totalorder %s15, 0
    %p78 = por %p76, %p77
    %p79 = scmp.ne.s32.totalorder %s67, %s68
    %p80 = scmp.eq.s32.totalorder %s16, 1
    %p81 = por %p79, %p80
    %p83 = scmp.ne.s32.totalorder %s68, %s82
    %p84 = scmp.eq.s32.totalorder %s16, 0
    %p85 = por %p83, %p84
    %s87 = sadd.s32 %s86, 1
    %p90 = scmp.eq.s32.totalorder %s10, 1
    %p91 = scmp.ne.s32.totalorder %s86, %s88
    %p92 = scmp.eq.s32.totalorder %s10, 0
    %p93 = por %p91, %p92
    %p94 = scmp.ne.s32.totalorder %s86, %s88
    %p95 = scmp.eq.s32.totalorder %s15, 1
    %p96 = por %p94, %p95
    %p97 = scmp.ne.s32.totalorder %s88, %s89
    %p98 = scmp.eq.s32.totalorder %s15, 0
    %p99 = por %p97, %p98
    %p100 = scmp.ne.s32.totalorder %s88, %s89
    %p101 = scmp.eq.s32.totalorder %s16, 1
    %p102 = por %p100, %p101
    %p104 = scmp.ne.s32.totalorder %s89, %s103
    %p105 = scmp.eq.s32.totalorder %s16, 0
    %p106 = por %p104, %p105
    %s107 = ssub.s32 %s10, %s17
    %p108 = scmp.eq.s32.totalorder %s107, 0
    %s110 = sadd.s32 %s109, 1
    %s111 = scalar_select %p108, %s109, %s110
    %p114 = pneg %p108
    %p115 = scmp.eq.s32.totalorder %s10, 1
    %p116 = por %p114, %p115
    %p117 = scmp.ne.s32.totalorder %s109, %s112
    %p118 = scmp.eq.s32.totalorder %s10, 0
    %p119 = por %p117, %p118
    %p120 = scmp.ne.s32.totalorder %s109, %s112
    %p121 = scmp.eq.s32.totalorder %s15, 1
    %p122 = por %p120, %p121
    %p123 = scmp.ne.s32.totalorder %s112, %s113
    %p124 = scmp.eq.s32.totalorder %s15, 0
    %p125 = por %p123, %p124
    %p126 = scmp.ne.s32.totalorder %s112, %s113
    %p127 = scmp.eq.s32.totalorder %s16, 1
    %p128 = por %p126, %p127
    %p130 = scmp.ne.s32.totalorder %s113, %s129
    %p131 = scmp.eq.s32.totalorder %s16, 0
    %p132 = por %p130, %p131
    %p133 = scmp.le.s32.totalorder 1, %s10
    %p134 = scmp.lt.s32.totalorder %s10, 3
    %p135 = pnand %p133, %p134
    %p136 = pneg %p135
    // Predicated region
    $region9: #{upsampling_forward.1} parent=5 // pred_check
      _
    $region10: #{upsampling_forward.1} parent=5 // pred_check_branch
      %138 = sbr.rel (%p135) target = $region12
    $region11: #{upsampling_forward.1} parent=5 // pred_region
      %s139 = ssub.s32 %s10, 1
      // Predicated region
      $region13: #{upsampling_forward.1} parent=11 // pred_check
        %p140 = pneg %p57
      $region14: #{upsampling_forward.1} parent=11 // pred_check_branch
        %142 = sbr.rel (%p140) target = $region16
      $region15: #{upsampling_forward.1} parent=11 // pred_region
        _
      $region16: #{upsampling_forward.1} parent=11 // pred_fallthru
        _
      // Predicated region
      $region17: #{upsampling_forward.1} parent=11 // pred_check
        %p143 = pneg %p78
      $region18: #{upsampling_forward.1} parent=11 // pred_check_branch
        %145 = sbr.rel (%p143) target = $region20
      $region19: #{upsampling_forward.1} parent=11 // pred_region
        _
      $region20: #{upsampling_forward.1} parent=11 // pred_fallthru
        _
      // Predicated region
      $region21: #{upsampling_forward.1} parent=11 // pred_check
        %p146 = pneg %p99
      $region22: #{upsampling_forward.1} parent=11 // pred_check_branch
        %148 = sbr.rel (%p146) target = $region24
      $region23: #{upsampling_forward.1} parent=11 // pred_region
        _
      $region24: #{upsampling_forward.1} parent=11 // pred_fallthru
        _
    $region12: #{upsampling_forward.1} parent=5 // pred_fallthru
      _
    %p149 = scmp.lt.s32.totalorder %s10, 2
    // Predicated region
    $region25: #{upsampling_forward.1} parent=5 // pred_check
      %p150 = pneg %p149
    $region26: #{upsampling_forward.1} parent=5 // pred_check_branch
      %152 = sbr.rel (%p150) target = $region28
    $region27: #{upsampling_forward.1} parent=5 // pred_region
      // Predicated region
      $region29: #{upsampling_forward.1} parent=27 // pred_check
        %p153 = pneg %p30
      $region30: #{upsampling_forward.1} parent=27 // pred_check_branch
        %155 = sbr.rel (%p153) target = $region32
      $region31: #{upsampling_forward.1} parent=27 // pred_region
        %p156 = scmp.lt.s32.totalorder %s10, 1
        %s157 = scalar_select %p156, %s10, 1
        %s158 = smul.addr %s157, 16
        %s159 = smul.addr %s158, 8
        %s160 = scalar_lea.vmem %s0, %s159
      $region32: #{upsampling_forward.1} parent=27 // pred_fallthru
        _
    $region28: #{upsampling_forward.1} parent=5 // pred_fallthru
      _
    %p161 = scmp.le.s32.totalorder 1, %s10
    %p162 = scmp.lt.s32.totalorder %s10, 3
    %p163 = pnand %p161, %p162
    %p164 = pneg %p163
    // Predicated region
    $region33: #{upsampling_forward.1} parent=5 // pred_check
      _
    $region34: #{upsampling_forward.1} parent=5 // pred_check_branch
      %166 = sbr.rel (%p163) target = $region36
    $region35: #{upsampling_forward.1} parent=5 // pred_region
      %s167 = ssub.s32 %s10, 1
      %p168 = scmp.lt.s32.totalorder %s15, 1
      %s169 = scalar_select %p168, %s15, 1
      %s170 = smul.addr %s169, 16
      %s171 = smul.addr %s170, 8
      %s172 = scalar_lea.vmem %s0, %s171
      %p173 = pneg %p36
      %p174 = pneg %p33
      %p175 = pneg %p57
      %p176 = pneg %p54
      %p177 = pneg %p78
      %p178 = pneg %p75
      %p179 = pneg %p99
      %p180 = pneg %p96
      %p181 = pneg %p125
      %p182 = pneg %p122
      %p183 = scmp.lt.s32.totalorder %s15, 1
      %s184 = scalar_select %p183, %s15, 1
      %s185 = smul.addr %s184, 64
      %s186 = smul.addr %s185, 8
      %s187 = scalar_lea.vmem %s4, %s186
      %p188 = scmp.lt.s32.totalorder %s15, 1
      %s189 = scalar_select %p188, %s15, 1
      %s190 = smul.addr %s189, 16
      %s191 = smul.addr %s190, 8
      %s192 = scalar_lea.vmem %s0, %s191
      %p193 = scmp.lt.s32.totalorder %s15, 1
      %s194 = scalar_select %p193, %s15, 1
      %s195 = smul.addr %s194, 64
      %s196 = smul.addr %s195, 8
      %s197 = scalar_lea.vmem %s4, %s196
      %v198 = vld [vmem:[%s3] sm:$0xff]
      %v199 = vld [vmem:[%s3 + $0x8] sm:$0xff]
      %v200 = vld [vmem:[%s3 + $0x10] sm:$0xff]
      %v201 = vld [vmem:[%s3 + $0x18] sm:$0xff]
      %v202 = vld [vmem:[%s3 + $0x20] sm:$0xff]
      %v203 = vld [vmem:[%s3 + $0x28] sm:$0xff]
      %v204 = vld [vmem:[%s3 + $0x30] sm:$0xff]
      %v205 = vld [vmem:[%s3 + $0x38] sm:$0xff]
      %v206 = vld [vmem:[%s3 + $0x40] sm:$0xff]
      %v207 = vld [vmem:[%s3 + $0x48] sm:$0xff]
      %v208 = vld [vmem:[%s3 + $0x50] sm:$0xff]
      %v209 = vld [vmem:[%s3 + $0x58] sm:$0xff]
      %v210 = vld [vmem:[%s3 + $0x60] sm:$0xff]
      %v211 = vld [vmem:[%s3 + $0x68] sm:$0xff]
      %v212 = vld [vmem:[%s3 + $0x70] sm:$0xff]
      %v213 = vld [vmem:[%s3 + $0x78] sm:$0xff]
      %v214 = vld [vmem:[%s3 + $0x80] sm:$0xff]
      %v215 = vld [vmem:[%s3 + $0x88] sm:$0xff]
      %v216 = vld [vmem:[%s3 + $0x90] sm:$0xff]
      %v217 = vld [vmem:[%s3 + $0x98] sm:$0xff]
      %v218 = vld [vmem:[%s3 + $0xa0] sm:$0xff]
      %v219 = vld [vmem:[%s3 + $0xa8] sm:$0xff]
      %v220 = vld [vmem:[%s3 + $0xb0] sm:$0xff]
      %v221 = vld [vmem:[%s3 + $0xb8] sm:$0xff]
      %v222 = vld [vmem:[%s3 + $0xc0] sm:$0xff]
      %v223 = vld [vmem:[%s3 + $0xc8] sm:$0xff]
      %v224 = vld [vmem:[%s3 + $0xd0] sm:$0xff]
      %v225 = vld [vmem:[%s3 + $0xd8] sm:$0xff]
      %v226 = vld [vmem:[%s3 + $0xe0] sm:$0xff]
      %v227 = vld [vmem:[%s3 + $0xe8] sm:$0xff]
      %v228 = vld [vmem:[%s3 + $0xf0] sm:$0xff]
      %v229 = vld [vmem:[%s3 + $0xf8] sm:$0xff]
      %v230 = vld [vmem:[%s3 + $0x100] sm:$0xff]
      %v231 = vld [vmem:[%s3 + $0x108] sm:$0xff]
      %v232 = vld [vmem:[%s3 + $0x110] sm:$0xff]
      %v233 = vld [vmem:[%s3 + $0x118] sm:$0xff]
      %v234 = vld [vmem:[%s3 + $0x120] sm:$0xff]
      %v235 = vld [vmem:[%s3 + $0x128] sm:$0xff]
      %v236 = vld [vmem:[%s3 + $0x130] sm:$0xff]
      %v237 = vld [vmem:[%s3 + $0x138] sm:$0xff]
      %v238 = vld [vmem:[%s3 + $0x140] sm:$0xff]
      %v239 = vld [vmem:[%s3 + $0x148] sm:$0xff]
      %v240 = vld [vmem:[%s3 + $0x150] sm:$0xff]
      %v241 = vld [vmem:[%s3 + $0x158] sm:$0xff]
      %v242 = vld [vmem:[%s3 + $0x160] sm:$0xff]
      %v243 = vld [vmem:[%s3 + $0x168] sm:$0xff]
      %v244 = vld [vmem:[%s3 + $0x170] sm:$0xff]
      %v245 = vld [vmem:[%s3 + $0x178] sm:$0xff]
      %v246 = vld [vmem:[%s3 + $0x180] sm:$0xff]
      %v247 = vld [vmem:[%s3 + $0x188] sm:$0xff]
      %v248 = vld [vmem:[%s3 + $0x190] sm:$0xff]
      %v249 = vld [vmem:[%s3 + $0x198] sm:$0xff]
      %v250 = vld [vmem:[%s3 + $0x1a0] sm:$0xff]
      %v251 = vld [vmem:[%s3 + $0x1a8] sm:$0xff]
      %v252 = vld [vmem:[%s3 + $0x1b0] sm:$0xff]
      %v253 = vld [vmem:[%s3 + $0x1b8] sm:$0xff]
      %v254 = vld [vmem:[%s3 + $0x1c0] sm:$0xff]
      %v255 = vld [vmem:[%s3 + $0x1c8] sm:$0xff]
      %v256 = vld [vmem:[%s3 + $0x1d0] sm:$0xff]
      %v257 = vld [vmem:[%s3 + $0x1d8] sm:$0xff]
      %v258 = vld [vmem:[%s3 + $0x1e0] sm:$0xff]
      %v259 = vld [vmem:[%s3 + $0x1e8] sm:$0xff]
      %v260 = vld [vmem:[%s3 + $0x1f0] sm:$0xff]
      %v261 = vld [vmem:[%s3 + $0x1f8] sm:$0xff]
      %263 = vset.pattern.permute.xlu0 0
      %264 = vperm.xlu0 %263, %v198
      %v265 = vpop.permute.xlu0 %264
      %268 = vset.pattern.permute.xlu0 0
      %269 = vperm.xlu0 %268, %v199
      %v270 = vpop.permute.xlu0 %269
      %273 = vset.pattern.permute.xlu0 0
      %274 = vperm.xlu0 %273, %v200
      %v275 = vpop.permute.xlu0 %274
      %278 = vset.pattern.permute.xlu0 0
      %279 = vperm.xlu0 %278, %v201
      %v280 = vpop.permute.xlu0 %279
      %283 = vset.pattern.permute.xlu0 0
      %284 = vperm.xlu0 %283, %v202
      %v285 = vpop.permute.xlu0 %284
      %288 = vset.pattern.permute.xlu0 0
      %289 = vperm.xlu0 %288, %v203
      %v290 = vpop.permute.xlu0 %289
      %293 = vset.pattern.permute.xlu0 0
      %294 = vperm.xlu0 %293, %v204
      %v295 = vpop.permute.xlu0 %294
      %298 = vset.pattern.permute.xlu0 0
      %299 = vperm.xlu0 %298, %v205
      %v300 = vpop.permute.xlu0 %299
      %303 = vset.pattern.permute.xlu0 0
      %304 = vperm.xlu0 %303, %v206
      %v305 = vpop.permute.xlu0 %304
      %308 = vset.pattern.permute.xlu0 0
      %309 = vperm.xlu0 %308, %v207
      %v310 = vpop.permute.xlu0 %309
      %313 = vset.pattern.permute.xlu0 0
      %314 = vperm.xlu0 %313, %v208
      %v315 = vpop.permute.xlu0 %314
      %318 = vset.pattern.permute.xlu0 0
      %319 = vperm.xlu0 %318, %v209
      %v320 = vpop.permute.xlu0 %319
      %323 = vset.pattern.permute.xlu0 0
      %324 = vperm.xlu0 %323, %v210
      %v325 = vpop.permute.xlu0 %324
      %328 = vset.pattern.permute.xlu0 0
      %329 = vperm.xlu0 %328, %v211
      %v330 = vpop.permute.xlu0 %329
      %333 = vset.pattern.permute.xlu0 0
      %334 = vperm.xlu0 %333, %v212
      %v335 = vpop.permute.xlu0 %334
      %338 = vset.pattern.permute.xlu0 0
      %339 = vperm.xlu0 %338, %v213
      %v340 = vpop.permute.xlu0 %339
      %343 = vset.pattern.permute.xlu0 0
      %344 = vperm.xlu0 %343, %v214
      %v345 = vpop.permute.xlu0 %344
      %348 = vset.pattern.permute.xlu0 0
      %349 = vperm.xlu0 %348, %v215
      %v350 = vpop.permute.xlu0 %349
      %353 = vset.pattern.permute.xlu0 0
      %354 = vperm.xlu0 %353, %v216
      %v355 = vpop.permute.xlu0 %354
      %358 = vset.pattern.permute.xlu0 0
      %359 = vperm.xlu0 %358, %v217
      %v360 = vpop.permute.xlu0 %359
      %363 = vset.pattern.permute.xlu0 0
      %364 = vperm.xlu0 %363, %v218
      %v365 = vpop.permute.xlu0 %364
      %368 = vset.pattern.permute.xlu0 0
      %369 = vperm.xlu0 %368, %v219
      %v370 = vpop.permute.xlu0 %369
      %373 = vset.pattern.permute.xlu0 0
      %374 = vperm.xlu0 %373, %v220
      %v375 = vpop.permute.xlu0 %374
      %378 = vset.pattern.permute.xlu0 0
      %379 = vperm.xlu0 %378, %v221
      %v380 = vpop.permute.xlu0 %379
      %383 = vset.pattern.permute.xlu0 0
      %384 = vperm.xlu0 %383, %v222
      %v385 = vpop.permute.xlu0 %384
      %388 = vset.pattern.permute.xlu0 0
      %389 = vperm.xlu0 %388, %v223
      %v390 = vpop.permute.xlu0 %389
      %393 = vset.pattern.permute.xlu0 0
      %394 = vperm.xlu0 %393, %v224
      %v395 = vpop.permute.xlu0 %394
      %398 = vset.pattern.permute.xlu0 0
      %399 = vperm.xlu0 %398, %v225
      %v400 = vpop.permute.xlu0 %399
      %403 = vset.pattern.permute.xlu0 0
      %404 = vperm.xlu0 %403, %v226
      %v405 = vpop.permute.xlu0 %404
      %408 = vset.pattern.permute.xlu0 0
      %409 = vperm.xlu0 %408, %v227
      %v410 = vpop.permute.xlu0 %409
      %413 = vset.pattern.permute.xlu0 0
      %414 = vperm.xlu0 %413, %v228
      %v415 = vpop.permute.xlu0 %414
      %418 = vset.pattern.permute.xlu0 0
      %419 = vperm.xlu0 %418, %v229
      %v420 = vpop.permute.xlu0 %419
      %423 = vset.pattern.permute.xlu0 0
      %424 = vperm.xlu0 %423, %v230
      %v425 = vpop.permute.xlu0 %424
      %428 = vset.pattern.permute.xlu0 0
      %429 = vperm.xlu0 %428, %v231
      %v430 = vpop.permute.xlu0 %429
      %433 = vset.pattern.permute.xlu0 0
      %434 = vperm.xlu0 %433, %v232
      %v435 = vpop.permute.xlu0 %434
      %438 = vset.pattern.permute.xlu0 0
      %439 = vperm.xlu0 %438, %v233
      %v440 = vpop.permute.xlu0 %439
      %443 = vset.pattern.permute.xlu0 0
      %444 = vperm.xlu0 %443, %v234
      %v445 = vpop.permute.xlu0 %444
      %448 = vset.pattern.permute.xlu0 0
      %449 = vperm.xlu0 %448, %v235
      %v450 = vpop.permute.xlu0 %449
      %453 = vset.pattern.permute.xlu0 0
      %454 = vperm.xlu0 %453, %v236
      %v455 = vpop.permute.xlu0 %454
      %458 = vset.pattern.permute.xlu0 0
      %459 = vperm.xlu0 %458, %v237
      %v460 = vpop.permute.xlu0 %459
      %463 = vset.pattern.permute.xlu0 0
      %464 = vperm.xlu0 %463, %v238
      %v465 = vpop.permute.xlu0 %464
      %468 = vset.pattern.permute.xlu0 0
      %469 = vperm.xlu0 %468, %v239
      %v470 = vpop.permute.xlu0 %469
      %473 = vset.pattern.permute.xlu0 0
      %474 = vperm.xlu0 %473, %v240
      %v475 = vpop.permute.xlu0 %474
      %478 = vset.pattern.permute.xlu0 0
      %479 = vperm.xlu0 %478, %v241
      %v480 = vpop.permute.xlu0 %479
      %483 = vset.pattern.permute.xlu0 0
      %484 = vperm.xlu0 %483, %v242
      %v485 = vpop.permute.xlu0 %484
      %488 = vset.pattern.permute.xlu0 0
      %489 = vperm.xlu0 %488, %v243
      %v490 = vpop.permute.xlu0 %489
      %493 = vset.pattern.permute.xlu0 0
      %494 = vperm.xlu0 %493, %v244
      %v495 = vpop.permute.xlu0 %494
      %498 = vset.pattern.permute.xlu0 0
      %499 = vperm.xlu0 %498, %v245
      %v500 = vpop.permute.xlu0 %499
      %503 = vset.pattern.permute.xlu0 0
      %504 = vperm.xlu0 %503, %v246
      %v505 = vpop.permute.xlu0 %504
      %508 = vset.pattern.permute.xlu0 0
      %509 = vperm.xlu0 %508, %v247
      %v510 = vpop.permute.xlu0 %509
      %513 = vset.pattern.permute.xlu0 0
      %514 = vperm.xlu0 %513, %v248
      %v515 = vpop.permute.xlu0 %514
      %518 = vset.pattern.permute.xlu0 0
      %519 = vperm.xlu0 %518, %v249
      %v520 = vpop.permute.xlu0 %519
      %523 = vset.pattern.permute.xlu0 0
      %524 = vperm.xlu0 %523, %v250
      %v525 = vpop.permute.xlu0 %524
      %528 = vset.pattern.permute.xlu0 0
      %529 = vperm.xlu0 %528, %v251
      %v530 = vpop.permute.xlu0 %529
      %533 = vset.pattern.permute.xlu0 0
      %534 = vperm.xlu0 %533, %v252
      %v535 = vpop.permute.xlu0 %534
      %538 = vset.pattern.permute.xlu0 0
      %539 = vperm.xlu0 %538, %v253
      %v540 = vpop.permute.xlu0 %539
      %543 = vset.pattern.permute.xlu0 0
      %544 = vperm.xlu0 %543, %v254
      %v545 = vpop.permute.xlu0 %544
      %548 = vset.pattern.permute.xlu0 0
      %549 = vperm.xlu0 %548, %v255
      %v550 = vpop.permute.xlu0 %549
      %553 = vset.pattern.permute.xlu0 0
      %554 = vperm.xlu0 %553, %v256
      %v555 = vpop.permute.xlu0 %554
      %558 = vset.pattern.permute.xlu0 0
      %559 = vperm.xlu0 %558, %v257
      %v560 = vpop.permute.xlu0 %559
      %563 = vset.pattern.permute.xlu0 0
      %564 = vperm.xlu0 %563, %v258
      %v565 = vpop.permute.xlu0 %564
      %568 = vset.pattern.permute.xlu0 0
      %569 = vperm.xlu0 %568, %v259
      %v570 = vpop.permute.xlu0 %569
      %573 = vset.pattern.permute.xlu0 0
      %574 = vperm.xlu0 %573, %v260
      %v575 = vpop.permute.xlu0 %574
      %578 = vset.pattern.permute.xlu0 0
      %579 = vperm.xlu0 %578, %v261
      %v580 = vpop.permute.xlu0 %579
      %vm582 = vcmask 261120
      %583 = vst.msk [vmem:[%s197] sm:$0xff] %vm582, %v265
      %584 = vst.msk [vmem:[%s197 + $0x8] sm:$0xff] %vm582, %v270
      %585 = vst.msk [vmem:[%s197 + $0x10] sm:$0xff] %vm582, %v275
      %586 = vst.msk [vmem:[%s197 + $0x18] sm:$0xff] %vm582, %v280
      %587 = vst.msk [vmem:[%s197 + $0x20] sm:$0xff] %vm582, %v285
      %588 = vst.msk [vmem:[%s197 + $0x28] sm:$0xff] %vm582, %v290
      %589 = vst.msk [vmem:[%s197 + $0x30] sm:$0xff] %vm582, %v295
      %590 = vst.msk [vmem:[%s197 + $0x38] sm:$0xff] %vm582, %v300
      %591 = vst.msk [vmem:[%s197 + $0x40] sm:$0xff] %vm582, %v305
      %592 = vst.msk [vmem:[%s197 + $0x48] sm:$0xff] %vm582, %v310
      %593 = vst.msk [vmem:[%s197 + $0x50] sm:$0xff] %vm582, %v315
      %594 = vst.msk [vmem:[%s197 + $0x58] sm:$0xff] %vm582, %v320
      %595 = vst.msk [vmem:[%s197 + $0x60] sm:$0xff] %vm582, %v325
      %596 = vst.msk [vmem:[%s197 + $0x68] sm:$0xff] %vm582, %v330
      %597 = vst.msk [vmem:[%s197 + $0x70] sm:$0xff] %vm582, %v335
      %598 = vst.msk [vmem:[%s197 + $0x78] sm:$0xff] %vm582, %v340
      %599 = vst.msk [vmem:[%s197 + $0x80] sm:$0xff] %vm582, %v345
      %600 = vst.msk [vmem:[%s197 + $0x88] sm:$0xff] %vm582, %v350
      %601 = vst.msk [vmem:[%s197 + $0x90] sm:$0xff] %vm582, %v355
      %602 = vst.msk [vmem:[%s197 + $0x98] sm:$0xff] %vm582, %v360
      %603 = vst.msk [vmem:[%s197 + $0xa0] sm:$0xff] %vm582, %v365
      %604 = vst.msk [vmem:[%s197 + $0xa8] sm:$0xff] %vm582, %v370
      %605 = vst.msk [vmem:[%s197 + $0xb0] sm:$0xff] %vm582, %v375
      %606 = vst.msk [vmem:[%s197 + $0xb8] sm:$0xff] %vm582, %v380
      %607 = vst.msk [vmem:[%s197 + $0xc0] sm:$0xff] %vm582, %v385
      %608 = vst.msk [vmem:[%s197 + $0xc8] sm:$0xff] %vm582, %v390
      %609 = vst.msk [vmem:[%s197 + $0xd0] sm:$0xff] %vm582, %v395
      %610 = vst.msk [vmem:[%s197 + $0xd8] sm:$0xff] %vm582, %v400
      %611 = vst.msk [vmem:[%s197 + $0xe0] sm:$0xff] %vm582, %v405
      %612 = vst.msk [vmem:[%s197 + $0xe8] sm:$0xff] %vm582, %v410
      %613 = vst.msk [vmem:[%s197 + $0xf0] sm:$0xff] %vm582, %v415
      %614 = vst.msk [vmem:[%s197 + $0xf8] sm:$0xff] %vm582, %v420
      %615 = vst.msk [vmem:[%s197 + $0x100] sm:$0xff] %vm582, %v425
      %616 = vst.msk [vmem:[%s197 + $0x108] sm:$0xff] %vm582, %v430
      %617 = vst.msk [vmem:[%s197 + $0x110] sm:$0xff] %vm582, %v435
      %618 = vst.msk [vmem:[%s197 + $0x118] sm:$0xff] %vm582, %v440
      %619 = vst.msk [vmem:[%s197 + $0x120] sm:$0xff] %vm582, %v445
      %620 = vst.msk [vmem:[%s197 + $0x128] sm:$0xff] %vm582, %v450
      %621 = vst.msk [vmem:[%s197 + $0x130] sm:$0xff] %vm582, %v455
      %622 = vst.msk [vmem:[%s197 + $0x138] sm:$0xff] %vm582, %v460
      %623 = vst.msk [vmem:[%s197 + $0x140] sm:$0xff] %vm582, %v465
      %624 = vst.msk [vmem:[%s197 + $0x148] sm:$0xff] %vm582, %v470
      %625 = vst.msk [vmem:[%s197 + $0x150] sm:$0xff] %vm582, %v475
      %626 = vst.msk [vmem:[%s197 + $0x158] sm:$0xff] %vm582, %v480
      %627 = vst.msk [vmem:[%s197 + $0x160] sm:$0xff] %vm582, %v485
      %628 = vst.msk [vmem:[%s197 + $0x168] sm:$0xff] %vm582, %v490
      %629 = vst.msk [vmem:[%s197 + $0x170] sm:$0xff] %vm582, %v495
      %630 = vst.msk [vmem:[%s197 + $0x178] sm:$0xff] %vm582, %v500
      %631 = vst.msk [vmem:[%s197 + $0x180] sm:$0xff] %vm582, %v505
      %632 = vst.msk [vmem:[%s197 + $0x188] sm:$0xff] %vm582, %v510
      %633 = vst.msk [vmem:[%s197 + $0x190] sm:$0xff] %vm582, %v515
      %634 = vst.msk [vmem:[%s197 + $0x198] sm:$0xff] %vm582, %v520
      %635 = vst.msk [vmem:[%s197 + $0x1a0] sm:$0xff] %vm582, %v525
      %636 = vst.msk [vmem:[%s197 + $0x1a8] sm:$0xff] %vm582, %v530
      %637 = vst.msk [vmem:[%s197 + $0x1b0] sm:$0xff] %vm582, %v535
      %638 = vst.msk [vmem:[%s197 + $0x1b8] sm:$0xff] %vm582, %v540
      %639 = vst.msk [vmem:[%s197 + $0x1c0] sm:$0xff] %vm582, %v545
      %640 = vst.msk [vmem:[%s197 + $0x1c8] sm:$0xff] %vm582, %v550
      %641 = vst.msk [vmem:[%s197 + $0x1d0] sm:$0xff] %vm582, %v555
      %642 = vst.msk [vmem:[%s197 + $0x1d8] sm:$0xff] %vm582, %v560
      %643 = vst.msk [vmem:[%s197 + $0x1e0] sm:$0xff] %vm582, %v565
      %644 = vst.msk [vmem:[%s197 + $0x1e8] sm:$0xff] %vm582, %v570
      %645 = vst.msk [vmem:[%s197 + $0x1f0] sm:$0xff] %vm582, %v575
      %646 = vst.msk [vmem:[%s197 + $0x1f8] sm:$0xff] %vm582, %v580
      %v647 = vld [vmem:[%s192] sm:$0xff]
      %v648 = vld [vmem:[%s192 + $0x8] sm:$0xff]
      %v649 = vld [vmem:[%s192 + $0x10] sm:$0xff]
      %v650 = vld [vmem:[%s192 + $0x18] sm:$0xff]
      %v651 = vld [vmem:[%s192 + $0x20] sm:$0xff]
      %v652 = vld [vmem:[%s192 + $0x28] sm:$0xff]
      %v653 = vld [vmem:[%s192 + $0x30] sm:$0xff]
      %v654 = vld [vmem:[%s192 + $0x38] sm:$0xff]
      %v655 = vld [vmem:[%s192 + $0x40] sm:$0xff]
      %v656 = vld [vmem:[%s192 + $0x48] sm:$0xff]
      %v657 = vld [vmem:[%s192 + $0x50] sm:$0xff]
      %v658 = vld [vmem:[%s192 + $0x58] sm:$0xff]
      %v659 = vld [vmem:[%s192 + $0x60] sm:$0xff]
      %v660 = vld [vmem:[%s192 + $0x68] sm:$0xff]
      %v661 = vld [vmem:[%s192 + $0x70] sm:$0xff]
      %v662 = vld [vmem:[%s192 + $0x78] sm:$0xff]
      %v663 = vld [vmem:[%s2] sm:$0xff]
      %v664 = vld [vmem:[%s2 + $0x8] sm:$0xff]
      %vm665 = vcmask 130048
      %v667 = vsel %vm665, %v647, 0
      %v670 = vsel %vm665, %v648, 0
      %v673 = vsel %vm665, %v649, 0
      %v676 = vsel %vm665, %v650, 0
      %v679 = vsel %vm665, %v651, 0
      %v682 = vsel %vm665, %v652, 0
      %v685 = vsel %vm665, %v653, 0
      %v688 = vsel %vm665, %v654, 0
      %v691 = vsel %vm665, %v655, 0
      %v694 = vsel %vm665, %v656, 0
      %v697 = vsel %vm665, %v657, 0
      %v700 = vsel %vm665, %v658, 0
      %v703 = vsel %vm665, %v659, 0
      %v706 = vsel %vm665, %v660, 0
      %v709 = vsel %vm665, %v661, 0
      %v712 = vsel %vm665, %v662, 0
      %714 = vmatprep.subr.mxu0 0.0
      %715 = vmatpush1.msra.mxu0 %v663
      %716 = vmatprep.subr.mxu0 0.0
      %717 = vmatpush1.msra.mxu0 %v664
      %718 = vmatprep.subr.mxu0 0.0
      %719 = vmatpush1.msra.mxu0 0.0
      %720 = vmatprep.subr.mxu0 0.0
      %721 = vmatpush1.msra.mxu0 0.0
      %722 = vmatprep.subr.mxu0 0.0
      %723 = vmatpush1.msra.mxu0 0.0
      %724 = vmatprep.subr.mxu0 0.0
      %725 = vmatpush1.msra.mxu0 0.0
      %726 = vmatprep.subr.mxu0 0.0
      %727 = vmatpush1.msra.mxu0 0.0
      %728 = vmatprep.subr.mxu0 0.0
      %729 = vmatpush1.msra.mxu0 0.0
      %730 = vmatprep.subr.mxu0 0.0
      %731 = vmatpush1.msra.mxu0 0.0
      %732 = vmatprep.subr.mxu0 0.0
      %733 = vmatpush1.msra.mxu0 0.0
      %734 = vmatprep.subr.mxu0 0.0
      %735 = vmatpush1.msra.mxu0 0.0
      %736 = vmatprep.subr.mxu0 0.0
      %737 = vmatpush1.msra.mxu0 0.0
      %738 = vmatprep.subr.mxu0 0.0
      %739 = vmatpush1.msra.mxu0 0.0
      %740 = vmatprep.subr.mxu0 0.0
      %741 = vmatpush1.msra.mxu0 0.0
      %742 = vmatprep.subr.mxu0 0.0
      %743 = vmatpush1.msra.mxu0 0.0
      %744 = vmatprep.subr.mxu0 0.0
      %745 = vmatpush1.msra.mxu0 0.0
      %746 = vmatprep.subr.mxu0 0.0
      %747 = vmatpush1.msra.mxu0 0.0
      %748 = vmatprep.subr.mxu0 0.0
      %749 = vmatpush1.msra.mxu0 0.0
      %750 = vmatprep.subr.mxu0 0.0
      %751 = vmatpush1.msra.mxu0 0.0
      %752 = vmatprep.subr.mxu0 0.0
      %753 = vmatpush1.msra.mxu0 0.0
      %754 = vmatprep.subr.mxu0 0.0
      %755 = vmatpush1.msra.mxu0 0.0
      %756 = vmatprep.subr.mxu0 0.0
      %757 = vmatpush1.msra.mxu0 0.0
      %758 = vmatprep.subr.mxu0 0.0
      %759 = vmatpush1.msra.mxu0 0.0
      %760 = vmatprep.subr.mxu0 0.0
      %761 = vmatpush1.msra.mxu0 0.0
      %762 = vmatprep.subr.mxu0 0.0
      %763 = vmatpush1.msra.mxu0 0.0
      %764 = vmatprep.subr.mxu0 0.0
      %765 = vmatpush1.msra.mxu0 0.0
      %766 = vmatprep.subr.mxu0 0.0
      %767 = vmatpush1.msra.mxu0 0.0
      %768 = vmatprep.subr.mxu0 0.0
      %769 = vmatpush1.msra.mxu0 0.0
      %770 = vmatprep.subr.mxu0 0.0
      %771 = vmatpush1.msra.mxu0 0.0
      %772 = vmatprep.subr.mxu0 0.0
      %773 = vmatpush1.msra.mxu0 0.0
      %774 = vmatprep.subr.mxu0 0.0
      %775 = vmatpush1.msra.mxu0 0.0
      %776 = vmatprep.subr.mxu0 0.0
      %777 = vmatpush1.msra.mxu0 0.0
      %778 = vmatprep.mubr.f32.mxu0 0.0
      %779 = vmatmul.mubr.f32.gmra.mrb[0].mxu0 %v667
      %v780 = vpop.f32.mrb[0].mxu0
      %v781 = vadd.f32 0.0, %v780
      %v782 = vpop.f32.mrb[0].mxu0
      %783 = vmatprep.mubr.f32.mxu0 0.0
      %784 = vmatmul.mubr.f32.gmra.mrb[0].mxu0 %v670
      %v785 = vpop.f32.mrb[0].mxu0
      %v786 = vadd.f32 0.0, %v785
      %v787 = vpop.f32.mrb[0].mxu0
      %788 = vmatprep.mubr.f32.mxu0 0.0
      %789 = vmatmul.mubr.f32.gmra.mrb[0].mxu0 %v673
      %v790 = vpop.f32.mrb[0].mxu0
      %v791 = vadd.f32 0.0, %v790
      %v792 = vpop.f32.mrb[0].mxu0
      %793 = vmatprep.mubr.f32.mxu0 0.0
      %794 = vmatmul.mubr.f32.gmra.mrb[0].mxu0 %v676
      %v795 = vpop.f32.mrb[0].mxu0
      %v796 = vadd.f32 0.0, %v795
      %v797 = vpop.f32.mrb[0].mxu0
      %798 = vmatprep.mubr.f32.mxu0 0.0
      %799 = vmatmul.mubr.f32.gmra.mrb[0].mxu0 %v679
      %v800 = vpop.f32.mrb[0].mxu0
      %v801 = vadd.f32 0.0, %v800
      %v802 = vpop.f32.mrb[0].mxu0
      %803 = vmatprep.mubr.f32.mxu0 0.0
      %804 = vmatmul.mubr.f32.gmra.mrb[0].mxu0 %v682
      %v805 = vpop.f32.mrb[0].mxu0
      %v806 = vadd.f32 0.0, %v805
      %v807 = vpop.f32.mrb[0].mxu0
      %808 = vmatprep.mubr.f32.mxu0 0.0
      %809 = vmatmul.mubr.f32.gmra.mrb[0].mxu0 %v685
      %v810 = vpop.f32.mrb[0].mxu0
      %v811 = vadd.f32 0.0, %v810
      %v812 = vpop.f32.mrb[0].mxu0
      %813 = vmatprep.mubr.f32.mxu0 0.0
      %814 = vmatmul.mubr.f32.gmra.mrb[0].mxu0 %v688
      %v815 = vpop.f32.mrb[0].mxu0
      %v816 = vadd.f32 0.0, %v815
      %v817 = vpop.f32.mrb[0].mxu0
      %818 = vmatprep.mubr.f32.mxu0 0.0
      %819 = vmatmul.mubr.f32.gmra.mrb[0].mxu0 %v691
      %v820 = vpop.f32.mrb[0].mxu0
      %v821 = vadd.f32 0.0, %v820
      %v822 = vpop.f32.mrb[0].mxu0
      %823 = vmatprep.mubr.f32.mxu0 0.0
      %824 = vmatmul.mubr.f32.gmra.mrb[0].mxu0 %v694
      %v825 = vpop.f32.mrb[0].mxu0
      %v826 = vadd.f32 0.0, %v825
      %v827 = vpop.f32.mrb[0].mxu0
      %828 = vmatprep.mubr.f32.mxu0 0.0
      %829 = vmatmul.mubr.f32.gmra.mrb[0].mxu0 %v697
      %v830 = vpop.f32.mrb[0].mxu0
      %v831 = vadd.f32 0.0, %v830
      %v832 = vpop.f32.mrb[0].mxu0
      %833 = vmatprep.mubr.f32.mxu0 0.0
      %834 = vmatmul.mubr.f32.gmra.mrb[0].mxu0 %v700
      %v835 = vpop.f32.mrb[0].mxu0
      %v836 = vadd.f32 0.0, %v835
      %v837 = vpop.f32.mrb[0].mxu0
      %838 = vmatprep.mubr.f32.mxu0 0.0
      %839 = vmatmul.mubr.f32.gmra.mrb[0].mxu0 %v703
      %v840 = vpop.f32.mrb[0].mxu0
      %v841 = vadd.f32 0.0, %v840
      %v842 = vpop.f32.mrb[0].mxu0
      %843 = vmatprep.mubr.f32.mxu0 0.0
      %844 = vmatmul.mubr.f32.gmra.mrb[0].mxu0 %v706
      %v845 = vpop.f32.mrb[0].mxu0
      %v846 = vadd.f32 0.0, %v845
      %v847 = vpop.f32.mrb[0].mxu0
      %848 = vmatprep.mubr.f32.mxu0 0.0
      %849 = vmatmul.mubr.f32.gmra.mrb[0].mxu0 %v709
      %v850 = vpop.f32.mrb[0].mxu0
      %v851 = vadd.f32 0.0, %v850
      %v852 = vpop.f32.mrb[0].mxu0
      %853 = vmatprep.mubr.f32.mxu0 0.0
      %854 = vmatmul.mubr.f32.gmra.mrb[0].mxu0 %v712
      %v855 = vpop.f32.mrb[0].mxu0
      %v856 = vadd.f32 0.0, %v855
      %v857 = vpop.f32.mrb[0].mxu0
      %858 = vdwg.mxu0
      %v859 = vld [vmem:[%s197] sm:$0xff]
      %v860 = vld [vmem:[%s197 + $0x8] sm:$0xff]
      %v861 = vld [vmem:[%s197 + $0x10] sm:$0xff]
      %v862 = vld [vmem:[%s197 + $0x18] sm:$0xff]
      %v863 = vld [vmem:[%s197 + $0x20] sm:$0xff]
      %v864 = vld [vmem:[%s197 + $0x28] sm:$0xff]
      %v865 = vld [vmem:[%s197 + $0x30] sm:$0xff]
      %v866 = vld [vmem:[%s197 + $0x38] sm:$0xff]
      %v867 = vld [vmem:[%s197 + $0x40] sm:$0xff]
      %v868 = vld [vmem:[%s197 + $0x48] sm:$0xff]
      %v869 = vld [vmem:[%s197 + $0x50] sm:$0xff]
      %v870 = vld [vmem:[%s197 + $0x58] sm:$0xff]
      %v871 = vld [vmem:[%s197 + $0x60] sm:$0xff]
      %v872 = vld [vmem:[%s197 + $0x68] sm:$0xff]
      %v873 = vld [vmem:[%s197 + $0x70] sm:$0xff]
      %v874 = vld [vmem:[%s197 + $0x78] sm:$0xff]
      %v875 = vld [vmem:[%s197 + $0x80] sm:$0xff]
      %v876 = vld [vmem:[%s197 + $0x88] sm:$0xff]
      %v877 = vld [vmem:[%s197 + $0x90] sm:$0xff]
      %v878 = vld [vmem:[%s197 + $0x98] sm:$0xff]
      %v879 = vld [vmem:[%s197 + $0xa0] sm:$0xff]
      %v880 = vld [vmem:[%s197 + $0xa8] sm:$0xff]
      %v881 = vld [vmem:[%s197 + $0xb0] sm:$0xff]
      %v882 = vld [vmem:[%s197 + $0xb8] sm:$0xff]
      %v883 = vld [vmem:[%s197 + $0xc0] sm:$0xff]
      %v884 = vld [vmem:[%s197 + $0xc8] sm:$0xff]
      %v885 = vld [vmem:[%s197 + $0xd0] sm:$0xff]
      %v886 = vld [vmem:[%s197 + $0xd8] sm:$0xff]
      %v887 = vld [vmem:[%s197 + $0xe0] sm:$0xff]
      %v888 = vld [vmem:[%s197 + $0xe8] sm:$0xff]
      %v889 = vld [vmem:[%s197 + $0xf0] sm:$0xff]
      %v890 = vld [vmem:[%s197 + $0xf8] sm:$0xff]
      %v891 = vld [vmem:[%s197 + $0x100] sm:$0xff]
      %v892 = vld [vmem:[%s197 + $0x108] sm:$0xff]
      %v893 = vld [vmem:[%s197 + $0x110] sm:$0xff]
      %v894 = vld [vmem:[%s197 + $0x118] sm:$0xff]
      %v895 = vld [vmem:[%s197 + $0x120] sm:$0xff]
      %v896 = vld [vmem:[%s197 + $0x128] sm:$0xff]
      %v897 = vld [vmem:[%s197 + $0x130] sm:$0xff]
      %v898 = vld [vmem:[%s197 + $0x138] sm:$0xff]
      %v899 = vld [vmem:[%s197 + $0x140] sm:$0xff]
      %v900 = vld [vmem:[%s197 + $0x148] sm:$0xff]
      %v901 = vld [vmem:[%s197 + $0x150] sm:$0xff]
      %v902 = vld [vmem:[%s197 + $0x158] sm:$0xff]
      %v903 = vld [vmem:[%s197 + $0x160] sm:$0xff]
      %v904 = vld [vmem:[%s197 + $0x168] sm:$0xff]
      %v905 = vld [vmem:[%s197 + $0x170] sm:$0xff]
      %v906 = vld [vmem:[%s197 + $0x178] sm:$0xff]
      %v907 = vld [vmem:[%s197 + $0x180] sm:$0xff]
      %v908 = vld [vmem:[%s197 + $0x188] sm:$0xff]
      %v909 = vld [vmem:[%s197 + $0x190] sm:$0xff]
      %v910 = vld [vmem:[%s197 + $0x198] sm:$0xff]
      %v911 = vld [vmem:[%s197 + $0x1a0] sm:$0xff]
      %v912 = vld [vmem:[%s197 + $0x1a8] sm:$0xff]
      %v913 = vld [vmem:[%s197 + $0x1b0] sm:$0xff]
      %v914 = vld [vmem:[%s197 + $0x1b8] sm:$0xff]
      %v915 = vld [vmem:[%s197 + $0x1c0] sm:$0xff]
      %v916 = vld [vmem:[%s197 + $0x1c8] sm:$0xff]
      %v917 = vld [vmem:[%s197 + $0x1d0] sm:$0xff]
      %v918 = vld [vmem:[%s197 + $0x1d8] sm:$0xff]
      %v919 = vld [vmem:[%s197 + $0x1e0] sm:$0xff]
      %v920 = vld [vmem:[%s197 + $0x1e8] sm:$0xff]
      %v921 = vld [vmem:[%s197 + $0x1f0] sm:$0xff]
      %v922 = vld [vmem:[%s197 + $0x1f8] sm:$0xff]
      %v923 = vld [vmem:[%s1] sm:$0xff]
      %v924 = vld [vmem:[%s1 + $0x8] sm:$0xff]
      %v925 = vld [vmem:[%s1 + $0x10] sm:$0xff]
      %v926 = vld [vmem:[%s1 + $0x18] sm:$0xff]
      %v927 = vld [vmem:[%s1 + $0x20] sm:$0xff]
      %v928 = vld [vmem:[%s1 + $0x28] sm:$0xff]
      %v929 = vld [vmem:[%s1 + $0x30] sm:$0xff]
      %v930 = vld [vmem:[%s1 + $0x38] sm:$0xff]
      %v931 = vld [vmem:[%s1 + $0x40] sm:$0xff]
      %v932 = vld [vmem:[%s1 + $0x48] sm:$0xff]
      %v933 = vld [vmem:[%s1 + $0x50] sm:$0xff]
      %v934 = vld [vmem:[%s1 + $0x58] sm:$0xff]
      %v935 = vld [vmem:[%s1 + $0x60] sm:$0xff]
      %v936 = vld [vmem:[%s1 + $0x68] sm:$0xff]
      %v937 = vld [vmem:[%s1 + $0x70] sm:$0xff]
      %v938 = vld [vmem:[%s1 + $0x78] sm:$0xff]
      %v939 = vld [vmem:[%s1 + $0x80] sm:$0xff]
      %v940 = vld [vmem:[%s1 + $0x88] sm:$0xff]
      %v941 = vld [vmem:[%s1 + $0x90] sm:$0xff]
      %v942 = vld [vmem:[%s1 + $0x98] sm:$0xff]
      %v943 = vld [vmem:[%s1 + $0xa0] sm:$0xff]
      %v944 = vld [vmem:[%s1 + $0xa8] sm:$0xff]
      %v945 = vld [vmem:[%s1 + $0xb0] sm:$0xff]
      %v946 = vld [vmem:[%s1 + $0xb8] sm:$0xff]
      %v947 = vld [vmem:[%s1 + $0xc0] sm:$0xff]
      %v948 = vld [vmem:[%s1 + $0xc8] sm:$0xff]
      %v949 = vld [vmem:[%s1 + $0xd0] sm:$0xff]
      %v950 = vld [vmem:[%s1 + $0xd8] sm:$0xff]
      %v951 = vld [vmem:[%s1 + $0xe0] sm:$0xff]
      %v952 = vld [vmem:[%s1 + $0xe8] sm:$0xff]
      %v953 = vld [vmem:[%s1 + $0xf0] sm:$0xff]
      %v954 = vld [vmem:[%s1 + $0xf8] sm:$0xff]
      %v955 = vld [vmem:[%s1 + $0x100] sm:$0xff]
      %v956 = vld [vmem:[%s1 + $0x108] sm:$0xff]
      %v957 = vld [vmem:[%s1 + $0x110] sm:$0xff]
      %v958 = vld [vmem:[%s1 + $0x118] sm:$0xff]
      %v959 = vld [vmem:[%s1 + $0x120] sm:$0xff]
      %v960 = vld [vmem:[%s1 + $0x128] sm:$0xff]
      %v961 = vld [vmem:[%s1 + $0x130] sm:$0xff]
      %v962 = vld [vmem:[%s1 + $0x138] sm:$0xff]
      %v963 = vld [vmem:[%s1 + $0x140] sm:$0xff]
      %v964 = vld [vmem:[%s1 + $0x148] sm:$0xff]
      %v965 = vld [vmem:[%s1 + $0x150] sm:$0xff]
      %v966 = vld [vmem:[%s1 + $0x158] sm:$0xff]
      %v967 = vld [vmem:[%s1 + $0x160] sm:$0xff]
      %v968 = vld [vmem:[%s1 + $0x168] sm:$0xff]
      %v969 = vld [vmem:[%s1 + $0x170] sm:$0xff]
      %v970 = vld [vmem:[%s1 + $0x178] sm:$0xff]
      %v971 = vld [vmem:[%s1 + $0x180] sm:$0xff]
      %v972 = vld [vmem:[%s1 + $0x188] sm:$0xff]
      %v973 = vld [vmem:[%s1 + $0x190] sm:$0xff]
      %v974 = vld [vmem:[%s1 + $0x198] sm:$0xff]
      %v975 = vld [vmem:[%s1 + $0x1a0] sm:$0xff]
      %v976 = vld [vmem:[%s1 + $0x1a8] sm:$0xff]
      %v977 = vld [vmem:[%s1 + $0x1b0] sm:$0xff]
      %v978 = vld [vmem:[%s1 + $0x1b8] sm:$0xff]
      %v979 = vld [vmem:[%s1 + $0x1c0] sm:$0xff]
      %v980 = vld [vmem:[%s1 + $0x1c8] sm:$0xff]
      %v981 = vld [vmem:[%s1 + $0x1d0] sm:$0xff]
      %v982 = vld [vmem:[%s1 + $0x1d8] sm:$0xff]
      %v983 = vld [vmem:[%s1 + $0x1e0] sm:$0xff]
      %v984 = vld [vmem:[%s1 + $0x1e8] sm:$0xff]
      %v985 = vld [vmem:[%s1 + $0x1f0] sm:$0xff]
      %v986 = vld [vmem:[%s1 + $0x1f8] sm:$0xff]
      %987 = vmatprep.subr.mxu0 0.0
      %988 = vmatpush1.msra.mxu0 %v781
      %989 = vmatprep.subr.mxu0 0.0
      %990 = vmatpush1.msra.mxu0 %v786
      %991 = vmatprep.subr.mxu0 0.0
      %992 = vmatpush1.msra.mxu0 %v791
      %993 = vmatprep.subr.mxu0 0.0
      %994 = vmatpush1.msra.mxu0 %v796
      %995 = vmatprep.subr.mxu0 0.0
      %996 = vmatpush1.msra.mxu0 %v801
      %997 = vmatprep.subr.mxu0 0.0
      %998 = vmatpush1.msra.mxu0 %v806
      %999 = vmatprep.subr.mxu0 0.0
      %1000 = vmatpush1.msra.mxu0 %v811
      %1001 = vmatprep.subr.mxu0 0.0
      %1002 = vmatpush1.msra.mxu0 %v816
      %1003 = vmatprep.subr.mxu0 0.0
      %1004 = vmatpush1.msra.mxu0 %v821
      %1005 = vmatprep.subr.mxu0 0.0
      %1006 = vmatpush1.msra.mxu0 %v826
      %1007 = vmatprep.subr.mxu0 0.0
      %1008 = vmatpush1.msra.mxu0 %v831
      %1009 = vmatprep.subr.mxu0 0.0
      %1010 = vmatpush1.msra.mxu0 %v836
      %1011 = vmatprep.subr.mxu0 0.0
      %1012 = vmatpush1.msra.mxu0 %v841
      %1013 = vmatprep.subr.mxu0 0.0
      %1014 = vmatpush1.msra.mxu0 %v846
      %1015 = vmatprep.subr.mxu0 0.0
      %1016 = vmatpush1.msra.mxu0 %v851
      %1017 = vmatprep.subr.mxu0 0.0
      %1018 = vmatpush1.msra.mxu0 %v856
      %1019 = vmatprep.subr.mxu0 0.0
      %1020 = vmatpush1.msra.mxu0 0.0
      %1021 = vmatprep.subr.mxu0 0.0
      %1022 = vmatpush1.msra.mxu0 0.0
      %1023 = vmatprep.subr.mxu0 0.0
      %1024 = vmatpush1.msra.mxu0 0.0
      %1025 = vmatprep.subr.mxu0 0.0
      %1026 = vmatpush1.msra.mxu0 0.0
      %1027 = vmatprep.subr.mxu0 0.0
      %1028 = vmatpush1.msra.mxu0 0.0
      %1029 = vmatprep.subr.mxu0 0.0
      %1030 = vmatpush1.msra.mxu0 0.0
      %1031 = vmatprep.subr.mxu0 0.0
      %1032 = vmatpush1.msra.mxu0 0.0
      %1033 = vmatprep.subr.mxu0 0.0
      %1034 = vmatpush1.msra.mxu0 0.0
      %1035 = vmatprep.subr.mxu0 0.0
      %1036 = vmatpush1.msra.mxu0 0.0
      %1037 = vmatprep.subr.mxu0 0.0
      %1038 = vmatpush1.msra.mxu0 0.0
      %1039 = vmatprep.subr.mxu0 0.0
      %1040 = vmatpush1.msra.mxu0 0.0
      %1041 = vmatprep.subr.mxu0 0.0
      %1042 = vmatpush1.msra.mxu0 0.0
      %1043 = vmatprep.subr.mxu0 0.0
      %1044 = vmatpush1.msra.mxu0 0.0
      %1045 = vmatprep.subr.mxu0 0.0
      %1046 = vmatpush1.msra.mxu0 0.0
      %1047 = vmatprep.subr.mxu0 0.0
      %1048 = vmatpush1.msra.mxu0 0.0
      %1049 = vmatprep.subr.mxu0 0.0
      %1050 = vmatpush1.msra.mxu0 0.0
      %1051 = vmatprep.mubr.f32.mxu0 0.0
      %1052 = vmatmul.mubr.f32.gmra.mrb[0].mxu0 %v923
      %v1053 = vpop.f32.mrb[0].mxu0
      %v1054 = vadd.f32 0.0, %v1053
      %v1055 = vpop.f32.mrb[0].mxu0
      %1056 = vmatprep.mubr.f32.mxu0 0.0
      %1057 = vmatmul.mubr.f32.gmra.mrb[0].mxu0 %v924
      %v1058 = vpop.f32.mrb[0].mxu0
      %v1059 = vadd.f32 0.0, %v1058
      %v1060 = vpop.f32.mrb[0].mxu0
      %1061 = vmatprep.mubr.f32.mxu0 0.0
      %1062 = vmatmul.mubr.f32.gmra.mrb[0].mxu0 %v925
      %v1063 = vpop.f32.mrb[0].mxu0
      %v1064 = vadd.f32 0.0, %v1063
      %v1065 = vpop.f32.mrb[0].mxu0
      %1066 = vmatprep.mubr.f32.mxu0 0.0
      %1067 = vmatmul.mubr.f32.gmra.mrb[0].mxu0 %v926
      %v1068 = vpop.f32.mrb[0].mxu0
      %v1069 = vadd.f32 0.0, %v1068
      %v1070 = vpop.f32.mrb[0].mxu0
      %1071 = vmatprep.mubr.f32.mxu0 0.0
      %1072 = vmatmul.mubr.f32.gmra.mrb[0].mxu0 %v927
      %v1073 = vpop.f32.mrb[0].mxu0
      %v1074 = vadd.f32 0.0, %v1073
      %v1075 = vpop.f32.mrb[0].mxu0
      %1076 = vmatprep.mubr.f32.mxu0 0.0
      %1077 = vmatmul.mubr.f32.gmra.mrb[0].mxu0 %v928
      %v1078 = vpop.f32.mrb[0].mxu0
      %v1079 = vadd.f32 0.0, %v1078
      %v1080 = vpop.f32.mrb[0].mxu0
      %1081 = vmatprep.mubr.f32.mxu0 0.0
      %1082 = vmatmul.mubr.f32.gmra.mrb[0].mxu0 %v929
      %v1083 = vpop.f32.mrb[0].mxu0
      %v1084 = vadd.f32 0.0, %v1083
      %v1085 = vpop.f32.mrb[0].mxu0
      %1086 = vmatprep.mubr.f32.mxu0 0.0
      %1087 = vmatmul.mubr.f32.gmra.mrb[0].mxu0 %v930
      %v1088 = vpop.f32.mrb[0].mxu0
      %v1089 = vadd.f32 0.0, %v1088
      %v1090 = vpop.f32.mrb[0].mxu0
      %1091 = vmatprep.mubr.f32.mxu0 0.0
      %1092 = vmatmul.mubr.f32.gmra.mrb[0].mxu0 %v931
      %v1093 = vpop.f32.mrb[0].mxu0
      %v1094 = vadd.f32 0.0, %v1093
      %v1095 = vpop.f32.mrb[0].mxu0
      %1096 = vmatprep.mubr.f32.mxu0 0.0
      %1097 = vmatmul.mubr.f32.gmra.mrb[0].mxu0 %v932
      %v1098 = vpop.f32.mrb[0].mxu0
      %v1099 = vadd.f32 0.0, %v1098
      %v1100 = vpop.f32.mrb[0].mxu0
      %1101 = vmatprep.mubr.f32.mxu0 0.0
      %1102 = vmatmul.mubr.f32.gmra.mrb[0].mxu0 %v933
      %v1103 = vpop.f32.mrb[0].mxu0
      %v1104 = vadd.f32 0.0, %v1103
      %v1105 = vpop.f32.mrb[0].mxu0
      %1106 = vmatprep.mubr.f32.mxu0 0.0
      %1107 = vmatmul.mubr.f32.gmra.mrb[0].mxu0 %v934
      %v1108 = vpop.f32.mrb[0].mxu0
      %v1109 = vadd.f32 0.0, %v1108
      %v1110 = vpop.f32.mrb[0].mxu0
      %1111 = vmatprep.mubr.f32.mxu0 0.0
      %1112 = vmatmul.mubr.f32.gmra.mrb[0].mxu0 %v935
      %v1113 = vpop.f32.mrb[0].mxu0
      %v1114 = vadd.f32 0.0, %v1113
      %v1115 = vpop.f32.mrb[0].mxu0
      %1116 = vmatprep.mubr.f32.mxu0 0.0
      %1117 = vmatmul.mubr.f32.gmra.mrb[0].mxu0 %v936
      %v1118 = vpop.f32.mrb[0].mxu0
      %v1119 = vadd.f32 0.0, %v1118
      %v1120 = vpop.f32.mrb[0].mxu0
      %1121 = vmatprep.mubr.f32.mxu0 0.0
      %1122 = vmatmul.mubr.f32.gmra.mrb[0].mxu0 %v937
      %v1123 = vpop.f32.mrb[0].mxu0
      %v1124 = vadd.f32 0.0, %v1123
      %v1125 = vpop.f32.mrb[0].mxu0
      %1126 = vmatprep.mubr.f32.mxu0 0.0
      %1127 = vmatmul.mubr.f32.gmra.mrb[0].mxu0 %v938
      %v1128 = vpop.f32.mrb[0].mxu0
      %v1129 = vadd.f32 0.0, %v1128
      %v1130 = vpop.f32.mrb[0].mxu0
      %1131 = vmatprep.mubr.f32.mxu0 0.0
      %1132 = vmatmul.mubr.f32.gmra.mrb[0].mxu0 %v939
      %v1133 = vpop.f32.mrb[0].mxu0
      %v1134 = vadd.f32 0.0, %v1133
      %v1135 = vpop.f32.mrb[0].mxu0
      %1136 = vmatprep.mubr.f32.mxu0 0.0
      %1137 = vmatmul.mubr.f32.gmra.mrb[0].mxu0 %v940
      %v1138 = vpop.f32.mrb[0].mxu0
      %v1139 = vadd.f32 0.0, %v1138
      %v1140 = vpop.f32.mrb[0].mxu0
      %1141 = vmatprep.mubr.f32.mxu0 0.0
      %1142 = vmatmul.mubr.f32.gmra.mrb[0].mxu0 %v941
      %v1143 = vpop.f32.mrb[0].mxu0
      %v1144 = vadd.f32 0.0, %v1143
      %v1145 = vpop.f32.mrb[0].mxu0
      %1146 = vmatprep.mubr.f32.mxu0 0.0
      %1147 = vmatmul.mubr.f32.gmra.mrb[0].mxu0 %v942
      %v1148 = vpop.f32.mrb[0].mxu0
      %v1149 = vadd.f32 0.0, %v1148
      %v1150 = vpop.f32.mrb[0].mxu0
      %1151 = vmatprep.mubr.f32.mxu0 0.0
      %1152 = vmatmul.mubr.f32.gmra.mrb[0].mxu0 %v943
      %v1153 = vpop.f32.mrb[0].mxu0
      %v1154 = vadd.f32 0.0, %v1153
      %v1155 = vpop.f32.mrb[0].mxu0
      %1156 = vmatprep.mubr.f32.mxu0 0.0
      %1157 = vmatmul.mubr.f32.gmra.mrb[0].mxu0 %v944
      %v1158 = vpop.f32.mrb[0].mxu0
      %v1159 = vadd.f32 0.0, %v1158
      %v1160 = vpop.f32.mrb[0].mxu0
      %1161 = vmatprep.mubr.f32.mxu0 0.0
      %1162 = vmatmul.mubr.f32.gmra.mrb[0].mxu0 %v945
      %v1163 = vpop.f32.mrb[0].mxu0
      %v1164 = vadd.f32 0.0, %v1163
      %v1165 = vpop.f32.mrb[0].mxu0
      %1166 = vmatprep.mubr.f32.mxu0 0.0
      %1167 = vmatmul.mubr.f32.gmra.mrb[0].mxu0 %v946
      %v1168 = vpop.f32.mrb[0].mxu0
      %v1169 = vadd.f32 0.0, %v1168
      %v1170 = vpop.f32.mrb[0].mxu0
      %1171 = vmatprep.mubr.f32.mxu0 0.0
      %1172 = vmatmul.mubr.f32.gmra.mrb[0].mxu0 %v947
      %v1173 = vpop.f32.mrb[0].mxu0
      %v1174 = vadd.f32 0.0, %v1173
      %v1175 = vpop.f32.mrb[0].mxu0
      %1176 = vmatprep.mubr.f32.mxu0 0.0
      %1177 = vmatmul.mubr.f32.gmra.mrb[0].mxu0 %v948
      %v1178 = vpop.f32.mrb[0].mxu0
      %v1179 = vadd.f32 0.0, %v1178
      %v1180 = vpop.f32.mrb[0].mxu0
      %1181 = vmatprep.mubr.f32.mxu0 0.0
      %1182 = vmatmul.mubr.f32.gmra.mrb[0].mxu0 %v949
      %v1183 = vpop.f32.mrb[0].mxu0
      %v1184 = vadd.f32 0.0, %v1183
      %v1185 = vpop.f32.mrb[0].mxu0
      %1186 = vmatprep.mubr.f32.mxu0 0.0
      %1187 = vmatmul.mubr.f32.gmra.mrb[0].mxu0 %v950
      %v1188 = vpop.f32.mrb[0].mxu0
      %v1189 = vadd.f32 0.0, %v1188
      %v1190 = vpop.f32.mrb[0].mxu0
      %1191 = vmatprep.mubr.f32.mxu0 0.0
      %1192 = vmatmul.mubr.f32.gmra.mrb[0].mxu0 %v951
      %v1193 = vpop.f32.mrb[0].mxu0
      %v1194 = vadd.f32 0.0, %v1193
      %v1195 = vpop.f32.mrb[0].mxu0
      %1196 = vmatprep.mubr.f32.mxu0 0.0
      %1197 = vmatmul.mubr.f32.gmra.mrb[0].mxu0 %v952
      %v1198 = vpop.f32.mrb[0].mxu0
      %v1199 = vadd.f32 0.0, %v1198
      %v1200 = vpop.f32.mrb[0].mxu0
      %1201 = vmatprep.mubr.f32.mxu0 0.0
      %1202 = vmatmul.mubr.f32.gmra.mrb[0].mxu0 %v953
      %v1203 = vpop.f32.mrb[0].mxu0
      %v1204 = vadd.f32 0.0, %v1203
      %v1205 = vpop.f32.mrb[0].mxu0
      %1206 = vmatprep.mubr.f32.mxu0 0.0
      %1207 = vmatmul.mubr.f32.gmra.mrb[0].mxu0 %v954
      %v1208 = vpop.f32.mrb[0].mxu0
      %v1209 = vadd.f32 0.0, %v1208
      %v1210 = vpop.f32.mrb[0].mxu0
      %1211 = vmatprep.mubr.f32.mxu0 0.0
      %1212 = vmatmul.mubr.f32.gmra.mrb[0].mxu0 %v955
      %v1213 = vpop.f32.mrb[0].mxu0
      %v1214 = vadd.f32 0.0, %v1213
      %v1215 = vpop.f32.mrb[0].mxu0
      %1216 = vmatprep.mubr.f32.mxu0 0.0
      %1217 = vmatmul.mubr.f32.gmra.mrb[0].mxu0 %v956
      %v1218 = vpop.f32.mrb[0].mxu0
      %v1219 = vadd.f32 0.0, %v1218
      %v1220 = vpop.f32.mrb[0].mxu0
      %1221 = vmatprep.mubr.f32.mxu0 0.0
      %1222 = vmatmul.mubr.f32.gmra.mrb[0].mxu0 %v957
      %v1223 = vpop.f32.mrb[0].mxu0
      %v1224 = vadd.f32 0.0, %v1223
      %v1225 = vpop.f32.mrb[0].mxu0
      %1226 = vmatprep.mubr.f32.mxu0 0.0
      %1227 = vmatmul.mubr.f32.gmra.mrb[0].mxu0 %v958
      %v1228 = vpop.f32.mrb[0].mxu0
      %v1229 = vadd.f32 0.0, %v1228
      %v1230 = vpop.f32.mrb[0].mxu0
      %1231 = vmatprep.mubr.f32.mxu0 0.0
      %1232 = vmatmul.mubr.f32.gmra.mrb[0].mxu0 %v959
      %v1233 = vpop.f32.mrb[0].mxu0
      %v1234 = vadd.f32 0.0, %v1233
      %v1235 = vpop.f32.mrb[0].mxu0
      %1236 = vmatprep.mubr.f32.mxu0 0.0
      %1237 = vmatmul.mubr.f32.gmra.mrb[0].mxu0 %v960
      %v1238 = vpop.f32.mrb[0].mxu0
      %v1239 = vadd.f32 0.0, %v1238
      %v1240 = vpop.f32.mrb[0].mxu0
      %1241 = vmatprep.mubr.f32.mxu0 0.0
      %1242 = vmatmul.mubr.f32.gmra.mrb[0].mxu0 %v961
      %v1243 = vpop.f32.mrb[0].mxu0
      %v1244 = vadd.f32 0.0, %v1243
      %v1245 = vpop.f32.mrb[0].mxu0
      %1246 = vmatprep.mubr.f32.mxu0 0.0
      %1247 = vmatmul.mubr.f32.gmra.mrb[0].mxu0 %v962
      %v1248 = vpop.f32.mrb[0].mxu0
      %v1249 = vadd.f32 0.0, %v1248
      %v1250 = vpop.f32.mrb[0].mxu0
      %1251 = vmatprep.mubr.f32.mxu0 0.0
      %1252 = vmatmul.mubr.f32.gmra.mrb[0].mxu0 %v963
      %v1253 = vpop.f32.mrb[0].mxu0
      %v1254 = vadd.f32 0.0, %v1253
      %v1255 = vpop.f32.mrb[0].mxu0
      %1256 = vmatprep.mubr.f32.mxu0 0.0
      %1257 = vmatmul.mubr.f32.gmra.mrb[0].mxu0 %v964
      %v1258 = vpop.f32.mrb[0].mxu0
      %v1259 = vadd.f32 0.0, %v1258
      %v1260 = vpop.f32.mrb[0].mxu0
      %1261 = vmatprep.mubr.f32.mxu0 0.0
      %1262 = vmatmul.mubr.f32.gmra.mrb[0].mxu0 %v965
      %v1263 = vpop.f32.mrb[0].mxu0
      %v1264 = vadd.f32 0.0, %v1263
      %v1265 = vpop.f32.mrb[0].mxu0
      %1266 = vmatprep.mubr.f32.mxu0 0.0
      %1267 = vmatmul.mubr.f32.gmra.mrb[0].mxu0 %v966
      %v1268 = vpop.f32.mrb[0].mxu0
      %v1269 = vadd.f32 0.0, %v1268
      %v1270 = vpop.f32.mrb[0].mxu0
      %1271 = vmatprep.mubr.f32.mxu0 0.0
      %1272 = vmatmul.mubr.f32.gmra.mrb[0].mxu0 %v967
      %v1273 = vpop.f32.mrb[0].mxu0
      %v1274 = vadd.f32 0.0, %v1273
      %v1275 = vpop.f32.mrb[0].mxu0
      %1276 = vmatprep.mubr.f32.mxu0 0.0
      %1277 = vmatmul.mubr.f32.gmra.mrb[0].mxu0 %v968
      %v1278 = vpop.f32.mrb[0].mxu0
      %v1279 = vadd.f32 0.0, %v1278
      %v1280 = vpop.f32.mrb[0].mxu0
      %1281 = vmatprep.mubr.f32.mxu0 0.0
      %1282 = vmatmul.mubr.f32.gmra.mrb[0].mxu0 %v969
      %v1283 = vpop.f32.mrb[0].mxu0
      %v1284 = vadd.f32 0.0, %v1283
      %v1285 = vpop.f32.mrb[0].mxu0
      %1286 = vmatprep.mubr.f32.mxu0 0.0
      %1287 = vmatmul.mubr.f32.gmra.mrb[0].mxu0 %v970
      %v1288 = vpop.f32.mrb[0].mxu0
      %v1289 = vadd.f32 0.0, %v1288
      %v1290 = vpop.f32.mrb[0].mxu0
      %1291 = vmatprep.mubr.f32.mxu0 0.0
      %1292 = vmatmul.mubr.f32.gmra.mrb[0].mxu0 %v971
      %v1293 = vpop.f32.mrb[0].mxu0
      %v1294 = vadd.f32 0.0, %v1293
      %v1295 = vpop.f32.mrb[0].mxu0
      %1296 = vmatprep.mubr.f32.mxu0 0.0
      %1297 = vmatmul.mubr.f32.gmra.mrb[0].mxu0 %v972
      %v1298 = vpop.f32.mrb[0].mxu0
      %v1299 = vadd.f32 0.0, %v1298
      %v1300 = vpop.f32.mrb[0].mxu0
      %1301 = vmatprep.mubr.f32.mxu0 0.0
      %1302 = vmatmul.mubr.f32.gmra.mrb[0].mxu0 %v973
      %v1303 = vpop.f32.mrb[0].mxu0
      %v1304 = vadd.f32 0.0, %v1303
      %v1305 = vpop.f32.mrb[0].mxu0
      %1306 = vmatprep.mubr.f32.mxu0 0.0
      %1307 = vmatmul.mubr.f32.gmra.mrb[0].mxu0 %v974
      %v1308 = vpop.f32.mrb[0].mxu0
      %v1309 = vadd.f32 0.0, %v1308
      %v1310 = vpop.f32.mrb[0].mxu0
      %1311 = vmatprep.mubr.f32.mxu0 0.0
      %1312 = vmatmul.mubr.f32.gmra.mrb[0].mxu0 %v975
      %v1313 = vpop.f32.mrb[0].mxu0
      %v1314 = vadd.f32 0.0, %v1313
      %v1315 = vpop.f32.mrb[0].mxu0
      %1316 = vmatprep.mubr.f32.mxu0 0.0
      %1317 = vmatmul.mubr.f32.gmra.mrb[0].mxu0 %v976
      %v1318 = vpop.f32.mrb[0].mxu0
      %v1319 = vadd.f32 0.0, %v1318
      %v1320 = vpop.f32.mrb[0].mxu0
      %1321 = vmatprep.mubr.f32.mxu0 0.0
      %1322 = vmatmul.mubr.f32.gmra.mrb[0].mxu0 %v977
      %v1323 = vpop.f32.mrb[0].mxu0
      %v1324 = vadd.f32 0.0, %v1323
      %v1325 = vpop.f32.mrb[0].mxu0
      %1326 = vmatprep.mubr.f32.mxu0 0.0
      %1327 = vmatmul.mubr.f32.gmra.mrb[0].mxu0 %v978
      %v1328 = vpop.f32.mrb[0].mxu0
      %v1329 = vadd.f32 0.0, %v1328
      %v1330 = vpop.f32.mrb[0].mxu0
      %1331 = vmatprep.mubr.f32.mxu0 0.0
      %1332 = vmatmul.mubr.f32.gmra.mrb[0].mxu0 %v979
      %v1333 = vpop.f32.mrb[0].mxu0
      %v1334 = vadd.f32 0.0, %v1333
      %v1335 = vpop.f32.mrb[0].mxu0
      %1336 = vmatprep.mubr.f32.mxu0 0.0
      %1337 = vmatmul.mubr.f32.gmra.mrb[0].mxu0 %v980
      %v1338 = vpop.f32.mrb[0].mxu0
      %v1339 = vadd.f32 0.0, %v1338
      %v1340 = vpop.f32.mrb[0].mxu0
      %1341 = vmatprep.mubr.f32.mxu0 0.0
      %1342 = vmatmul.mubr.f32.gmra.mrb[0].mxu0 %v981
      %v1343 = vpop.f32.mrb[0].mxu0
      %v1344 = vadd.f32 0.0, %v1343
      %v1345 = vpop.f32.mrb[0].mxu0
      %1346 = vmatprep.mubr.f32.mxu0 0.0
      %1347 = vmatmul.mubr.f32.gmra.mrb[0].mxu0 %v982
      %v1348 = vpop.f32.mrb[0].mxu0
      %v1349 = vadd.f32 0.0, %v1348
      %v1350 = vpop.f32.mrb[0].mxu0
      %1351 = vmatprep.mubr.f32.mxu0 0.0
      %1352 = vmatmul.mubr.f32.gmra.mrb[0].mxu0 %v983
      %v1353 = vpop.f32.mrb[0].mxu0
      %v1354 = vadd.f32 0.0, %v1353
      %v1355 = vpop.f32.mrb[0].mxu0
      %1356 = vmatprep.mubr.f32.mxu0 0.0
      %1357 = vmatmul.mubr.f32.gmra.mrb[0].mxu0 %v984
      %v1358 = vpop.f32.mrb[0].mxu0
      %v1359 = vadd.f32 0.0, %v1358
      %v1360 = vpop.f32.mrb[0].mxu0
      %1361 = vmatprep.mubr.f32.mxu0 0.0
      %1362 = vmatmul.mubr.f32.gmra.mrb[0].mxu0 %v985
      %v1363 = vpop.f32.mrb[0].mxu0
      %v1364 = vadd.f32 0.0, %v1363
      %v1365 = vpop.f32.mrb[0].mxu0
      %1366 = vmatprep.mubr.f32.mxu0 0.0
      %1367 = vmatmul.mubr.f32.gmra.mrb[0].mxu0 %v986
      %v1368 = vpop.f32.mrb[0].mxu0
      %v1369 = vadd.f32 0.0, %v1368
      %v1370 = vpop.f32.mrb[0].mxu0
      %1371 = vdwg.mxu0
      %v1372 = vadd.f32 %v859, %v1054
      %v1373 = vadd.f32 %v860, %v1059
      %v1374 = vadd.f32 %v861, %v1064
      %v1375 = vadd.f32 %v862, %v1069
      %v1376 = vadd.f32 %v863, %v1074
      %v1377 = vadd.f32 %v864, %v1079
      %v1378 = vadd.f32 %v865, %v1084
      %v1379 = vadd.f32 %v866, %v1089
      %v1380 = vadd.f32 %v867, %v1094
      %v1381 = vadd.f32 %v868, %v1099
      %v1382 = vadd.f32 %v869, %v1104
      %v1383 = vadd.f32 %v870, %v1109
      %v1384 = vadd.f32 %v871, %v1114
      %v1385 = vadd.f32 %v872, %v1119
      %v1386 = vadd.f32 %v873, %v1124
      %v1387 = vadd.f32 %v874, %v1129
      %v1388 = vadd.f32 %v875, %v1134
      %v1389 = vadd.f32 %v876, %v1139
      %v1390 = vadd.f32 %v877, %v1144
      %v1391 = vadd.f32 %v878, %v1149
      %v1392 = vadd.f32 %v879, %v1154
      %v1393 = vadd.f32 %v880, %v1159
      %v1394 = vadd.f32 %v881, %v1164
      %v1395 = vadd.f32 %v882, %v1169
      %v1396 = vadd.f32 %v883, %v1174
      %v1397 = vadd.f32 %v884, %v1179
      %v1398 = vadd.f32 %v885, %v1184
      %v1399 = vadd.f32 %v886, %v1189
      %v1400 = vadd.f32 %v887, %v1194
      %v1401 = vadd.f32 %v888, %v1199
      %v1402 = vadd.f32 %v889, %v1204
      %v1403 = vadd.f32 %v890, %v1209
      %v1404 = vadd.f32 %v891, %v1214
      %v1405 = vadd.f32 %v892, %v1219
      %v1406 = vadd.f32 %v893, %v1224
      %v1407 = vadd.f32 %v894, %v1229
      %v1408 = vadd.f32 %v895, %v1234
      %v1409 = vadd.f32 %v896, %v1239
      %v1410 = vadd.f32 %v897, %v1244
      %v1411 = vadd.f32 %v898, %v1249
      %v1412 = vadd.f32 %v899, %v1254
      %v1413 = vadd.f32 %v900, %v1259
      %v1414 = vadd.f32 %v901, %v1264
      %v1415 = vadd.f32 %v902, %v1269
      %v1416 = vadd.f32 %v903, %v1274
      %v1417 = vadd.f32 %v904, %v1279
      %v1418 = vadd.f32 %v905, %v1284
      %v1419 = vadd.f32 %v906, %v1289
      %v1420 = vadd.f32 %v907, %v1294
      %v1421 = vadd.f32 %v908, %v1299
      %v1422 = vadd.f32 %v909, %v1304
      %v1423 = vadd.f32 %v910, %v1309
      %v1424 = vadd.f32 %v911, %v1314
      %v1425 = vadd.f32 %v912, %v1319
      %v1426 = vadd.f32 %v913, %v1324
      %v1427 = vadd.f32 %v914, %v1329
      %v1428 = vadd.f32 %v915, %v1334
      %v1429 = vadd.f32 %v916, %v1339
      %v1430 = vadd.f32 %v917, %v1344
      %v1431 = vadd.f32 %v918, %v1349
      %v1432 = vadd.f32 %v919, %v1354
      %v1433 = vadd.f32 %v920, %v1359
      %v1434 = vadd.f32 %v921, %v1364
      %v1435 = vadd.f32 %v922, %v1369
      %1436 = vst.msk [vmem:[%s197] sm:$0xff] %vm582, %v1372
      %1437 = vst.msk [vmem:[%s197 + $0x8] sm:$0xff] %vm582, %v1373
      %1438 = vst.msk [vmem:[%s197 + $0x10] sm:$0xff] %vm582, %v1374
      %1439 = vst.msk [vmem:[%s197 + $0x18] sm:$0xff] %vm582, %v1375
      %1440 = vst.msk [vmem:[%s197 + $0x20] sm:$0xff] %vm582, %v1376
      %1441 = vst.msk [vmem:[%s197 + $0x28] sm:$0xff] %vm582, %v1377
      %1442 = vst.msk [vmem:[%s197 + $0x30] sm:$0xff] %vm582, %v1378
      %1443 = vst.msk [vmem:[%s197 + $0x38] sm:$0xff] %vm582, %v1379
      %1444 = vst.msk [vmem:[%s197 + $0x40] sm:$0xff] %vm582, %v1380
      %1445 = vst.msk [vmem:[%s197 + $0x48] sm:$0xff] %vm582, %v1381
      %1446 = vst.msk [vmem:[%s197 + $0x50] sm:$0xff] %vm582, %v1382
      %1447 = vst.msk [vmem:[%s197 + $0x58] sm:$0xff] %vm582, %v1383
      %1448 = vst.msk [vmem:[%s197 + $0x60] sm:$0xff] %vm582, %v1384
      %1449 = vst.msk [vmem:[%s197 + $0x68] sm:$0xff] %vm582, %v1385
      %1450 = vst.msk [vmem:[%s197 + $0x70] sm:$0xff] %vm582, %v1386
      %1451 = vst.msk [vmem:[%s197 + $0x78] sm:$0xff] %vm582, %v1387
      %1452 = vst.msk [vmem:[%s197 + $0x80] sm:$0xff] %vm582, %v1388
      %1453 = vst.msk [vmem:[%s197 + $0x88] sm:$0xff] %vm582, %v1389
      %1454 = vst.msk [vmem:[%s197 + $0x90] sm:$0xff] %vm582, %v1390
      %1455 = vst.msk [vmem:[%s197 + $0x98] sm:$0xff] %vm582, %v1391
      %1456 = vst.msk [vmem:[%s197 + $0xa0] sm:$0xff] %vm582, %v1392
      %1457 = vst.msk [vmem:[%s197 + $0xa8] sm:$0xff] %vm582, %v1393
      %1458 = vst.msk [vmem:[%s197 + $0xb0] sm:$0xff] %vm582, %v1394
      %1459 = vst.msk [vmem:[%s197 + $0xb8] sm:$0xff] %vm582, %v1395
      %1460 = vst.msk [vmem:[%s197 + $0xc0] sm:$0xff] %vm582, %v1396
      %1461 = vst.msk [vmem:[%s197 + $0xc8] sm:$0xff] %vm582, %v1397
      %1462 = vst.msk [vmem:[%s197 + $0xd0] sm:$0xff] %vm582, %v1398
      %1463 = vst.msk [vmem:[%s197 + $0xd8] sm:$0xff] %vm582, %v1399
      %1464 = vst.msk [vmem:[%s197 + $0xe0] sm:$0xff] %vm582, %v1400
      %1465 = vst.msk [vmem:[%s197 + $0xe8] sm:$0xff] %vm582, %v1401
      %1466 = vst.msk [vmem:[%s197 + $0xf0] sm:$0xff] %vm582, %v1402
      %1467 = vst.msk [vmem:[%s197 + $0xf8] sm:$0xff] %vm582, %v1403
      %1468 = vst.msk [vmem:[%s197 + $0x100] sm:$0xff] %vm582, %v1404
      %1469 = vst.msk [vmem:[%s197 + $0x108] sm:$0xff] %vm582, %v1405
      %1470 = vst.msk [vmem:[%s197 + $0x110] sm:$0xff] %vm582, %v1406
      %1471 = vst.msk [vmem:[%s197 + $0x118] sm:$0xff] %vm582, %v1407
      %1472 = vst.msk [vmem:[%s197 + $0x120] sm:$0xff] %vm582, %v1408
      %1473 = vst.msk [vmem:[%s197 + $0x128] sm:$0xff] %vm582, %v1409
      %1474 = vst.msk [vmem:[%s197 + $0x130] sm:$0xff] %vm582, %v1410
      %1475 = vst.msk [vmem:[%s197 + $0x138] sm:$0xff] %vm582, %v1411
      %1476 = vst.msk [vmem:[%s197 + $0x140] sm:$0xff] %vm582, %v1412
      %1477 = vst.msk [vmem:[%s197 + $0x148] sm:$0xff] %vm582, %v1413
      %1478 = vst.msk [vmem:[%s197 + $0x150] sm:$0xff] %vm582, %v1414
      %1479 = vst.msk [vmem:[%s197 + $0x158] sm:$0xff] %vm582, %v1415
      %1480 = vst.msk [vmem:[%s197 + $0x160] sm:$0xff] %vm582, %v1416
      %1481 = vst.msk [vmem:[%s197 + $0x168] sm:$0xff] %vm582, %v1417
      %1482 = vst.msk [vmem:[%s197 + $0x170] sm:$0xff] %vm582, %v1418
      %1483 = vst.msk [vmem:[%s197 + $0x178] sm:$0xff] %vm582, %v1419
      %1484 = vst.msk [vmem:[%s197 + $0x180] sm:$0xff] %vm582, %v1420
      %1485 = vst.msk [vmem:[%s197 + $0x188] sm:$0xff] %vm582, %v1421
      %1486 = vst.msk [vmem:[%s197 + $0x190] sm:$0xff] %vm582, %v1422
      %1487 = vst.msk [vmem:[%s197 + $0x198] sm:$0xff] %vm582, %v1423
      %1488 = vst.msk [vmem:[%s197 + $0x1a0] sm:$0xff] %vm582, %v1424
      %1489 = vst.msk [vmem:[%s197 + $0x1a8] sm:$0xff] %vm582, %v1425
      %1490 = vst.msk [vmem:[%s197 + $0x1b0] sm:$0xff] %vm582, %v1426
      %1491 = vst.msk [vmem:[%s197 + $0x1b8] sm:$0xff] %vm582, %v1427
      %1492 = vst.msk [vmem:[%s197 + $0x1c0] sm:$0xff] %vm582, %v1428
      %1493 = vst.msk [vmem:[%s197 + $0x1c8] sm:$0xff] %vm582, %v1429
      %1494 = vst.msk [vmem:[%s197 + $0x1d0] sm:$0xff] %vm582, %v1430
      %1495 = vst.msk [vmem:[%s197 + $0x1d8] sm:$0xff] %vm582, %v1431
      %1496 = vst.msk [vmem:[%s197 + $0x1e0] sm:$0xff] %vm582, %v1432
      %1497 = vst.msk [vmem:[%s197 + $0x1e8] sm:$0xff] %vm582, %v1433
      %1498 = vst.msk [vmem:[%s197 + $0x1f0] sm:$0xff] %vm582, %v1434
      %1499 = vst.msk [vmem:[%s197 + $0x1f8] sm:$0xff] %vm582, %v1435
      %s1500 = scalar_lea.vmem %s2, 16
      %v1501 = vld [vmem:[%s1500] sm:$0xff]
      %v1502 = vld [vmem:[%s1500 + $0x8] sm:$0xff]
      %1503 = vmatprep.subr.mxu0 0.0
      %1504 = vmatpush1.msra.mxu0 %v1501
      %1505 = vmatprep.subr.mxu0 0.0
      %1506 = vmatpush1.msra.mxu0 %v1502
      %1507 = vmatprep.subr.mxu0 0.0
      %1508 = vmatpush1.msra.mxu0 0.0
      %1509 = vmatprep.subr.mxu0 0.0
      %1510 = vmatpush1.msra.mxu0 0.0
      %1511 = vmatprep.subr.mxu0 0.0
      %1512 = vmatpush1.msra.mxu0 0.0
      %1513 = vmatprep.subr.mxu0 0.0
      %1514 = vmatpush1.msra.mxu0 0.0
      %1515 = vmatprep.subr.mxu0 0.0
      %1516 = vmatpush1.msra.mxu0 0.0
      %1517 = vmatprep.subr.mxu0 0.0
      %1518 = vmatpush1.msra.mxu0 0.0
      %1519 = vmatprep.subr.mxu0 0.0
      %1520 = vmatpush1.msra.mxu0 0.0
      %1521 = vmatprep.subr.mxu0 0.0
      %1522 = vmatpush1.msra.mxu0 0.0
      %1523 = vmatprep.subr.mxu0 0.0
      %1524 = vmatpush1.msra.mxu0 0.0
      %1525 = vmatprep.subr.mxu0 0.0
      %1526 = vmatpush1.msra.mxu0 0.0
      %1527 = vmatprep.subr.mxu0 0.0
      %1528 = vmatpush1.msra.mxu0 0.0
      %1529 = vmatprep.subr.mxu0 0.0
      %1530 = vmatpush1.msra.mxu0 0.0
      %1531 = vmatprep.subr.mxu0 0.0
      %1532 = vmatpush1.msra.mxu0 0.0
      %1533 = vmatprep.subr.mxu0 0.0
      %1534 = vmatpush1.msra.mxu0 0.0
      %1535 = vmatprep.subr.mxu0 0.0
      %1536 = vmatpush1.msra.mxu0 0.0
      %1537 = vmatprep.subr.mxu0 0.0
      %1538 = vmatpush1.msra.mxu0 0.0
      %1539 = vmatprep.subr.mxu0 0.0
      %1540 = vmatpush1.msra.mxu0 0.0
      %1541 = vmatprep.subr.mxu0 0.0
      %1542 = vmatpush1.msra.mxu0 0.0
      %1543 = vmatprep.subr.mxu0 0.0
      %1544 = vmatpush1.msra.mxu0 0.0
      %1545 = vmatprep.subr.mxu0 0.0
      %1546 = vmatpush1.msra.mxu0 0.0
      %1547 = vmatprep.subr.mxu0 0.0
      %1548 = vmatpush1.msra.mxu0 0.0
      %1549 = vmatprep.subr.mxu0 0.0
      %1550 = vmatpush1.msra.mxu0 0.0
      %1551 = vmatprep.subr.mxu0 0.0
      %1552 = vmatpush1.msra.mxu0 0.0
      %1553 = vmatprep.subr.mxu0 0.0
      %1554 = vmatpush1.msra.mxu0 0.0
      %1555 = vmatprep.subr.mxu0 0.0
      %1556 = vmatpush1.msra.mxu0 0.0
      %1557 = vmatprep.subr.mxu0 0.0
      %1558 = vmatpush1.msra.mxu0 0.0
      %1559 = vmatprep.subr.mxu0 0.0
      %1560 = vmatpush1.msra.mxu0 0.0
      %1561 = vmatprep.subr.mxu0 0.0
      %1562 = vmatpush1.msra.mxu0 0.0
      %1563 = vmatprep.subr.mxu0 0.0
      %1564 = vmatpush1.msra.mxu0 0.0
      %1565 = vmatprep.subr.mxu0 0.0
      %1566 = vmatpush1.msra.mxu0 0.0
      %1567 = vmatprep.mubr.f32.mxu0 0.0
      %1568 = vmatmul.mubr.f32.gmra.mrb[0].mxu0 %v667
      %v1569 = vpop.f32.mrb[0].mxu0
      %v1570 = vadd.f32 0.0, %v1569
      %v1571 = vpop.f32.mrb[0].mxu0
      %1572 = vmatprep.mubr.f32.mxu0 0.0
      %1573 = vmatmul.mubr.f32.gmra.mrb[0].mxu0 %v670
      %v1574 = vpop.f32.mrb[0].mxu0
      %v1575 = vadd.f32 0.0, %v1574
      %v1576 = vpop.f32.mrb[0].mxu0
      %1577 = vmatprep.mubr.f32.mxu0 0.0
      %1578 = vmatmul.mubr.f32.gmra.mrb[0].mxu0 %v673
      %v1579 = vpop.f32.mrb[0].mxu0
      %v1580 = vadd.f32 0.0, %v1579
      %v1581 = vpop.f32.mrb[0].mxu0
      %1582 = vmatprep.mubr.f32.mxu0 0.0
      %1583 = vmatmul.mubr.f32.gmra.mrb[0].mxu0 %v676
      %v1584 = vpop.f32.mrb[0].mxu0
      %v1585 = vadd.f32 0.0, %v1584
      %v1586 = vpop.f32.mrb[0].mxu0
      %1587 = vmatprep.mubr.f32.mxu0 0.0
      %1588 = vmatmul.mubr.f32.gmra.mrb[0].mxu0 %v679
      %v1589 = vpop.f32.mrb[0].mxu0
      %v1590 = vadd.f32 0.0, %v1589
      %v1591 = vpop.f32.mrb[0].mxu0
      %1592 = vmatprep.mubr.f32.mxu0 0.0
      %1593 = vmatmul.mubr.f32.gmra.mrb[0].mxu0 %v682
      %v1594 = vpop.f32.mrb[0].mxu0
      %v1595 = vadd.f32 0.0, %v1594
      %v1596 = vpop.f32.mrb[0].mxu0
      %1597 = vmatprep.mubr.f32.mxu0 0.0
      %1598 = vmatmul.mubr.f32.gmra.mrb[0].mxu0 %v685
      %v1599 = vpop.f32.mrb[0].mxu0
      %v1600 = vadd.f32 0.0, %v1599
      %v1601 = vpop.f32.mrb[0].mxu0
      %1602 = vmatprep.mubr.f32.mxu0 0.0
      %1603 = vmatmul.mubr.f32.gmra.mrb[0].mxu0 %v688
      %v1604 = vpop.f32.mrb[0].mxu0
      %v1605 = vadd.f32 0.0, %v1604
      %v1606 = vpop.f32.mrb[0].mxu0
      %1607 = vmatprep.mubr.f32.mxu0 0.0
      %1608 = vmatmul.mubr.f32.gmra.mrb[0].mxu0 %v691
      %v1609 = vpop.f32.mrb[0].mxu0
      %v1610 = vadd.f32 0.0, %v1609
      %v1611 = vpop.f32.mrb[0].mxu0
      %1612 = vmatprep.mubr.f32.mxu0 0.0
      %1613 = vmatmul.mubr.f32.gmra.mrb[0].mxu0 %v694
      %v1614 = vpop.f32.mrb[0].mxu0
      %v1615 = vadd.f32 0.0, %v1614
      %v1616 = vpop.f32.mrb[0].mxu0
      %1617 = vmatprep.mubr.f32.mxu0 0.0
      %1618 = vmatmul.mubr.f32.gmra.mrb[0].mxu0 %v697
      %v1619 = vpop.f32.mrb[0].mxu0
      %v1620 = vadd.f32 0.0, %v1619
      %v1621 = vpop.f32.mrb[0].mxu0
      %1622 = vmatprep.mubr.f32.mxu0 0.0
      %1623 = vmatmul.mubr.f32.gmra.mrb[0].mxu0 %v700
      %v1624 = vpop.f32.mrb[0].mxu0
      %v1625 = vadd.f32 0.0, %v1624
      %v1626 = vpop.f32.mrb[0].mxu0
      %1627 = vmatprep.mubr.f32.mxu0 0.0
      %1628 = vmatmul.mubr.f32.gmra.mrb[0].mxu0 %v703
      %v1629 = vpop.f32.mrb[0].mxu0
      %v1630 = vadd.f32 0.0, %v1629
      %v1631 = vpop.f32.mrb[0].mxu0
      %1632 = vmatprep.mubr.f32.mxu0 0.0
      %1633 = vmatmul.mubr.f32.gmra.mrb[0].mxu0 %v706
      %v1634 = vpop.f32.mrb[0].mxu0
      %v1635 = vadd.f32 0.0, %v1634
      %v1636 = vpop.f32.mrb[0].mxu0
      %1637 = vmatprep.mubr.f32.mxu0 0.0
      %1638 = vmatmul.mubr.f32.gmra.mrb[0].mxu0 %v709
      %v1639 = vpop.f32.mrb[0].mxu0
      %v1640 = vadd.f32 0.0, %v1639
      %v1641 = vpop.f32.mrb[0].mxu0
      %1642 = vmatprep.mubr.f32.mxu0 0.0
      %1643 = vmatmul.mubr.f32.gmra.mrb[0].mxu0 %v712
      %v1644 = vpop.f32.mrb[0].mxu0
      %v1645 = vadd.f32 0.0, %v1644
      %v1646 = vpop.f32.mrb[0].mxu0
      %1647 = vdwg.mxu0
      %v1648 = vld [vmem:[%s197] sm:$0xff]
      %v1649 = vld [vmem:[%s197 + $0x8] sm:$0xff]
      %v1650 = vld [vmem:[%s197 + $0x10] sm:$0xff]
      %v1651 = vld [vmem:[%s197 + $0x18] sm:$0xff]
      %v1652 = vld [vmem:[%s197 + $0x20] sm:$0xff]
      %v1653 = vld [vmem:[%s197 + $0x28] sm:$0xff]
      %v1654 = vld [vmem:[%s197 + $0x30] sm:$0xff]
      %v1655 = vld [vmem:[%s197 + $0x38] sm:$0xff]
      %v1656 = vld [vmem:[%s197 + $0x40] sm:$0xff]
      %v1657 = vld [vmem:[%s197 + $0x48] sm:$0xff]
      %v1658 = vld [vmem:[%s197 + $0x50] sm:$0xff]
      %v1659 = vld [vmem:[%s197 + $0x58] sm:$0xff]
      %v1660 = vld [vmem:[%s197 + $0x60] sm:$0xff]
      %v1661 = vld [vmem:[%s197 + $0x68] sm:$0xff]
      %v1662 = vld [vmem:[%s197 + $0x70] sm:$0xff]
      %v1663 = vld [vmem:[%s197 + $0x78] sm:$0xff]
      %v1664 = vld [vmem:[%s197 + $0x80] sm:$0xff]
      %v1665 = vld [vmem:[%s197 + $0x88] sm:$0xff]
      %v1666 = vld [vmem:[%s197 + $0x90] sm:$0xff]
      %v1667 = vld [vmem:[%s197 + $0x98] sm:$0xff]
      %v1668 = vld [vmem:[%s197 + $0xa0] sm:$0xff]
      %v1669 = vld [vmem:[%s197 + $0xa8] sm:$0xff]
      %v1670 = vld [vmem:[%s197 + $0xb0] sm:$0xff]
      %v1671 = vld [vmem:[%s197 + $0xb8] sm:$0xff]
      %v1672 = vld [vmem:[%s197 + $0xc0] sm:$0xff]
      %v1673 = vld [vmem:[%s197 + $0xc8] sm:$0xff]
      %v1674 = vld [vmem:[%s197 + $0xd0] sm:$0xff]
      %v1675 = vld [vmem:[%s197 + $0xd8] sm:$0xff]
      %v1676 = vld [vmem:[%s197 + $0xe0] sm:$0xff]
      %v1677 = vld [vmem:[%s197 + $0xe8] sm:$0xff]
      %v1678 = vld [vmem:[%s197 + $0xf0] sm:$0xff]
      %v1679 = vld [vmem:[%s197 + $0xf8] sm:$0xff]
      %v1680 = vld [vmem:[%s197 + $0x100] sm:$0xff]
      %v1681 = vld [vmem:[%s197 + $0x108] sm:$0xff]
      %v1682 = vld [vmem:[%s197 + $0x110] sm:$0xff]
      %v1683 = vld [vmem:[%s197 + $0x118] sm:$0xff]
      %v1684 = vld [vmem:[%s197 + $0x120] sm:$0xff]
      %v1685 = vld [vmem:[%s197 + $0x128] sm:$0xff]
      %v1686 = vld [vmem:[%s197 + $0x130] sm:$0xff]
      %v1687 = vld [vmem:[%s197 + $0x138] sm:$0xff]
      %v1688 = vld [vmem:[%s197 + $0x140] sm:$0xff]
      %v1689 = vld [vmem:[%s197 + $0x148] sm:$0xff]
      %v1690 = vld [vmem:[%s197 + $0x150] sm:$0xff]
      %v1691 = vld [vmem:[%s197 + $0x158] sm:$0xff]
      %v1692 = vld [vmem:[%s197 + $0x160] sm:$0xff]
      %v1693 = vld [vmem:[%s197 + $0x168] sm:$0xff]
      %v1694 = vld [vmem:[%s197 + $0x170] sm:$0xff]
      %v1695 = vld [vmem:[%s197 + $0x178] sm:$0xff]
      %v1696 = vld [vmem:[%s197 + $0x180] sm:$0xff]
      %v1697 = vld [vmem:[%s197 + $0x188] sm:$0xff]
      %v1698 = vld [vmem:[%s197 + $0x190] sm:$0xff]
      %v1699 = vld [vmem:[%s197 + $0x198] sm:$0xff]
      %v1700 = vld [vmem:[%s197 + $0x1a0] sm:$0xff]
      %v1701 = vld [vmem:[%s197 + $0x1a8] sm:$0xff]
      %v1702 = vld [vmem:[%s197 + $0x1b0] sm:$0xff]
      %v1703 = vld [vmem:[%s197 + $0x1b8] sm:$0xff]
      %v1704 = vld [vmem:[%s197 + $0x1c0] sm:$0xff]
      %v1705 = vld [vmem:[%s197 + $0x1c8] sm:$0xff]
      %v1706 = vld [vmem:[%s197 + $0x1d0] sm:$0xff]
      %v1707 = vld [vmem:[%s197 + $0x1d8] sm:$0xff]
      %v1708 = vld [vmem:[%s197 + $0x1e0] sm:$0xff]
      %v1709 = vld [vmem:[%s197 + $0x1e8] sm:$0xff]
      %v1710 = vld [vmem:[%s197 + $0x1f0] sm:$0xff]
      %v1711 = vld [vmem:[%s197 + $0x1f8] sm:$0xff]
      %s1712 = scalar_lea.vmem %s1, 512
      %v1713 = vld [vmem:[%s1712] sm:$0xff]
      %v1714 = vld [vmem:[%s1712 + $0x8] sm:$0xff]
      %v1715 = vld [vmem:[%s1712 + $0x10] sm:$0xff]
      %v1716 = vld [vmem:[%s1712 + $0x18] sm:$0xff]
      %v1717 = vld [vmem:[%s1712 + $0x20] sm:$0xff]
      %v1718 = vld [vmem:[%s1712 + $0x28] sm:$0xff]
      %v1719 = vld [vmem:[%s1712 + $0x30] sm:$0xff]
      %v1720 = vld [vmem:[%s1712 + $0x38] sm:$0xff]
      %v1721 = vld [vmem:[%s1712 + $0x40] sm:$0xff]
      %v1722 = vld [vmem:[%s1712 + $0x48] sm:$0xff]
      %v1723 = vld [vmem:[%s1712 + $0x50] sm:$0xff]
      %v1724 = vld [vmem:[%s1712 + $0x58] sm:$0xff]
      %v1725 = vld [vmem:[%s1712 + $0x60] sm:$0xff]
      %v1726 = vld [vmem:[%s1712 + $0x68] sm:$0xff]
      %v1727 = vld [vmem:[%s1712 + $0x70] sm:$0xff]
      %v1728 = vld [vmem:[%s1712 + $0x78] sm:$0xff]
      %v1729 = vld [vmem:[%s1712 + $0x80] sm:$0xff]
      %v1730 = vld [vmem:[%s1712 + $0x88] sm:$0xff]
      %v1731 = vld [vmem:[%s1712 + $0x90] sm:$0xff]
      %v1732 = vld [vmem:[%s1712 + $0x98] sm:$0xff]
      %v1733 = vld [vmem:[%s1712 + $0xa0] sm:$0xff]
      %v1734 = vld [vmem:[%s1712 + $0xa8] sm:$0xff]
      %v1735 = vld [vmem:[%s1712 + $0xb0] sm:$0xff]
      %v1736 = vld [vmem:[%s1712 + $0xb8] sm:$0xff]
      %v1737 = vld [vmem:[%s1712 + $0xc0] sm:$0xff]
      %v1738 = vld [vmem:[%s1712 + $0xc8] sm:$0xff]
      %v1739 = vld [vmem:[%s1712 + $0xd0] sm:$0xff]
      %v1740 = vld [vmem:[%s1712 + $0xd8] sm:$0xff]
      %v1741 = vld [vmem:[%s1712 + $0xe0] sm:$0xff]
      %v1742 = vld [vmem:[%s1712 + $0xe8] sm:$0xff]
      %v1743 = vld [vmem:[%s1712 + $0xf0] sm:$0xff]
      %v1744 = vld [vmem:[%s1712 + $0xf8] sm:$0xff]
      %v1745 = vld [vmem:[%s1712 + $0x100] sm:$0xff]
      %v1746 = vld [vmem:[%s1712 + $0x108] sm:$0xff]
      %v1747 = vld [vmem:[%s1712 + $0x110] sm:$0xff]
      %v1748 = vld [vmem:[%s1712 + $0x118] sm:$0xff]
      %v1749 = vld [vmem:[%s1712 + $0x120] sm:$0xff]
      %v1750 = vld [vmem:[%s1712 + $0x128] sm:$0xff]
      %v1751 = vld [vmem:[%s1712 + $0x130] sm:$0xff]
      %v1752 = vld [vmem:[%s1712 + $0x138] sm:$0xff]
      %v1753 = vld [vmem:[%s1712 + $0x140] sm:$0xff]
      %v1754 = vld [vmem:[%s1712 + $0x148] sm:$0xff]
      %v1755 = vld [vmem:[%s1712 + $0x150] sm:$0xff]
      %v1756 = vld [vmem:[%s1712 + $0x158] sm:$0xff]
      %v1757 = vld [vmem:[%s1712 + $0x160] sm:$0xff]
      %v1758 = vld [vmem:[%s1712 + $0x168] sm:$0xff]
      %v1759 = vld [vmem:[%s1712 + $0x170] sm:$0xff]
      %v1760 = vld [vmem:[%s1712 + $0x178] sm:$0xff]
      %v1761 = vld [vmem:[%s1712 + $0x180] sm:$0xff]
      %v1762 = vld [vmem:[%s1712 + $0x188] sm:$0xff]
      %v1763 = vld [vmem:[%s1712 + $0x190] sm:$0xff]
      %v1764 = vld [vmem:[%s1712 + $0x198] sm:$0xff]
      %v1765 = vld [vmem:[%s1712 + $0x1a0] sm:$0xff]
      %v1766 = vld [vmem:[%s1712 + $0x1a8] sm:$0xff]
      %v1767 = vld [vmem:[%s1712 + $0x1b0] sm:$0xff]
      %v1768 = vld [vmem:[%s1712 + $0x1b8] sm:$0xff]
      %v1769 = vld [vmem:[%s1712 + $0x1c0] sm:$0xff]
      %v1770 = vld [vmem:[%s1712 + $0x1c8] sm:$0xff]
      %v1771 = vld [vmem:[%s1712 + $0x1d0] sm:$0xff]
      %v1772 = vld [vmem:[%s1712 + $0x1d8] sm:$0xff]
      %v1773 = vld [vmem:[%s1712 + $0x1e0] sm:$0xff]
      %v1774 = vld [vmem:[%s1712 + $0x1e8] sm:$0xff]
      %v1775 = vld [vmem:[%s1712 + $0x1f0] sm:$0xff]
      %v1776 = vld [vmem:[%s1712 + $0x1f8] sm:$0xff]
      %1777 = vmatprep.subr.mxu0 0.0
      %1778 = vmatpush1.msra.mxu0 %v1570
      %1779 = vmatprep.subr.mxu0 0.0
      %1780 = vmatpush1.msra.mxu0 %v1575
      %1781 = vmatprep.subr.mxu0 0.0
      %1782 = vmatpush1.msra.mxu0 %v1580
      %1783 = vmatprep.subr.mxu0 0.0
      %1784 = vmatpush1.msra.mxu0 %v1585
      %1785 = vmatprep.subr.mxu0 0.0
      %1786 = vmatpush1.msra.mxu0 %v1590
      %1787 = vmatprep.subr.mxu0 0.0
      %1788 = vmatpush1.msra.mxu0 %v1595
      %1789 = vmatprep.subr.mxu0 0.0
      %1790 = vmatpush1.msra.mxu0 %v1600
      %1791 = vmatprep.subr.mxu0 0.0
      %1792 = vmatpush1.msra.mxu0 %v1605
      %1793 = vmatprep.subr.mxu0 0.0
      %1794 = vmatpush1.msra.mxu0 %v1610
      %1795 = vmatprep.subr.mxu0 0.0
      %1796 = vmatpush1.msra.mxu0 %v1615
      %1797 = vmatprep.subr.mxu0 0.0
      %1798 = vmatpush1.msra.mxu0 %v1620
      %1799 = vmatprep.subr.mxu0 0.0
      %1800 = vmatpush1.msra.mxu0 %v1625
      %1801 = vmatprep.subr.mxu0 0.0
      %1802 = vmatpush1.msra.mxu0 %v1630
      %1803 = vmatprep.subr.mxu0 0.0
      %1804 = vmatpush1.msra.mxu0 %v1635
      %1805 = vmatprep.subr.mxu0 0.0
      %1806 = vmatpush1.msra.mxu0 %v1640
      %1807 = vmatprep.subr.mxu0 0.0
      %1808 = vmatpush1.msra.mxu0 %v1645
      %1809 = vmatprep.subr.mxu0 0.0
      %1810 = vmatpush1.msra.mxu0 0.0
      %1811 = vmatprep.subr.mxu0 0.0
      %1812 = vmatpush1.msra.mxu0 0.0
      %1813 = vmatprep.subr.mxu0 0.0
      %1814 = vmatpush1.msra.mxu0 0.0
      %1815 = vmatprep.subr.mxu0 0.0
      %1816 = vmatpush1.msra.mxu0 0.0
      %1817 = vmatprep.subr.mxu0 0.0
      %1818 = vmatpush1.msra.mxu0 0.0
      %1819 = vmatprep.subr.mxu0 0.0
      %1820 = vmatpush1.msra.mxu0 0.0
      %1821 = vmatprep.subr.mxu0 0.0
      %1822 = vmatpush1.msra.mxu0 0.0
      %1823 = vmatprep.subr.mxu0 0.0
      %1824 = vmatpush1.msra.mxu0 0.0
      %1825 = vmatprep.subr.mxu0 0.0
      %1826 = vmatpush1.msra.mxu0 0.0
      %1827 = vmatprep.subr.mxu0 0.0
      %1828 = vmatpush1.msra.mxu0 0.0
      %1829 = vmatprep.subr.mxu0 0.0
      %1830 = vmatpush1.msra.mxu0 0.0
      %1831 = vmatprep.subr.mxu0 0.0
      %1832 = vmatpush1.msra.mxu0 0.0
      %1833 = vmatprep.subr.mxu0 0.0
      %1834 = vmatpush1.msra.mxu0 0.0
      %1835 = vmatprep.subr.mxu0 0.0
      %1836 = vmatpush1.msra.mxu0 0.0
      %1837 = vmatprep.subr.mxu0 0.0
      %1838 = vmatpush1.msra.mxu0 0.0
      %1839 = vmatprep.subr.mxu0 0.0
      %1840 = vmatpush1.msra.mxu0 0.0
      %1841 = vmatprep.mubr.f32.mxu0 0.0
      %1842 = vmatmul.mubr.f32.gmra.mrb[0].mxu0 %v1713
      %v1843 = vpop.f32.mrb[0].mxu0
      %v1844 = vadd.f32 0.0, %v1843
      %v1845 = vpop.f32.mrb[0].mxu0
      %1846 = vmatprep.mubr.f32.mxu0 0.0
      %1847 = vmatmul.mubr.f32.gmra.mrb[0].mxu0 %v1714
      %v1848 = vpop.f32.mrb[0].mxu0
      %v1849 = vadd.f32 0.0, %v1848
      %v1850 = vpop.f32.mrb[0].mxu0
      %1851 = vmatprep.mubr.f32.mxu0 0.0
      %1852 = vmatmul.mubr.f32.gmra.mrb[0].mxu0 %v1715
      %v1853 = vpop.f32.mrb[0].mxu0
      %v1854 = vadd.f32 0.0, %v1853
      %v1855 = vpop.f32.mrb[0].mxu0
      %1856 = vmatprep.mubr.f32.mxu0 0.0
      %1857 = vmatmul.mubr.f32.gmra.mrb[0].mxu0 %v1716
      %v1858 = vpop.f32.mrb[0].mxu0
      %v1859 = vadd.f32 0.0, %v1858
      %v1860 = vpop.f32.mrb[0].mxu0
      %1861 = vmatprep.mubr.f32.mxu0 0.0
      %1862 = vmatmul.mubr.f32.gmra.mrb[0].mxu0 %v1717
      %v1863 = vpop.f32.mrb[0].mxu0
      %v1864 = vadd.f32 0.0, %v1863
      %v1865 = vpop.f32.mrb[0].mxu0
      %1866 = vmatprep.mubr.f32.mxu0 0.0
      %1867 = vmatmul.mubr.f32.gmra.mrb[0].mxu0 %v1718
      %v1868 = vpop.f32.mrb[0].mxu0
      %v1869 = vadd.f32 0.0, %v1868
      %v1870 = vpop.f32.mrb[0].mxu0
      %1871 = vmatprep.mubr.f32.mxu0 0.0
      %1872 = vmatmul.mubr.f32.gmra.mrb[0].mxu0 %v1719
      %v1873 = vpop.f32.mrb[0].mxu0
      %v1874 = vadd.f32 0.0, %v1873
      %v1875 = vpop.f32.mrb[0].mxu0
      %1876 = vmatprep.mubr.f32.mxu0 0.0
      %1877 = vmatmul.mubr.f32.gmra.mrb[0].mxu0 %v1720
      %v1878 = vpop.f32.mrb[0].mxu0
      %v1879 = vadd.f32 0.0, %v1878
      %v1880 = vpop.f32.mrb[0].mxu0
      %1881 = vmatprep.mubr.f32.mxu0 0.0
      %1882 = vmatmul.mubr.f32.gmra.mrb[0].mxu0 %v1721
      %v1883 = vpop.f32.mrb[0].mxu0
      %v1884 = vadd.f32 0.0, %v1883
      %v1885 = vpop.f32.mrb[0].mxu0
      %1886 = vmatprep.mubr.f32.mxu0 0.0
      %1887 = vmatmul.mubr.f32.gmra.mrb[0].mxu0 %v1722
      %v1888 = vpop.f32.mrb[0].mxu0
      %v1889 = vadd.f32 0.0, %v1888
      %v1890 = vpop.f32.mrb[0].mxu0
      %1891 = vmatprep.mubr.f32.mxu0 0.0
      %1892 = vmatmul.mubr.f32.gmra.mrb[0].mxu0 %v1723
      %v1893 = vpop.f32.mrb[0].mxu0
      %v1894 = vadd.f32 0.0, %v1893
      %v1895 = vpop.f32.mrb[0].mxu0
      %1896 = vmatprep.mubr.f32.mxu0 0.0
      %1897 = vmatmul.mubr.f32.gmra.mrb[0].mxu0 %v1724
      %v1898 = vpop.f32.mrb[0].mxu0
      %v1899 = vadd.f32 0.0, %v1898
      %v1900 = vpop.f32.mrb[0].mxu0
      %1901 = vmatprep.mubr.f32.mxu0 0.0
      %1902 = vmatmul.mubr.f32.gmra.mrb[0].mxu0 %v1725
      %v1903 = vpop.f32.mrb[0].mxu0
      %v1904 = vadd.f32 0.0, %v1903
      %v1905 = vpop.f32.mrb[0].mxu0
      %1906 = vmatprep.mubr.f32.mxu0 0.0
      %1907 = vmatmul.mubr.f32.gmra.mrb[0].mxu0 %v1726
      %v1908 = vpop.f32.mrb[0].mxu0
      %v1909 = vadd.f32 0.0, %v1908
      %v1910 = vpop.f32.mrb[0].mxu0
      %1911 = vmatprep.mubr.f32.mxu0 0.0
      %1912 = vmatmul.mubr.f32.gmra.mrb[0].mxu0 %v1727
      %v1913 = vpop.f32.mrb[0].mxu0
      %v1914 = vadd.f32 0.0, %v1913
      %v1915 = vpop.f32.mrb[0].mxu0
      %1916 = vmatprep.mubr.f32.mxu0 0.0
      %1917 = vmatmul.mubr.f32.gmra.mrb[0].mxu0 %v1728
      %v1918 = vpop.f32.mrb[0].mxu0
      %v1919 = vadd.f32 0.0, %v1918
      %v1920 = vpop.f32.mrb[0].mxu0
      %1921 = vmatprep.mubr.f32.mxu0 0.0
      %1922 = vmatmul.mubr.f32.gmra.mrb[0].mxu0 %v1729
      %v1923 = vpop.f32.mrb[0].mxu0
      %v1924 = vadd.f32 0.0, %v1923
      %v1925 = vpop.f32.mrb[0].mxu0
      %1926 = vmatprep.mubr.f32.mxu0 0.0
      %1927 = vmatmul.mubr.f32.gmra.mrb[0].mxu0 %v1730
      %v1928 = vpop.f32.mrb[0].mxu0
      %v1929 = vadd.f32 0.0, %v1928
      %v1930 = vpop.f32.mrb[0].mxu0
      %1931 = vmatprep.mubr.f32.mxu0 0.0
      %1932 = vmatmul.mubr.f32.gmra.mrb[0].mxu0 %v1731
      %v1933 = vpop.f32.mrb[0].mxu0
      %v1934 = vadd.f32 0.0, %v1933
      %v1935 = vpop.f32.mrb[0].mxu0
      %1936 = vmatprep.mubr.f32.mxu0 0.0
      %1937 = vmatmul.mubr.f32.gmra.mrb[0].mxu0 %v1732
      %v1938 = vpop.f32.mrb[0].mxu0
      %v1939 = vadd.f32 0.0, %v1938
      %v1940 = vpop.f32.mrb[0].mxu0
      %1941 = vmatprep.mubr.f32.mxu0 0.0
      %1942 = vmatmul.mubr.f32.gmra.mrb[0].mxu0 %v1733
      %v1943 = vpop.f32.mrb[0].mxu0
      %v1944 = vadd.f32 0.0, %v1943
      %v1945 = vpop.f32.mrb[0].mxu0
      %1946 = vmatprep.mubr.f32.mxu0 0.0
      %1947 = vmatmul.mubr.f32.gmra.mrb[0].mxu0 %v1734
      %v1948 = vpop.f32.mrb[0].mxu0
      %v1949 = vadd.f32 0.0, %v1948
      %v1950 = vpop.f32.mrb[0].mxu0
      %1951 = vmatprep.mubr.f32.mxu0 0.0
      %1952 = vmatmul.mubr.f32.gmra.mrb[0].mxu0 %v1735
      %v1953 = vpop.f32.mrb[0].mxu0
      %v1954 = vadd.f32 0.0, %v1953
      %v1955 = vpop.f32.mrb[0].mxu0
      %1956 = vmatprep.mubr.f32.mxu0 0.0
      %1957 = vmatmul.mubr.f32.gmra.mrb[0].mxu0 %v1736
      %v1958 = vpop.f32.mrb[0].mxu0
      %v1959 = vadd.f32 0.0, %v1958
      %v1960 = vpop.f32.mrb[0].mxu0
      %1961 = vmatprep.mubr.f32.mxu0 0.0
      %1962 = vmatmul.mubr.f32.gmra.mrb[0].mxu0 %v1737
      %v1963 = vpop.f32.mrb[0].mxu0
      %v1964 = vadd.f32 0.0, %v1963
      %v1965 = vpop.f32.mrb[0].mxu0
      %1966 = vmatprep.mubr.f32.mxu0 0.0
      %1967 = vmatmul.mubr.f32.gmra.mrb[0].mxu0 %v1738
      %v1968 = vpop.f32.mrb[0].mxu0
      %v1969 = vadd.f32 0.0, %v1968
      %v1970 = vpop.f32.mrb[0].mxu0
      %1971 = vmatprep.mubr.f32.mxu0 0.0
      %1972 = vmatmul.mubr.f32.gmra.mrb[0].mxu0 %v1739
      %v1973 = vpop.f32.mrb[0].mxu0
      %v1974 = vadd.f32 0.0, %v1973
      %v1975 = vpop.f32.mrb[0].mxu0
      %1976 = vmatprep.mubr.f32.mxu0 0.0
      %1977 = vmatmul.mubr.f32.gmra.mrb[0].mxu0 %v1740
      %v1978 = vpop.f32.mrb[0].mxu0
      %v1979 = vadd.f32 0.0, %v1978
      %v1980 = vpop.f32.mrb[0].mxu0
      %1981 = vmatprep.mubr.f32.mxu0 0.0
      %1982 = vmatmul.mubr.f32.gmra.mrb[0].mxu0 %v1741
      %v1983 = vpop.f32.mrb[0].mxu0
      %v1984 = vadd.f32 0.0, %v1983
      %v1985 = vpop.f32.mrb[0].mxu0
      %1986 = vmatprep.mubr.f32.mxu0 0.0
      %1987 = vmatmul.mubr.f32.gmra.mrb[0].mxu0 %v1742
      %v1988 = vpop.f32.mrb[0].mxu0
      %v1989 = vadd.f32 0.0, %v1988
      %v1990 = vpop.f32.mrb[0].mxu0
      %1991 = vmatprep.mubr.f32.mxu0 0.0
      %1992 = vmatmul.mubr.f32.gmra.mrb[0].mxu0 %v1743
      %v1993 = vpop.f32.mrb[0].mxu0
      %v1994 = vadd.f32 0.0, %v1993
      %v1995 = vpop.f32.mrb[0].mxu0
      %1996 = vmatprep.mubr.f32.mxu0 0.0
      %1997 = vmatmul.mubr.f32.gmra.mrb[0].mxu0 %v1744
      %v1998 = vpop.f32.mrb[0].mxu0
      %v1999 = vadd.f32 0.0, %v1998
      %v2000 = vpop.f32.mrb[0].mxu0
      %2001 = vmatprep.mubr.f32.mxu0 0.0
      %2002 = vmatmul.mubr.f32.gmra.mrb[0].mxu0 %v1745
      %v2003 = vpop.f32.mrb[0].mxu0
      %v2004 = vadd.f32 0.0, %v2003
      %v2005 = vpop.f32.mrb[0].mxu0
      %2006 = vmatprep.mubr.f32.mxu0 0.0
      %2007 = vmatmul.mubr.f32.gmra.mrb[0].mxu0 %v1746
      %v2008 = vpop.f32.mrb[0].mxu0
      %v2009 = vadd.f32 0.0, %v2008
      %v2010 = vpop.f32.mrb[0].mxu0
      %2011 = vmatprep.mubr.f32.mxu0 0.0
      %2012 = vmatmul.mubr.f32.gmra.mrb[0].mxu0 %v1747
      %v2013 = vpop.f32.mrb[0].mxu0
      %v2014 = vadd.f32 0.0, %v2013
      %v2015 = vpop.f32.mrb[0].mxu0
      %2016 = vmatprep.mubr.f32.mxu0 0.0
      %2017 = vmatmul.mubr.f32.gmra.mrb[0].mxu0 %v1748
      %v2018 = vpop.f32.mrb[0].mxu0
      %v2019 = vadd.f32 0.0, %v2018
      %v2020 = vpop.f32.mrb[0].mxu0
      %2021 = vmatprep.mubr.f32.mxu0 0.0
      %2022 = vmatmul.mubr.f32.gmra.mrb[0].mxu0 %v1749
      %v2023 = vpop.f32.mrb[0].mxu0
      %v2024 = vadd.f32 0.0, %v2023
      %v2025 = vpop.f32.mrb[0].mxu0
      %2026 = vmatprep.mubr.f32.mxu0 0.0
      %2027 = vmatmul.mubr.f32.gmra.mrb[0].mxu0 %v1750
      %v2028 = vpop.f32.mrb[0].mxu0
      %v2029 = vadd.f32 0.0, %v2028
      %v2030 = vpop.f32.mrb[0].mxu0
      %2031 = vmatprep.mubr.f32.mxu0 0.0
      %2032 = vmatmul.mubr.f32.gmra.mrb[0].mxu0 %v1751
      %v2033 = vpop.f32.mrb[0].mxu0
      %v2034 = vadd.f32 0.0, %v2033
      %v2035 = vpop.f32.mrb[0].mxu0
      %2036 = vmatprep.mubr.f32.mxu0 0.0
      %2037 = vmatmul.mubr.f32.gmra.mrb[0].mxu0 %v1752
      %v2038 = vpop.f32.mrb[0].mxu0
      %v2039 = vadd.f32 0.0, %v2038
      %v2040 = vpop.f32.mrb[0].mxu0
      %2041 = vmatprep.mubr.f32.mxu0 0.0
      %2042 = vmatmul.mubr.f32.gmra.mrb[0].mxu0 %v1753
      %v2043 = vpop.f32.mrb[0].mxu0
      %v2044 = vadd.f32 0.0, %v2043
      %v2045 = vpop.f32.mrb[0].mxu0
      %2046 = vmatprep.mubr.f32.mxu0 0.0
      %2047 = vmatmul.mubr.f32.gmra.mrb[0].mxu0 %v1754
      %v2048 = vpop.f32.mrb[0].mxu0
      %v2049 = vadd.f32 0.0, %v2048
      %v2050 = vpop.f32.mrb[0].mxu0
      %2051 = vmatprep.mubr.f32.mxu0 0.0
      %2052 = vmatmul.mubr.f32.gmra.mrb[0].mxu0 %v1755
      %v2053 = vpop.f32.mrb[0].mxu0
      %v2054 = vadd.f32 0.0, %v2053
      %v2055 = vpop.f32.mrb[0].mxu0
      %2056 = vmatprep.mubr.f32.mxu0 0.0
      %2057 = vmatmul.mubr.f32.gmra.mrb[0].mxu0 %v1756
      %v2058 = vpop.f32.mrb[0].mxu0
      %v2059 = vadd.f32 0.0, %v2058
      %v2060 = vpop.f32.mrb[0].mxu0
      %2061 = vmatprep.mubr.f32.mxu0 0.0
      %2062 = vmatmul.mubr.f32.gmra.mrb[0].mxu0 %v1757
      %v2063 = vpop.f32.mrb[0].mxu0
      %v2064 = vadd.f32 0.0, %v2063
      %v2065 = vpop.f32.mrb[0].mxu0
      %2066 = vmatprep.mubr.f32.mxu0 0.0
      %2067 = vmatmul.mubr.f32.gmra.mrb[0].mxu0 %v1758
      %v2068 = vpop.f32.mrb[0].mxu0
      %v2069 = vadd.f32 0.0, %v2068
      %v2070 = vpop.f32.mrb[0].mxu0
      %2071 = vmatprep.mubr.f32.mxu0 0.0
      %2072 = vmatmul.mubr.f32.gmra.mrb[0].mxu0 %v1759
      %v2073 = vpop.f32.mrb[0].mxu0
      %v2074 = vadd.f32 0.0, %v2073
      %v2075 = vpop.f32.mrb[0].mxu0
      %2076 = vmatprep.mubr.f32.mxu0 0.0
      %2077 = vmatmul.mubr.f32.gmra.mrb[0].mxu0 %v1760
      %v2078 = vpop.f32.mrb[0].mxu0
      %v2079 = vadd.f32 0.0, %v2078
      %v2080 = vpop.f32.mrb[0].mxu0
      %2081 = vmatprep.mubr.f32.mxu0 0.0
      %2082 = vmatmul.mubr.f32.gmra.mrb[0].mxu0 %v1761
      %v2083 = vpop.f32.mrb[0].mxu0
      %v2084 = vadd.f32 0.0, %v2083
      %v2085 = vpop.f32.mrb[0].mxu0
      %2086 = vmatprep.mubr.f32.mxu0 0.0
      %2087 = vmatmul.mubr.f32.gmra.mrb[0].mxu0 %v1762
      %v2088 = vpop.f32.mrb[0].mxu0
      %v2089 = vadd.f32 0.0, %v2088
      %v2090 = vpop.f32.mrb[0].mxu0
      %2091 = vmatprep.mubr.f32.mxu0 0.0
      %2092 = vmatmul.mubr.f32.gmra.mrb[0].mxu0 %v1763
      %v2093 = vpop.f32.mrb[0].mxu0
      %v2094 = vadd.f32 0.0, %v2093
      %v2095 = vpop.f32.mrb[0].mxu0
      %2096 = vmatprep.mubr.f32.mxu0 0.0
      %2097 = vmatmul.mubr.f32.gmra.mrb[0].mxu0 %v1764
      %v2098 = vpop.f32.mrb[0].mxu0
      %v2099 = vadd.f32 0.0, %v2098
      %v2100 = vpop.f32.mrb[0].mxu0
      %2101 = vmatprep.mubr.f32.mxu0 0.0
      %2102 = vmatmul.mubr.f32.gmra.mrb[0].mxu0 %v1765
      %v2103 = vpop.f32.mrb[0].mxu0
      %v2104 = vadd.f32 0.0, %v2103
      %v2105 = vpop.f32.mrb[0].mxu0
      %2106 = vmatprep.mubr.f32.mxu0 0.0
      %2107 = vmatmul.mubr.f32.gmra.mrb[0].mxu0 %v1766
      %v2108 = vpop.f32.mrb[0].mxu0
      %v2109 = vadd.f32 0.0, %v2108
      %v2110 = vpop.f32.mrb[0].mxu0
      %2111 = vmatprep.mubr.f32.mxu0 0.0
      %2112 = vmatmul.mubr.f32.gmra.mrb[0].mxu0 %v1767
      %v2113 = vpop.f32.mrb[0].mxu0
      %v2114 = vadd.f32 0.0, %v2113
      %v2115 = vpop.f32.mrb[0].mxu0
      %2116 = vmatprep.mubr.f32.mxu0 0.0
      %2117 = vmatmul.mubr.f32.gmra.mrb[0].mxu0 %v1768
      %v2118 = vpop.f32.mrb[0].mxu0
      %v2119 = vadd.f32 0.0, %v2118
      %v2120 = vpop.f32.mrb[0].mxu0
      %2121 = vmatprep.mubr.f32.mxu0 0.0
      %2122 = vmatmul.mubr.f32.gmra.mrb[0].mxu0 %v1769
      %v2123 = vpop.f32.mrb[0].mxu0
      %v2124 = vadd.f32 0.0, %v2123
      %v2125 = vpop.f32.mrb[0].mxu0
      %2126 = vmatprep.mubr.f32.mxu0 0.0
      %2127 = vmatmul.mubr.f32.gmra.mrb[0].mxu0 %v1770
      %v2128 = vpop.f32.mrb[0].mxu0
      %v2129 = vadd.f32 0.0, %v2128
      %v2130 = vpop.f32.mrb[0].mxu0
      %2131 = vmatprep.mubr.f32.mxu0 0.0
      %2132 = vmatmul.mubr.f32.gmra.mrb[0].mxu0 %v1771
      %v2133 = vpop.f32.mrb[0].mxu0
      %v2134 = vadd.f32 0.0, %v2133
      %v2135 = vpop.f32.mrb[0].mxu0
      %2136 = vmatprep.mubr.f32.mxu0 0.0
      %2137 = vmatmul.mubr.f32.gmra.mrb[0].mxu0 %v1772
      %v2138 = vpop.f32.mrb[0].mxu0
      %v2139 = vadd.f32 0.0, %v2138
      %v2140 = vpop.f32.mrb[0].mxu0
      %2141 = vmatprep.mubr.f32.mxu0 0.0
      %2142 = vmatmul.mubr.f32.gmra.mrb[0].mxu0 %v1773
      %v2143 = vpop.f32.mrb[0].mxu0
      %v2144 = vadd.f32 0.0, %v2143
      %v2145 = vpop.f32.mrb[0].mxu0
      %2146 = vmatprep.mubr.f32.mxu0 0.0
      %2147 = vmatmul.mubr.f32.gmra.mrb[0].mxu0 %v1774
      %v2148 = vpop.f32.mrb[0].mxu0
      %v2149 = vadd.f32 0.0, %v2148
      %v2150 = vpop.f32.mrb[0].mxu0
      %2151 = vmatprep.mubr.f32.mxu0 0.0
      %2152 = vmatmul.mubr.f32.gmra.mrb[0].mxu0 %v1775
      %v2153 = vpop.f32.mrb[0].mxu0
      %v2154 = vadd.f32 0.0, %v2153
      %v2155 = vpop.f32.mrb[0].mxu0
      %2156 = vmatprep.mubr.f32.mxu0 0.0
      %2157 = vmatmul.mubr.f32.gmra.mrb[0].mxu0 %v1776
      %v2158 = vpop.f32.mrb[0].mxu0
      %v2159 = vadd.f32 0.0, %v2158
      %v2160 = vpop.f32.mrb[0].mxu0
      %2161 = vdwg.mxu0
      %v2162 = vadd.f32 %v1648, %v1844
      %v2163 = vadd.f32 %v1649, %v1849
      %v2164 = vadd.f32 %v1650, %v1854
      %v2165 = vadd.f32 %v1651, %v1859
      %v2166 = vadd.f32 %v1652, %v1864
      %v2167 = vadd.f32 %v1653, %v1869
      %v2168 = vadd.f32 %v1654, %v1874
      %v2169 = vadd.f32 %v1655, %v1879
      %v2170 = vadd.f32 %v1656, %v1884
      %v2171 = vadd.f32 %v1657, %v1889
      %v2172 = vadd.f32 %v1658, %v1894
      %v2173 = vadd.f32 %v1659, %v1899
      %v2174 = vadd.f32 %v1660, %v1904
      %v2175 = vadd.f32 %v1661, %v1909
      %v2176 = vadd.f32 %v1662, %v1914
      %v2177 = vadd.f32 %v1663, %v1919
      %v2178 = vadd.f32 %v1664, %v1924
      %v2179 = vadd.f32 %v1665, %v1929
      %v2180 = vadd.f32 %v1666, %v1934
      %v2181 = vadd.f32 %v1667, %v1939
      %v2182 = vadd.f32 %v1668, %v1944
      %v2183 = vadd.f32 %v1669, %v1949
      %v2184 = vadd.f32 %v1670, %v1954
      %v2185 = vadd.f32 %v1671, %v1959
      %v2186 = vadd.f32 %v1672, %v1964
      %v2187 = vadd.f32 %v1673, %v1969
      %v2188 = vadd.f32 %v1674, %v1974
      %v2189 = vadd.f32 %v1675, %v1979
      %v2190 = vadd.f32 %v1676, %v1984
      %v2191 = vadd.f32 %v1677, %v1989
      %v2192 = vadd.f32 %v1678, %v1994
      %v2193 = vadd.f32 %v1679, %v1999
      %v2194 = vadd.f32 %v1680, %v2004
      %v2195 = vadd.f32 %v1681, %v2009
      %v2196 = vadd.f32 %v1682, %v2014
      %v2197 = vadd.f32 %v1683, %v2019
      %v2198 = vadd.f32 %v1684, %v2024
      %v2199 = vadd.f32 %v1685, %v2029
      %v2200 = vadd.f32 %v1686, %v2034
      %v2201 = vadd.f32 %v1687, %v2039
      %v2202 = vadd.f32 %v1688, %v2044
      %v2203 = vadd.f32 %v1689, %v2049
      %v2204 = vadd.f32 %v1690, %v2054
      %v2205 = vadd.f32 %v1691, %v2059
      %v2206 = vadd.f32 %v1692, %v2064
      %v2207 = vadd.f32 %v1693, %v2069
      %v2208 = vadd.f32 %v1694, %v2074
      %v2209 = vadd.f32 %v1695, %v2079
      %v2210 = vadd.f32 %v1696, %v2084
      %v2211 = vadd.f32 %v1697, %v2089
      %v2212 = vadd.f32 %v1698, %v2094
      %v2213 = vadd.f32 %v1699, %v2099
      %v2214 = vadd.f32 %v1700, %v2104
      %v2215 = vadd.f32 %v1701, %v2109
      %v2216 = vadd.f32 %v1702, %v2114
      %v2217 = vadd.f32 %v1703, %v2119
      %v2218 = vadd.f32 %v1704, %v2124
      %v2219 = vadd.f32 %v1705, %v2129
      %v2220 = vadd.f32 %v1706, %v2134
      %v2221 = vadd.f32 %v1707, %v2139
      %v2222 = vadd.f32 %v1708, %v2144
      %v2223 = vadd.f32 %v1709, %v2149
      %v2224 = vadd.f32 %v1710, %v2154
      %v2225 = vadd.f32 %v1711, %v2159
      %2226 = vst.msk [vmem:[%s197] sm:$0xff] %vm582, %v2162
      %2227 = vst.msk [vmem:[%s197 + $0x8] sm:$0xff] %vm582, %v2163
      %2228 = vst.msk [vmem:[%s197 + $0x10] sm:$0xff] %vm582, %v2164
      %2229 = vst.msk [vmem:[%s197 + $0x18] sm:$0xff] %vm582, %v2165
      %2230 = vst.msk [vmem:[%s197 + $0x20] sm:$0xff] %vm582, %v2166
      %2231 = vst.msk [vmem:[%s197 + $0x28] sm:$0xff] %vm582, %v2167
      %2232 = vst.msk [vmem:[%s197 + $0x30] sm:$0xff] %vm582, %v2168
      %2233 = vst.msk [vmem:[%s197 + $0x38] sm:$0xff] %vm582, %v2169
      %2234 = vst.msk [vmem:[%s197 + $0x40] sm:$0xff] %vm582, %v2170
      %2235 = vst.msk [vmem:[%s197 + $0x48] sm:$0xff] %vm582, %v2171
      %2236 = vst.msk [vmem:[%s197 + $0x50] sm:$0xff] %vm582, %v2172
      %2237 = vst.msk [vmem:[%s197 + $0x58] sm:$0xff] %vm582, %v2173
      %2238 = vst.msk [vmem:[%s197 + $0x60] sm:$0xff] %vm582, %v2174
      %2239 = vst.msk [vmem:[%s197 + $0x68] sm:$0xff] %vm582, %v2175
      %2240 = vst.msk [vmem:[%s197 + $0x70] sm:$0xff] %vm582, %v2176
      %2241 = vst.msk [vmem:[%s197 + $0x78] sm:$0xff] %vm582, %v2177
      %2242 = vst.msk [vmem:[%s197 + $0x80] sm:$0xff] %vm582, %v2178
      %2243 = vst.msk [vmem:[%s197 + $0x88] sm:$0xff] %vm582, %v2179
      %2244 = vst.msk [vmem:[%s197 + $0x90] sm:$0xff] %vm582, %v2180
      %2245 = vst.msk [vmem:[%s197 + $0x98] sm:$0xff] %vm582, %v2181
      %2246 = vst.msk [vmem:[%s197 + $0xa0] sm:$0xff] %vm582, %v2182
      %2247 = vst.msk [vmem:[%s197 + $0xa8] sm:$0xff] %vm582, %v2183
      %2248 = vst.msk [vmem:[%s197 + $0xb0] sm:$0xff] %vm582, %v2184
      %2249 = vst.msk [vmem:[%s197 + $0xb8] sm:$0xff] %vm582, %v2185
      %2250 = vst.msk [vmem:[%s197 + $0xc0] sm:$0xff] %vm582, %v2186
      %2251 = vst.msk [vmem:[%s197 + $0xc8] sm:$0xff] %vm582, %v2187
      %2252 = vst.msk [vmem:[%s197 + $0xd0] sm:$0xff] %vm582, %v2188
      %2253 = vst.msk [vmem:[%s197 + $0xd8] sm:$0xff] %vm582, %v2189
      %2254 = vst.msk [vmem:[%s197 + $0xe0] sm:$0xff] %vm582, %v2190
      %2255 = vst.msk [vmem:[%s197 + $0xe8] sm:$0xff] %vm582, %v2191
      %2256 = vst.msk [vmem:[%s197 + $0xf0] sm:$0xff] %vm582, %v2192
      %2257 = vst.msk [vmem:[%s197 + $0xf8] sm:$0xff] %vm582, %v2193
      %2258 = vst.msk [vmem:[%s197 + $0x100] sm:$0xff] %vm582, %v2194
      %2259 = vst.msk [vmem:[%s197 + $0x108] sm:$0xff] %vm582, %v2195
      %2260 = vst.msk [vmem:[%s197 + $0x110] sm:$0xff] %vm582, %v2196
      %2261 = vst.msk [vmem:[%s197 + $0x118] sm:$0xff] %vm582, %v2197
      %2262 = vst.msk [vmem:[%s197 + $0x120] sm:$0xff] %vm582, %v2198
      %2263 = vst.msk [vmem:[%s197 + $0x128] sm:$0xff] %vm582, %v2199
      %2264 = vst.msk [vmem:[%s197 + $0x130] sm:$0xff] %vm582, %v2200
      %2265 = vst.msk [vmem:[%s197 + $0x138] sm:$0xff] %vm582, %v2201
      %2266 = vst.msk [vmem:[%s197 + $0x140] sm:$0xff] %vm582, %v2202
      %2267 = vst.msk [vmem:[%s197 + $0x148] sm:$0xff] %vm582, %v2203
      %2268 = vst.msk [vmem:[%s197 + $0x150] sm:$0xff] %vm582, %v2204
      %2269 = vst.msk [vmem:[%s197 + $0x158] sm:$0xff] %vm582, %v2205
      %2270 = vst.msk [vmem:[%s197 + $0x160] sm:$0xff] %vm582, %v2206
      %2271 = vst.msk [vmem:[%s197 + $0x168] sm:$0xff] %vm582, %v2207
      %2272 = vst.msk [vmem:[%s197 + $0x170] sm:$0xff] %vm582, %v2208
      %2273 = vst.msk [vmem:[%s197 + $0x178] sm:$0xff] %vm582, %v2209
      %2274 = vst.msk [vmem:[%s197 + $0x180] sm:$0xff] %vm582, %v2210
      %2275 = vst.msk [vmem:[%s197 + $0x188] sm:$0xff] %vm582, %v2211
      %2276 = vst.msk [vmem:[%s197 + $0x190] sm:$0xff] %vm582, %v2212
      %2277 = vst.msk [vmem:[%s197 + $0x198] sm:$0xff] %vm582, %v2213
      %2278 = vst.msk [vmem:[%s197 + $0x1a0] sm:$0xff] %vm582, %v2214
      %2279 = vst.msk [vmem:[%s197 + $0x1a8] sm:$0xff] %vm582, %v2215
      %2280 = vst.msk [vmem:[%s197 + $0x1b0] sm:$0xff] %vm582, %v2216
      %2281 = vst.msk [vmem:[%s197 + $0x1b8] sm:$0xff] %vm582, %v2217
      %2282 = vst.msk [vmem:[%s197 + $0x1c0] sm:$0xff] %vm582, %v2218
      %2283 = vst.msk [vmem:[%s197 + $0x1c8] sm:$0xff] %vm582, %v2219
      %2284 = vst.msk [vmem:[%s197 + $0x1d0] sm:$0xff] %vm582, %v2220
      %2285 = vst.msk [vmem:[%s197 + $0x1d8] sm:$0xff] %vm582, %v2221
      %2286 = vst.msk [vmem:[%s197 + $0x1e0] sm:$0xff] %vm582, %v2222
      %2287 = vst.msk [vmem:[%s197 + $0x1e8] sm:$0xff] %vm582, %v2223
      %2288 = vst.msk [vmem:[%s197 + $0x1f0] sm:$0xff] %vm582, %v2224
      %2289 = vst.msk [vmem:[%s197 + $0x1f8] sm:$0xff] %vm582, %v2225
      %s2290 = scalar_lea.vmem %s2, 32
      %v2291 = vld [vmem:[%s2290] sm:$0xff]
      %v2292 = vld [vmem:[%s2290 + $0x8] sm:$0xff]
      %2293 = vmatprep.subr.mxu0 0.0
      %2294 = vmatpush1.msra.mxu0 %v2291
      %2295 = vmatprep.subr.mxu0 0.0
      %2296 = vmatpush1.msra.mxu0 %v2292
      %2297 = vmatprep.subr.mxu0 0.0
      %2298 = vmatpush1.msra.mxu0 0.0
      %2299 = vmatprep.subr.mxu0 0.0
      %2300 = vmatpush1.msra.mxu0 0.0
      %2301 = vmatprep.subr.mxu0 0.0
      %2302 = vmatpush1.msra.mxu0 0.0
      %2303 = vmatprep.subr.mxu0 0.0
      %2304 = vmatpush1.msra.mxu0 0.0
      %2305 = vmatprep.subr.mxu0 0.0
      %2306 = vmatpush1.msra.mxu0 0.0
      %2307 = vmatprep.subr.mxu0 0.0
      %2308 = vmatpush1.msra.mxu0 0.0
      %2309 = vmatprep.subr.mxu0 0.0
      %2310 = vmatpush1.msra.mxu0 0.0
      %2311 = vmatprep.subr.mxu0 0.0
      %2312 = vmatpush1.msra.mxu0 0.0
      %2313 = vmatprep.subr.mxu0 0.0
      %2314 = vmatpush1.msra.mxu0 0.0
      %2315 = vmatprep.subr.mxu0 0.0
      %2316 = vmatpush1.msra.mxu0 0.0
      %2317 = vmatprep.subr.mxu0 0.0
      %2318 = vmatpush1.msra.mxu0 0.0
      %2319 = vmatprep.subr.mxu0 0.0
      %2320 = vmatpush1.msra.mxu0 0.0
      %2321 = vmatprep.subr.mxu0 0.0
      %2322 = vmatpush1.msra.mxu0 0.0
      %2323 = vmatprep.subr.mxu0 0.0
      %2324 = vmatpush1.msra.mxu0 0.0
      %2325 = vmatprep.subr.mxu0 0.0
      %2326 = vmatpush1.msra.mxu0 0.0
      %2327 = vmatprep.subr.mxu0 0.0
      %2328 = vmatpush1.msra.mxu0 0.0
      %2329 = vmatprep.subr.mxu0 0.0
      %2330 = vmatpush1.msra.mxu0 0.0
      %2331 = vmatprep.subr.mxu0 0.0
      %2332 = vmatpush1.msra.mxu0 0.0
      %2333 = vmatprep.subr.mxu0 0.0
      %2334 = vmatpush1.msra.mxu0 0.0
      %2335 = vmatprep.subr.mxu0 0.0
      %2336 = vmatpush1.msra.mxu0 0.0
      %2337 = vmatprep.subr.mxu0 0.0
      %2338 = vmatpush1.msra.mxu0 0.0
      %2339 = vmatprep.subr.mxu0 0.0
      %2340 = vmatpush1.msra.mxu0 0.0
      %2341 = vmatprep.subr.mxu0 0.0
      %2342 = vmatpush1.msra.mxu0 0.0
      %2343 = vmatprep.subr.mxu0 0.0
      %2344 = vmatpush1.msra.mxu0 0.0
      %2345 = vmatprep.subr.mxu0 0.0
      %2346 = vmatpush1.msra.mxu0 0.0
      %2347 = vmatprep.subr.mxu0 0.0
      %2348 = vmatpush1.msra.mxu0 0.0
      %2349 = vmatprep.subr.mxu0 0.0
      %2350 = vmatpush1.msra.mxu0 0.0
      %2351 = vmatprep.subr.mxu0 0.0
      %2352 = vmatpush1.msra.mxu0 0.0
      %2353 = vmatprep.subr.mxu0 0.0
      %2354 = vmatpush1.msra.mxu0 0.0
      %2355 = vmatprep.subr.mxu0 0.0
      %2356 = vmatpush1.msra.mxu0 0.0
      %2357 = vmatprep.mubr.f32.mxu0 0.0
      %2358 = vmatmul.mubr.f32.gmra.mrb[0].mxu0 %v667
      %v2359 = vpop.f32.mrb[0].mxu0
      %v2360 = vadd.f32 0.0, %v2359
      %v2361 = vpop.f32.mrb[0].mxu0
      %2362 = vmatprep.mubr.f32.mxu0 0.0
      %2363 = vmatmul.mubr.f32.gmra.mrb[0].mxu0 %v670
      %v2364 = vpop.f32.mrb[0].mxu0
      %v2365 = vadd.f32 0.0, %v2364
      %v2366 = vpop.f32.mrb[0].mxu0
      %2367 = vmatprep.mubr.f32.mxu0 0.0
      %2368 = vmatmul.mubr.f32.gmra.mrb[0].mxu0 %v673
      %v2369 = vpop.f32.mrb[0].mxu0
      %v2370 = vadd.f32 0.0, %v2369
      %v2371 = vpop.f32.mrb[0].mxu0
      %2372 = vmatprep.mubr.f32.mxu0 0.0
      %2373 = vmatmul.mubr.f32.gmra.mrb[0].mxu0 %v676
      %v2374 = vpop.f32.mrb[0].mxu0
      %v2375 = vadd.f32 0.0, %v2374
      %v2376 = vpop.f32.mrb[0].mxu0
      %2377 = vmatprep.mubr.f32.mxu0 0.0
      %2378 = vmatmul.mubr.f32.gmra.mrb[0].mxu0 %v679
      %v2379 = vpop.f32.mrb[0].mxu0
      %v2380 = vadd.f32 0.0, %v2379
      %v2381 = vpop.f32.mrb[0].mxu0
      %2382 = vmatprep.mubr.f32.mxu0 0.0
      %2383 = vmatmul.mubr.f32.gmra.mrb[0].mxu0 %v682
      %v2384 = vpop.f32.mrb[0].mxu0
      %v2385 = vadd.f32 0.0, %v2384
      %v2386 = vpop.f32.mrb[0].mxu0
      %2387 = vmatprep.mubr.f32.mxu0 0.0
      %2388 = vmatmul.mubr.f32.gmra.mrb[0].mxu0 %v685
      %v2389 = vpop.f32.mrb[0].mxu0
      %v2390 = vadd.f32 0.0, %v2389
      %v2391 = vpop.f32.mrb[0].mxu0
      %2392 = vmatprep.mubr.f32.mxu0 0.0
      %2393 = vmatmul.mubr.f32.gmra.mrb[0].mxu0 %v688
      %v2394 = vpop.f32.mrb[0].mxu0
      %v2395 = vadd.f32 0.0, %v2394
      %v2396 = vpop.f32.mrb[0].mxu0
      %2397 = vmatprep.mubr.f32.mxu0 0.0
      %2398 = vmatmul.mubr.f32.gmra.mrb[0].mxu0 %v691
      %v2399 = vpop.f32.mrb[0].mxu0
      %v2400 = vadd.f32 0.0, %v2399
      %v2401 = vpop.f32.mrb[0].mxu0
      %2402 = vmatprep.mubr.f32.mxu0 0.0
      %2403 = vmatmul.mubr.f32.gmra.mrb[0].mxu0 %v694
      %v2404 = vpop.f32.mrb[0].mxu0
      %v2405 = vadd.f32 0.0, %v2404
      %v2406 = vpop.f32.mrb[0].mxu0
      %2407 = vmatprep.mubr.f32.mxu0 0.0
      %2408 = vmatmul.mubr.f32.gmra.mrb[0].mxu0 %v697
      %v2409 = vpop.f32.mrb[0].mxu0
      %v2410 = vadd.f32 0.0, %v2409
      %v2411 = vpop.f32.mrb[0].mxu0
      %2412 = vmatprep.mubr.f32.mxu0 0.0
      %2413 = vmatmul.mubr.f32.gmra.mrb[0].mxu0 %v700
      %v2414 = vpop.f32.mrb[0].mxu0
      %v2415 = vadd.f32 0.0, %v2414
      %v2416 = vpop.f32.mrb[0].mxu0
      %2417 = vmatprep.mubr.f32.mxu0 0.0
      %2418 = vmatmul.mubr.f32.gmra.mrb[0].mxu0 %v703
      %v2419 = vpop.f32.mrb[0].mxu0
      %v2420 = vadd.f32 0.0, %v2419
      %v2421 = vpop.f32.mrb[0].mxu0
      %2422 = vmatprep.mubr.f32.mxu0 0.0
      %2423 = vmatmul.mubr.f32.gmra.mrb[0].mxu0 %v706
      %v2424 = vpop.f32.mrb[0].mxu0
      %v2425 = vadd.f32 0.0, %v2424
      %v2426 = vpop.f32.mrb[0].mxu0
      %2427 = vmatprep.mubr.f32.mxu0 0.0
      %2428 = vmatmul.mubr.f32.gmra.mrb[0].mxu0 %v709
      %v2429 = vpop.f32.mrb[0].mxu0
      %v2430 = vadd.f32 0.0, %v2429
      %v2431 = vpop.f32.mrb[0].mxu0
      %2432 = vmatprep.mubr.f32.mxu0 0.0
      %2433 = vmatmul.mubr.f32.gmra.mrb[0].mxu0 %v712
      %v2434 = vpop.f32.mrb[0].mxu0
      %v2435 = vadd.f32 0.0, %v2434
      %v2436 = vpop.f32.mrb[0].mxu0
      %2437 = vdwg.mxu0
      %v2438 = vld [vmem:[%s197] sm:$0xff]
      %v2439 = vld [vmem:[%s197 + $0x8] sm:$0xff]
      %v2440 = vld [vmem:[%s197 + $0x10] sm:$0xff]
      %v2441 = vld [vmem:[%s197 + $0x18] sm:$0xff]
      %v2442 = vld [vmem:[%s197 + $0x20] sm:$0xff]
      %v2443 = vld [vmem:[%s197 + $0x28] sm:$0xff]
      %v2444 = vld [vmem:[%s197 + $0x30] sm:$0xff]
      %v2445 = vld [vmem:[%s197 + $0x38] sm:$0xff]
      %v2446 = vld [vmem:[%s197 + $0x40] sm:$0xff]
      %v2447 = vld [vmem:[%s197 + $0x48] sm:$0xff]
      %v2448 = vld [vmem:[%s197 + $0x50] sm:$0xff]
      %v2449 = vld [vmem:[%s197 + $0x58] sm:$0xff]
      %v2450 = vld [vmem:[%s197 + $0x60] sm:$0xff]
      %v2451 = vld [vmem:[%s197 + $0x68] sm:$0xff]
      %v2452 = vld [vmem:[%s197 + $0x70] sm:$0xff]
      %v2453 = vld [vmem:[%s197 + $0x78] sm:$0xff]
      %v2454 = vld [vmem:[%s197 + $0x80] sm:$0xff]
      %v2455 = vld [vmem:[%s197 + $0x88] sm:$0xff]
      %v2456 = vld [vmem:[%s197 + $0x90] sm:$0xff]
      %v2457 = vld [vmem:[%s197 + $0x98] sm:$0xff]
      %v2458 = vld [vmem:[%s197 + $0xa0] sm:$0xff]
      %v2459 = vld [vmem:[%s197 + $0xa8] sm:$0xff]
      %v2460 = vld [vmem:[%s197 + $0xb0] sm:$0xff]
      %v2461 = vld [vmem:[%s197 + $0xb8] sm:$0xff]
      %v2462 = vld [vmem:[%s197 + $0xc0] sm:$0xff]
      %v2463 = vld [vmem:[%s197 + $0xc8] sm:$0xff]
      %v2464 = vld [vmem:[%s197 + $0xd0] sm:$0xff]
      %v2465 = vld [vmem:[%s197 + $0xd8] sm:$0xff]
      %v2466 = vld [vmem:[%s197 + $0xe0] sm:$0xff]
      %v2467 = vld [vmem:[%s197 + $0xe8] sm:$0xff]
      %v2468 = vld [vmem:[%s197 + $0xf0] sm:$0xff]
      %v2469 = vld [vmem:[%s197 + $0xf8] sm:$0xff]
      %v2470 = vld [vmem:[%s197 + $0x100] sm:$0xff]
      %v2471 = vld [vmem:[%s197 + $0x108] sm:$0xff]
      %v2472 = vld [vmem:[%s197 + $0x110] sm:$0xff]
      %v2473 = vld [vmem:[%s197 + $0x118] sm:$0xff]
      %v2474 = vld [vmem:[%s197 + $0x120] sm:$0xff]
      %v2475 = vld [vmem:[%s197 + $0x128] sm:$0xff]
      %v2476 = vld [vmem:[%s197 + $0x130] sm:$0xff]
      %v2477 = vld [vmem:[%s197 + $0x138] sm:$0xff]
      %v2478 = vld [vmem:[%s197 + $0x140] sm:$0xff]
      %v2479 = vld [vmem:[%s197 + $0x148] sm:$0xff]
      %v2480 = vld [vmem:[%s197 + $0x150] sm:$0xff]
      %v2481 = vld [vmem:[%s197 + $0x158] sm:$0xff]
      %v2482 = vld [vmem:[%s197 + $0x160] sm:$0xff]
      %v2483 = vld [vmem:[%s197 + $0x168] sm:$0xff]
      %v2484 = vld [vmem:[%s197 + $0x170] sm:$0xff]
      %v2485 = vld [vmem:[%s197 + $0x178] sm:$0xff]
      %v2486 = vld [vmem:[%s197 + $0x180] sm:$0xff]
      %v2487 = vld [vmem:[%s197 + $0x188] sm:$0xff]
      %v2488 = vld [vmem:[%s197 + $0x190] sm:$0xff]
      %v2489 = vld [vmem:[%s197 + $0x198] sm:$0xff]
      %v2490 = vld [vmem:[%s197 + $0x1a0] sm:$0xff]
      %v2491 = vld [vmem:[%s197 + $0x1a8] sm:$0xff]
      %v2492 = vld [vmem:[%s197 + $0x1b0] sm:$0xff]
      %v2493 = vld [vmem:[%s197 + $0x1b8] sm:$0xff]
      %v2494 = vld [vmem:[%s197 + $0x1c0] sm:$0xff]
      %v2495 = vld [vmem:[%s197 + $0x1c8] sm:$0xff]
      %v2496 = vld [vmem:[%s197 + $0x1d0] sm:$0xff]
      %v2497 = vld [vmem:[%s197 + $0x1d8] sm:$0xff]
      %v2498 = vld [vmem:[%s197 + $0x1e0] sm:$0xff]
      %v2499 = vld [vmem:[%s197 + $0x1e8] sm:$0xff]
      %v2500 = vld [vmem:[%s197 + $0x1f0] sm:$0xff]
      %v2501 = vld [vmem:[%s197 + $0x1f8] sm:$0xff]
      %s2502 = scalar_lea.vmem %s1, 1024
      %v2503 = vld [vmem:[%s2502] sm:$0xff]
      %v2504 = vld [vmem:[%s2502 + $0x8] sm:$0xff]
      %v2505 = vld [vmem:[%s2502 + $0x10] sm:$0xff]
      %v2506 = vld [vmem:[%s2502 + $0x18] sm:$0xff]
      %v2507 = vld [vmem:[%s2502 + $0x20] sm:$0xff]
      %v2508 = vld [vmem:[%s2502 + $0x28] sm:$0xff]
      %v2509 = vld [vmem:[%s2502 + $0x30] sm:$0xff]
      %v2510 = vld [vmem:[%s2502 + $0x38] sm:$0xff]
      %v2511 = vld [vmem:[%s2502 + $0x40] sm:$0xff]
      %v2512 = vld [vmem:[%s2502 + $0x48] sm:$0xff]
      %v2513 = vld [vmem:[%s2502 + $0x50] sm:$0xff]
      %v2514 = vld [vmem:[%s2502 + $0x58] sm:$0xff]
      %v2515 = vld [vmem:[%s2502 + $0x60] sm:$0xff]
      %v2516 = vld [vmem:[%s2502 + $0x68] sm:$0xff]
      %v2517 = vld [vmem:[%s2502 + $0x70] sm:$0xff]
      %v2518 = vld [vmem:[%s2502 + $0x78] sm:$0xff]
      %v2519 = vld [vmem:[%s2502 + $0x80] sm:$0xff]
      %v2520 = vld [vmem:[%s2502 + $0x88] sm:$0xff]
      %v2521 = vld [vmem:[%s2502 + $0x90] sm:$0xff]
      %v2522 = vld [vmem:[%s2502 + $0x98] sm:$0xff]
      %v2523 = vld [vmem:[%s2502 + $0xa0] sm:$0xff]
      %v2524 = vld [vmem:[%s2502 + $0xa8] sm:$0xff]
      %v2525 = vld [vmem:[%s2502 + $0xb0] sm:$0xff]
      %v2526 = vld [vmem:[%s2502 + $0xb8] sm:$0xff]
      %v2527 = vld [vmem:[%s2502 + $0xc0] sm:$0xff]
      %v2528 = vld [vmem:[%s2502 + $0xc8] sm:$0xff]
      %v2529 = vld [vmem:[%s2502 + $0xd0] sm:$0xff]
      %v2530 = vld [vmem:[%s2502 + $0xd8] sm:$0xff]
      %v2531 = vld [vmem:[%s2502 + $0xe0] sm:$0xff]
      %v2532 = vld [vmem:[%s2502 + $0xe8] sm:$0xff]
      %v2533 = vld [vmem:[%s2502 + $0xf0] sm:$0xff]
      %v2534 = vld [vmem:[%s2502 + $0xf8] sm:$0xff]
      %v2535 = vld [vmem:[%s2502 + $0x100] sm:$0xff]
      %v2536 = vld [vmem:[%s2502 + $0x108] sm:$0xff]
      %v2537 = vld [vmem:[%s2502 + $0x110] sm:$0xff]
      %v2538 = vld [vmem:[%s2502 + $0x118] sm:$0xff]
      %v2539 = vld [vmem:[%s2502 + $0x120] sm:$0xff]
      %v2540 = vld [vmem:[%s2502 + $0x128] sm:$0xff]
      %v2541 = vld [vmem:[%s2502 + $0x130] sm:$0xff]
      %v2542 = vld [vmem:[%s2502 + $0x138] sm:$0xff]
      %v2543 = vld [vmem:[%s2502 + $0x140] sm:$0xff]
      %v2544 = vld [vmem:[%s2502 + $0x148] sm:$0xff]
      %v2545 = vld [vmem:[%s2502 + $0x150] sm:$0xff]
      %v2546 = vld [vmem:[%s2502 + $0x158] sm:$0xff]
      %v2547 = vld [vmem:[%s2502 + $0x160] sm:$0xff]
      %v2548 = vld [vmem:[%s2502 + $0x168] sm:$0xff]
      %v2549 = vld [vmem:[%s2502 + $0x170] sm:$0xff]
      %v2550 = vld [vmem:[%s2502 + $0x178] sm:$0xff]
      %v2551 = vld [vmem:[%s2502 + $0x180] sm:$0xff]
      %v2552 = vld [vmem:[%s2502 + $0x188] sm:$0xff]
      %v2553 = vld [vmem:[%s2502 + $0x190] sm:$0xff]
      %v2554 = vld [vmem:[%s2502 + $0x198] sm:$0xff]
      %v2555 = vld [vmem:[%s2502 + $0x1a0] sm:$0xff]
      %v2556 = vld [vmem:[%s2502 + $0x1a8] sm:$0xff]
      %v2557 = vld [vmem:[%s2502 + $0x1b0] sm:$0xff]
      %v2558 = vld [vmem:[%s2502 + $0x1b8] sm:$0xff]
      %v2559 = vld [vmem:[%s2502 + $0x1c0] sm:$0xff]
      %v2560 = vld [vmem:[%s2502 + $0x1c8] sm:$0xff]
      %v2561 = vld [vmem:[%s2502 + $0x1d0] sm:$0xff]
      %v2562 = vld [vmem:[%s2502 + $0x1d8] sm:$0xff]
      %v2563 = vld [vmem:[%s2502 + $0x1e0] sm:$0xff]
      %v2564 = vld [vmem:[%s2502 + $0x1e8] sm:$0xff]
      %v2565 = vld [vmem:[%s2502 + $0x1f0] sm:$0xff]
      %v2566 = vld [vmem:[%s2502 + $0x1f8] sm:$0xff]
      %2567 = vmatprep.subr.mxu0 0.0
      %2568 = vmatpush1.msra.mxu0 %v2360
      %2569 = vmatprep.subr.mxu0 0.0
      %2570 = vmatpush1.msra.mxu0 %v2365
      %2571 = vmatprep.subr.mxu0 0.0
      %2572 = vmatpush1.msra.mxu0 %v2370
      %2573 = vmatprep.subr.mxu0 0.0
      %2574 = vmatpush1.msra.mxu0 %v2375
      %2575 = vmatprep.subr.mxu0 0.0
      %2576 = vmatpush1.msra.mxu0 %v2380
      %2577 = vmatprep.subr.mxu0 0.0
      %2578 = vmatpush1.msra.mxu0 %v2385
      %2579 = vmatprep.subr.mxu0 0.0
      %2580 = vmatpush1.msra.mxu0 %v2390
      %2581 = vmatprep.subr.mxu0 0.0
      %2582 = vmatpush1.msra.mxu0 %v2395
      %2583 = vmatprep.subr.mxu0 0.0
      %2584 = vmatpush1.msra.mxu0 %v2400
      %2585 = vmatprep.subr.mxu0 0.0
      %2586 = vmatpush1.msra.mxu0 %v2405
      %2587 = vmatprep.subr.mxu0 0.0
      %2588 = vmatpush1.msra.mxu0 %v2410
      %2589 = vmatprep.subr.mxu0 0.0
      %2590 = vmatpush1.msra.mxu0 %v2415
      %2591 = vmatprep.subr.mxu0 0.0
      %2592 = vmatpush1.msra.mxu0 %v2420
      %2593 = vmatprep.subr.mxu0 0.0
      %2594 = vmatpush1.msra.mxu0 %v2425
      %2595 = vmatprep.subr.mxu0 0.0
      %2596 = vmatpush1.msra.mxu0 %v2430
      %2597 = vmatprep.subr.mxu0 0.0
      %2598 = vmatpush1.msra.mxu0 %v2435
      %2599 = vmatprep.subr.mxu0 0.0
      %2600 = vmatpush1.msra.mxu0 0.0
      %2601 = vmatprep.subr.mxu0 0.0
      %2602 = vmatpush1.msra.mxu0 0.0
      %2603 = vmatprep.subr.mxu0 0.0
      %2604 = vmatpush1.msra.mxu0 0.0
      %2605 = vmatprep.subr.mxu0 0.0
      %2606 = vmatpush1.msra.mxu0 0.0
      %2607 = vmatprep.subr.mxu0 0.0
      %2608 = vmatpush1.msra.mxu0 0.0
      %2609 = vmatprep.subr.mxu0 0.0
      %2610 = vmatpush1.msra.mxu0 0.0
      %2611 = vmatprep.subr.mxu0 0.0
      %2612 = vmatpush1.msra.mxu0 0.0
      %2613 = vmatprep.subr.mxu0 0.0
      %2614 = vmatpush1.msra.mxu0 0.0
      %2615 = vmatprep.subr.mxu0 0.0
      %2616 = vmatpush1.msra.mxu0 0.0
      %2617 = vmatprep.subr.mxu0 0.0
      %2618 = vmatpush1.msra.mxu0 0.0
      %2619 = vmatprep.subr.mxu0 0.0
      %2620 = vmatpush1.msra.mxu0 0.0
      %2621 = vmatprep.subr.mxu0 0.0
      %2622 = vmatpush1.msra.mxu0 0.0
      %2623 = vmatprep.subr.mxu0 0.0
      %2624 = vmatpush1.msra.mxu0 0.0
      %2625 = vmatprep.subr.mxu0 0.0
      %2626 = vmatpush1.msra.mxu0 0.0
      %2627 = vmatprep.subr.mxu0 0.0
      %2628 = vmatpush1.msra.mxu0 0.0
      %2629 = vmatprep.subr.mxu0 0.0
      %2630 = vmatpush1.msra.mxu0 0.0
      %2631 = vmatprep.mubr.f32.mxu0 0.0
      %2632 = vmatmul.mubr.f32.gmra.mrb[0].mxu0 %v2503
      %v2633 = vpop.f32.mrb[0].mxu0
      %v2634 = vadd.f32 0.0, %v2633
      %v2635 = vpop.f32.mrb[0].mxu0
      %2636 = vmatprep.mubr.f32.mxu0 0.0
      %2637 = vmatmul.mubr.f32.gmra.mrb[0].mxu0 %v2504
      %v2638 = vpop.f32.mrb[0].mxu0
      %v2639 = vadd.f32 0.0, %v2638
      %v2640 = vpop.f32.mrb[0].mxu0
      %2641 = vmatprep.mubr.f32.mxu0 0.0
      %2642 = vmatmul.mubr.f32.gmra.mrb[0].mxu0 %v2505
      %v2643 = vpop.f32.mrb[0].mxu0
      %v2644 = vadd.f32 0.0, %v2643
      %v2645 = vpop.f32.mrb[0].mxu0
      %2646 = vmatprep.mubr.f32.mxu0 0.0
      %2647 = vmatmul.mubr.f32.gmra.mrb[0].mxu0 %v2506
      %v2648 = vpop.f32.mrb[0].mxu0
      %v2649 = vadd.f32 0.0, %v2648
      %v2650 = vpop.f32.mrb[0].mxu0
      %2651 = vmatprep.mubr.f32.mxu0 0.0
      %2652 = vmatmul.mubr.f32.gmra.mrb[0].mxu0 %v2507
      %v2653 = vpop.f32.mrb[0].mxu0
      %v2654 = vadd.f32 0.0, %v2653
      %v2655 = vpop.f32.mrb[0].mxu0
      %2656 = vmatprep.mubr.f32.mxu0 0.0
      %2657 = vmatmul.mubr.f32.gmra.mrb[0].mxu0 %v2508
      %v2658 = vpop.f32.mrb[0].mxu0
      %v2659 = vadd.f32 0.0, %v2658
      %v2660 = vpop.f32.mrb[0].mxu0
      %2661 = vmatprep.mubr.f32.mxu0 0.0
      %2662 = vmatmul.mubr.f32.gmra.mrb[0].mxu0 %v2509
      %v2663 = vpop.f32.mrb[0].mxu0
      %v2664 = vadd.f32 0.0, %v2663
      %v2665 = vpop.f32.mrb[0].mxu0
      %2666 = vmatprep.mubr.f32.mxu0 0.0
      %2667 = vmatmul.mubr.f32.gmra.mrb[0].mxu0 %v2510
      %v2668 = vpop.f32.mrb[0].mxu0
      %v2669 = vadd.f32 0.0, %v2668
      %v2670 = vpop.f32.mrb[0].mxu0
      %2671 = vmatprep.mubr.f32.mxu0 0.0
      %2672 = vmatmul.mubr.f32.gmra.mrb[0].mxu0 %v2511
      %v2673 = vpop.f32.mrb[0].mxu0
      %v2674 = vadd.f32 0.0, %v2673
      %v2675 = vpop.f32.mrb[0].mxu0
      %2676 = vmatprep.mubr.f32.mxu0 0.0
      %2677 = vmatmul.mubr.f32.gmra.mrb[0].mxu0 %v2512
      %v2678 = vpop.f32.mrb[0].mxu0
      %v2679 = vadd.f32 0.0, %v2678
      %v2680 = vpop.f32.mrb[0].mxu0
      %2681 = vmatprep.mubr.f32.mxu0 0.0
      %2682 = vmatmul.mubr.f32.gmra.mrb[0].mxu0 %v2513
      %v2683 = vpop.f32.mrb[0].mxu0
      %v2684 = vadd.f32 0.0, %v2683
      %v2685 = vpop.f32.mrb[0].mxu0
      %2686 = vmatprep.mubr.f32.mxu0 0.0
      %2687 = vmatmul.mubr.f32.gmra.mrb[0].mxu0 %v2514
      %v2688 = vpop.f32.mrb[0].mxu0
      %v2689 = vadd.f32 0.0, %v2688
      %v2690 = vpop.f32.mrb[0].mxu0
      %2691 = vmatprep.mubr.f32.mxu0 0.0
      %2692 = vmatmul.mubr.f32.gmra.mrb[0].mxu0 %v2515
      %v2693 = vpop.f32.mrb[0].mxu0
      %v2694 = vadd.f32 0.0, %v2693
      %v2695 = vpop.f32.mrb[0].mxu0
      %2696 = vmatprep.mubr.f32.mxu0 0.0
      %2697 = vmatmul.mubr.f32.gmra.mrb[0].mxu0 %v2516
      %v2698 = vpop.f32.mrb[0].mxu0
      %v2699 = vadd.f32 0.0, %v2698
      %v2700 = vpop.f32.mrb[0].mxu0
      %2701 = vmatprep.mubr.f32.mxu0 0.0
      %2702 = vmatmul.mubr.f32.gmra.mrb[0].mxu0 %v2517
      %v2703 = vpop.f32.mrb[0].mxu0
      %v2704 = vadd.f32 0.0, %v2703
      %v2705 = vpop.f32.mrb[0].mxu0
      %2706 = vmatprep.mubr.f32.mxu0 0.0
      %2707 = vmatmul.mubr.f32.gmra.mrb[0].mxu0 %v2518
      %v2708 = vpop.f32.mrb[0].mxu0
      %v2709 = vadd.f32 0.0, %v2708
      %v2710 = vpop.f32.mrb[0].mxu0
      %2711 = vmatprep.mubr.f32.mxu0 0.0
      %2712 = vmatmul.mubr.f32.gmra.mrb[0].mxu0 %v2519
      %v2713 = vpop.f32.mrb[0].mxu0
      %v2714 = vadd.f32 0.0, %v2713
      %v2715 = vpop.f32.mrb[0].mxu0
      %2716 = vmatprep.mubr.f32.mxu0 0.0
      %2717 = vmatmul.mubr.f32.gmra.mrb[0].mxu0 %v2520
      %v2718 = vpop.f32.mrb[0].mxu0
      %v2719 = vadd.f32 0.0, %v2718
      %v2720 = vpop.f32.mrb[0].mxu0
      %2721 = vmatprep.mubr.f32.mxu0 0.0
      %2722 = vmatmul.mubr.f32.gmra.mrb[0].mxu0 %v2521
      %v2723 = vpop.f32.mrb[0].mxu0
      %v2724 = vadd.f32 0.0, %v2723
      %v2725 = vpop.f32.mrb[0].mxu0
      %2726 = vmatprep.mubr.f32.mxu0 0.0
      %2727 = vmatmul.mubr.f32.gmra.mrb[0].mxu0 %v2522
      %v2728 = vpop.f32.mrb[0].mxu0
      %v2729 = vadd.f32 0.0, %v2728
      %v2730 = vpop.f32.mrb[0].mxu0
      %2731 = vmatprep.mubr.f32.mxu0 0.0
      %2732 = vmatmul.mubr.f32.gmra.mrb[0].mxu0 %v2523
      %v2733 = vpop.f32.mrb[0].mxu0
      %v2734 = vadd.f32 0.0, %v2733
      %v2735 = vpop.f32.mrb[0].mxu0
      %2736 = vmatprep.mubr.f32.mxu0 0.0
      %2737 = vmatmul.mubr.f32.gmra.mrb[0].mxu0 %v2524
      %v2738 = vpop.f32.mrb[0].mxu0
      %v2739 = vadd.f32 0.0, %v2738
      %v2740 = vpop.f32.mrb[0].mxu0
      %2741 = vmatprep.mubr.f32.mxu0 0.0
      %2742 = vmatmul.mubr.f32.gmra.mrb[0].mxu0 %v2525
      %v2743 = vpop.f32.mrb[0].mxu0
      %v2744 = vadd.f32 0.0, %v2743
      %v2745 = vpop.f32.mrb[0].mxu0
      %2746 = vmatprep.mubr.f32.mxu0 0.0
      %2747 = vmatmul.mubr.f32.gmra.mrb[0].mxu0 %v2526
      %v2748 = vpop.f32.mrb[0].mxu0
      %v2749 = vadd.f32 0.0, %v2748
      %v2750 = vpop.f32.mrb[0].mxu0
      %2751 = vmatprep.mubr.f32.mxu0 0.0
      %2752 = vmatmul.mubr.f32.gmra.mrb[0].mxu0 %v2527
      %v2753 = vpop.f32.mrb[0].mxu0
      %v2754 = vadd.f32 0.0, %v2753
      %v2755 = vpop.f32.mrb[0].mxu0
      %2756 = vmatprep.mubr.f32.mxu0 0.0
      %2757 = vmatmul.mubr.f32.gmra.mrb[0].mxu0 %v2528
      %v2758 = vpop.f32.mrb[0].mxu0
      %v2759 = vadd.f32 0.0, %v2758
      %v2760 = vpop.f32.mrb[0].mxu0
      %2761 = vmatprep.mubr.f32.mxu0 0.0
      %2762 = vmatmul.mubr.f32.gmra.mrb[0].mxu0 %v2529
      %v2763 = vpop.f32.mrb[0].mxu0
      %v2764 = vadd.f32 0.0, %v2763
      %v2765 = vpop.f32.mrb[0].mxu0
      %2766 = vmatprep.mubr.f32.mxu0 0.0
      %2767 = vmatmul.mubr.f32.gmra.mrb[0].mxu0 %v2530
      %v2768 = vpop.f32.mrb[0].mxu0
      %v2769 = vadd.f32 0.0, %v2768
      %v2770 = vpop.f32.mrb[0].mxu0
      %2771 = vmatprep.mubr.f32.mxu0 0.0
      %2772 = vmatmul.mubr.f32.gmra.mrb[0].mxu0 %v2531
      %v2773 = vpop.f32.mrb[0].mxu0
      %v2774 = vadd.f32 0.0, %v2773
      %v2775 = vpop.f32.mrb[0].mxu0
      %2776 = vmatprep.mubr.f32.mxu0 0.0
      %2777 = vmatmul.mubr.f32.gmra.mrb[0].mxu0 %v2532
      %v2778 = vpop.f32.mrb[0].mxu0
      %v2779 = vadd.f32 0.0, %v2778
      %v2780 = vpop.f32.mrb[0].mxu0
      %2781 = vmatprep.mubr.f32.mxu0 0.0
      %2782 = vmatmul.mubr.f32.gmra.mrb[0].mxu0 %v2533
      %v2783 = vpop.f32.mrb[0].mxu0
      %v2784 = vadd.f32 0.0, %v2783
      %v2785 = vpop.f32.mrb[0].mxu0
      %2786 = vmatprep.mubr.f32.mxu0 0.0
      %2787 = vmatmul.mubr.f32.gmra.mrb[0].mxu0 %v2534
      %v2788 = vpop.f32.mrb[0].mxu0
      %v2789 = vadd.f32 0.0, %v2788
      %v2790 = vpop.f32.mrb[0].mxu0
      %2791 = vmatprep.mubr.f32.mxu0 0.0
      %2792 = vmatmul.mubr.f32.gmra.mrb[0].mxu0 %v2535
      %v2793 = vpop.f32.mrb[0].mxu0
      %v2794 = vadd.f32 0.0, %v2793
      %v2795 = vpop.f32.mrb[0].mxu0
      %2796 = vmatprep.mubr.f32.mxu0 0.0
      %2797 = vmatmul.mubr.f32.gmra.mrb[0].mxu0 %v2536
      %v2798 = vpop.f32.mrb[0].mxu0
      %v2799 = vadd.f32 0.0, %v2798
      %v2800 = vpop.f32.mrb[0].mxu0
      %2801 = vmatprep.mubr.f32.mxu0 0.0
      %2802 = vmatmul.mubr.f32.gmra.mrb[0].mxu0 %v2537
      %v2803 = vpop.f32.mrb[0].mxu0
      %v2804 = vadd.f32 0.0, %v2803
      %v2805 = vpop.f32.mrb[0].mxu0
      %2806 = vmatprep.mubr.f32.mxu0 0.0
      %2807 = vmatmul.mubr.f32.gmra.mrb[0].mxu0 %v2538
      %v2808 = vpop.f32.mrb[0].mxu0
      %v2809 = vadd.f32 0.0, %v2808
      %v2810 = vpop.f32.mrb[0].mxu0
      %2811 = vmatprep.mubr.f32.mxu0 0.0
      %2812 = vmatmul.mubr.f32.gmra.mrb[0].mxu0 %v2539
      %v2813 = vpop.f32.mrb[0].mxu0
      %v2814 = vadd.f32 0.0, %v2813
      %v2815 = vpop.f32.mrb[0].mxu0
      %2816 = vmatprep.mubr.f32.mxu0 0.0
      %2817 = vmatmul.mubr.f32.gmra.mrb[0].mxu0 %v2540
      %v2818 = vpop.f32.mrb[0].mxu0
      %v2819 = vadd.f32 0.0, %v2818
      %v2820 = vpop.f32.mrb[0].mxu0
      %2821 = vmatprep.mubr.f32.mxu0 0.0
      %2822 = vmatmul.mubr.f32.gmra.mrb[0].mxu0 %v2541
      %v2823 = vpop.f32.mrb[0].mxu0
      %v2824 = vadd.f32 0.0, %v2823
      %v2825 = vpop.f32.mrb[0].mxu0
      %2826 = vmatprep.mubr.f32.mxu0 0.0
      %2827 = vmatmul.mubr.f32.gmra.mrb[0].mxu0 %v2542
      %v2828 = vpop.f32.mrb[0].mxu0
      %v2829 = vadd.f32 0.0, %v2828
      %v2830 = vpop.f32.mrb[0].mxu0
      %2831 = vmatprep.mubr.f32.mxu0 0.0
      %2832 = vmatmul.mubr.f32.gmra.mrb[0].mxu0 %v2543
      %v2833 = vpop.f32.mrb[0].mxu0
      %v2834 = vadd.f32 0.0, %v2833
      %v2835 = vpop.f32.mrb[0].mxu0
      %2836 = vmatprep.mubr.f32.mxu0 0.0
      %2837 = vmatmul.mubr.f32.gmra.mrb[0].mxu0 %v2544
      %v2838 = vpop.f32.mrb[0].mxu0
      %v2839 = vadd.f32 0.0, %v2838
      %v2840 = vpop.f32.mrb[0].mxu0
      %2841 = vmatprep.mubr.f32.mxu0 0.0
      %2842 = vmatmul.mubr.f32.gmra.mrb[0].mxu0 %v2545
      %v2843 = vpop.f32.mrb[0].mxu0
      %v2844 = vadd.f32 0.0, %v2843
      %v2845 = vpop.f32.mrb[0].mxu0
      %2846 = vmatprep.mubr.f32.mxu0 0.0
      %2847 = vmatmul.mubr.f32.gmra.mrb[0].mxu0 %v2546
      %v2848 = vpop.f32.mrb[0].mxu0
      %v2849 = vadd.f32 0.0, %v2848
      %v2850 = vpop.f32.mrb[0].mxu0
      %2851 = vmatprep.mubr.f32.mxu0 0.0
      %2852 = vmatmul.mubr.f32.gmra.mrb[0].mxu0 %v2547
      %v2853 = vpop.f32.mrb[0].mxu0
      %v2854 = vadd.f32 0.0, %v2853
      %v2855 = vpop.f32.mrb[0].mxu0
      %2856 = vmatprep.mubr.f32.mxu0 0.0
      %2857 = vmatmul.mubr.f32.gmra.mrb[0].mxu0 %v2548
      %v2858 = vpop.f32.mrb[0].mxu0
      %v2859 = vadd.f32 0.0, %v2858
      %v2860 = vpop.f32.mrb[0].mxu0
      %2861 = vmatprep.mubr.f32.mxu0 0.0
      %2862 = vmatmul.mubr.f32.gmra.mrb[0].mxu0 %v2549
      %v2863 = vpop.f32.mrb[0].mxu0
      %v2864 = vadd.f32 0.0, %v2863
      %v2865 = vpop.f32.mrb[0].mxu0
      %2866 = vmatprep.mubr.f32.mxu0 0.0
      %2867 = vmatmul.mubr.f32.gmra.mrb[0].mxu0 %v2550
      %v2868 = vpop.f32.mrb[0].mxu0
      %v2869 = vadd.f32 0.0, %v2868
      %v2870 = vpop.f32.mrb[0].mxu0
      %2871 = vmatprep.mubr.f32.mxu0 0.0
      %2872 = vmatmul.mubr.f32.gmra.mrb[0].mxu0 %v2551
      %v2873 = vpop.f32.mrb[0].mxu0
      %v2874 = vadd.f32 0.0, %v2873
      %v2875 = vpop.f32.mrb[0].mxu0
      %2876 = vmatprep.mubr.f32.mxu0 0.0
      %2877 = vmatmul.mubr.f32.gmra.mrb[0].mxu0 %v2552
      %v2878 = vpop.f32.mrb[0].mxu0
      %v2879 = vadd.f32 0.0, %v2878
      %v2880 = vpop.f32.mrb[0].mxu0
      %2881 = vmatprep.mubr.f32.mxu0 0.0
      %2882 = vmatmul.mubr.f32.gmra.mrb[0].mxu0 %v2553
      %v2883 = vpop.f32.mrb[0].mxu0
      %v2884 = vadd.f32 0.0, %v2883
      %v2885 = vpop.f32.mrb[0].mxu0
      %2886 = vmatprep.mubr.f32.mxu0 0.0
      %2887 = vmatmul.mubr.f32.gmra.mrb[0].mxu0 %v2554
      %v2888 = vpop.f32.mrb[0].mxu0
      %v2889 = vadd.f32 0.0, %v2888
      %v2890 = vpop.f32.mrb[0].mxu0
      %2891 = vmatprep.mubr.f32.mxu0 0.0
      %2892 = vmatmul.mubr.f32.gmra.mrb[0].mxu0 %v2555
      %v2893 = vpop.f32.mrb[0].mxu0
      %v2894 = vadd.f32 0.0, %v2893
      %v2895 = vpop.f32.mrb[0].mxu0
      %2896 = vmatprep.mubr.f32.mxu0 0.0
      %2897 = vmatmul.mubr.f32.gmra.mrb[0].mxu0 %v2556
      %v2898 = vpop.f32.mrb[0].mxu0
      %v2899 = vadd.f32 0.0, %v2898
      %v2900 = vpop.f32.mrb[0].mxu0
      %2901 = vmatprep.mubr.f32.mxu0 0.0
      %2902 = vmatmul.mubr.f32.gmra.mrb[0].mxu0 %v2557
      %v2903 = vpop.f32.mrb[0].mxu0
      %v2904 = vadd.f32 0.0, %v2903
      %v2905 = vpop.f32.mrb[0].mxu0
      %2906 = vmatprep.mubr.f32.mxu0 0.0
      %2907 = vmatmul.mubr.f32.gmra.mrb[0].mxu0 %v2558
      %v2908 = vpop.f32.mrb[0].mxu0
      %v2909 = vadd.f32 0.0, %v2908
      %v2910 = vpop.f32.mrb[0].mxu0
      %2911 = vmatprep.mubr.f32.mxu0 0.0
      %2912 = vmatmul.mubr.f32.gmra.mrb[0].mxu0 %v2559
      %v2913 = vpop.f32.mrb[0].mxu0
      %v2914 = vadd.f32 0.0, %v2913
      %v2915 = vpop.f32.mrb[0].mxu0
      %2916 = vmatprep.mubr.f32.mxu0 0.0
      %2917 = vmatmul.mubr.f32.gmra.mrb[0].mxu0 %v2560
      %v2918 = vpop.f32.mrb[0].mxu0
      %v2919 = vadd.f32 0.0, %v2918
      %v2920 = vpop.f32.mrb[0].mxu0
      %2921 = vmatprep.mubr.f32.mxu0 0.0
      %2922 = vmatmul.mubr.f32.gmra.mrb[0].mxu0 %v2561
      %v2923 = vpop.f32.mrb[0].mxu0
      %v2924 = vadd.f32 0.0, %v2923
      %v2925 = vpop.f32.mrb[0].mxu0
      %2926 = vmatprep.mubr.f32.mxu0 0.0
      %2927 = vmatmul.mubr.f32.gmra.mrb[0].mxu0 %v2562
      %v2928 = vpop.f32.mrb[0].mxu0
      %v2929 = vadd.f32 0.0, %v2928
      %v2930 = vpop.f32.mrb[0].mxu0
      %2931 = vmatprep.mubr.f32.mxu0 0.0
      %2932 = vmatmul.mubr.f32.gmra.mrb[0].mxu0 %v2563
      %v2933 = vpop.f32.mrb[0].mxu0
      %v2934 = vadd.f32 0.0, %v2933
      %v2935 = vpop.f32.mrb[0].mxu0
      %2936 = vmatprep.mubr.f32.mxu0 0.0
      %2937 = vmatmul.mubr.f32.gmra.mrb[0].mxu0 %v2564
      %v2938 = vpop.f32.mrb[0].mxu0
      %v2939 = vadd.f32 0.0, %v2938
      %v2940 = vpop.f32.mrb[0].mxu0
      %2941 = vmatprep.mubr.f32.mxu0 0.0
      %2942 = vmatmul.mubr.f32.gmra.mrb[0].mxu0 %v2565
      %v2943 = vpop.f32.mrb[0].mxu0
      %v2944 = vadd.f32 0.0, %v2943
      %v2945 = vpop.f32.mrb[0].mxu0
      %2946 = vmatprep.mubr.f32.mxu0 0.0
      %2947 = vmatmul.mubr.f32.gmra.mrb[0].mxu0 %v2566
      %v2948 = vpop.f32.mrb[0].mxu0
      %v2949 = vadd.f32 0.0, %v2948
      %v2950 = vpop.f32.mrb[0].mxu0
      %2951 = vdwg.mxu0
      %v2952 = vadd.f32 %v2438, %v2634
      %v2953 = vadd.f32 %v2439, %v2639
      %v2954 = vadd.f32 %v2440, %v2644
      %v2955 = vadd.f32 %v2441, %v2649
      %v2956 = vadd.f32 %v2442, %v2654
      %v2957 = vadd.f32 %v2443, %v2659
      %v2958 = vadd.f32 %v2444, %v2664
      %v2959 = vadd.f32 %v2445, %v2669
      %v2960 = vadd.f32 %v2446, %v2674
      %v2961 = vadd.f32 %v2447, %v2679
      %v2962 = vadd.f32 %v2448, %v2684
      %v2963 = vadd.f32 %v2449, %v2689
      %v2964 = vadd.f32 %v2450, %v2694
      %v2965 = vadd.f32 %v2451, %v2699
      %v2966 = vadd.f32 %v2452, %v2704
      %v2967 = vadd.f32 %v2453, %v2709
      %v2968 = vadd.f32 %v2454, %v2714
      %v2969 = vadd.f32 %v2455, %v2719
      %v2970 = vadd.f32 %v2456, %v2724
      %v2971 = vadd.f32 %v2457, %v2729
      %v2972 = vadd.f32 %v2458, %v2734
      %v2973 = vadd.f32 %v2459, %v2739
      %v2974 = vadd.f32 %v2460, %v2744
      %v2975 = vadd.f32 %v2461, %v2749
      %v2976 = vadd.f32 %v2462, %v2754
      %v2977 = vadd.f32 %v2463, %v2759
      %v2978 = vadd.f32 %v2464, %v2764
      %v2979 = vadd.f32 %v2465, %v2769
      %v2980 = vadd.f32 %v2466, %v2774
      %v2981 = vadd.f32 %v2467, %v2779
      %v2982 = vadd.f32 %v2468, %v2784
      %v2983 = vadd.f32 %v2469, %v2789
      %v2984 = vadd.f32 %v2470, %v2794
      %v2985 = vadd.f32 %v2471, %v2799
      %v2986 = vadd.f32 %v2472, %v2804
      %v2987 = vadd.f32 %v2473, %v2809
      %v2988 = vadd.f32 %v2474, %v2814
      %v2989 = vadd.f32 %v2475, %v2819
      %v2990 = vadd.f32 %v2476, %v2824
      %v2991 = vadd.f32 %v2477, %v2829
      %v2992 = vadd.f32 %v2478, %v2834
      %v2993 = vadd.f32 %v2479, %v2839
      %v2994 = vadd.f32 %v2480, %v2844
      %v2995 = vadd.f32 %v2481, %v2849
      %v2996 = vadd.f32 %v2482, %v2854
      %v2997 = vadd.f32 %v2483, %v2859
      %v2998 = vadd.f32 %v2484, %v2864
      %v2999 = vadd.f32 %v2485, %v2869
      %v3000 = vadd.f32 %v2486, %v2874
      %v3001 = vadd.f32 %v2487, %v2879
      %v3002 = vadd.f32 %v2488, %v2884
      %v3003 = vadd.f32 %v2489, %v2889
      %v3004 = vadd.f32 %v2490, %v2894
      %v3005 = vadd.f32 %v2491, %v2899
      %v3006 = vadd.f32 %v2492, %v2904
      %v3007 = vadd.f32 %v2493, %v2909
      %v3008 = vadd.f32 %v2494, %v2914
      %v3009 = vadd.f32 %v2495, %v2919
      %v3010 = vadd.f32 %v2496, %v2924
      %v3011 = vadd.f32 %v2497, %v2929
      %v3012 = vadd.f32 %v2498, %v2934
      %v3013 = vadd.f32 %v2499, %v2939
      %v3014 = vadd.f32 %v2500, %v2944
      %v3015 = vadd.f32 %v2501, %v2949
      %3016 = vst.msk [vmem:[%s197] sm:$0xff] %vm582, %v2952
      %3017 = vst.msk [vmem:[%s197 + $0x8] sm:$0xff] %vm582, %v2953
      %3018 = vst.msk [vmem:[%s197 + $0x10] sm:$0xff] %vm582, %v2954
      %3019 = vst.msk [vmem:[%s197 + $0x18] sm:$0xff] %vm582, %v2955
      %3020 = vst.msk [vmem:[%s197 + $0x20] sm:$0xff] %vm582, %v2956
      %3021 = vst.msk [vmem:[%s197 + $0x28] sm:$0xff] %vm582, %v2957
      %3022 = vst.msk [vmem:[%s197 + $0x30] sm:$0xff] %vm582, %v2958
      %3023 = vst.msk [vmem:[%s197 + $0x38] sm:$0xff] %vm582, %v2959
      %3024 = vst.msk [vmem:[%s197 + $0x40] sm:$0xff] %vm582, %v2960
      %3025 = vst.msk [vmem:[%s197 + $0x48] sm:$0xff] %vm582, %v2961
      %3026 = vst.msk [vmem:[%s197 + $0x50] sm:$0xff] %vm582, %v2962
      %3027 = vst.msk [vmem:[%s197 + $0x58] sm:$0xff] %vm582, %v2963
      %3028 = vst.msk [vmem:[%s197 + $0x60] sm:$0xff] %vm582, %v2964
      %3029 = vst.msk [vmem:[%s197 + $0x68] sm:$0xff] %vm582, %v2965
      %3030 = vst.msk [vmem:[%s197 + $0x70] sm:$0xff] %vm582, %v2966
      %3031 = vst.msk [vmem:[%s197 + $0x78] sm:$0xff] %vm582, %v2967
      %3032 = vst.msk [vmem:[%s197 + $0x80] sm:$0xff] %vm582, %v2968
      %3033 = vst.msk [vmem:[%s197 + $0x88] sm:$0xff] %vm582, %v2969
      %3034 = vst.msk [vmem:[%s197 + $0x90] sm:$0xff] %vm582, %v2970
      %3035 = vst.msk [vmem:[%s197 + $0x98] sm:$0xff] %vm582, %v2971
      %3036 = vst.msk [vmem:[%s197 + $0xa0] sm:$0xff] %vm582, %v2972
      %3037 = vst.msk [vmem:[%s197 + $0xa8] sm:$0xff] %vm582, %v2973
      %3038 = vst.msk [vmem:[%s197 + $0xb0] sm:$0xff] %vm582, %v2974
      %3039 = vst.msk [vmem:[%s197 + $0xb8] sm:$0xff] %vm582, %v2975
      %3040 = vst.msk [vmem:[%s197 + $0xc0] sm:$0xff] %vm582, %v2976
      %3041 = vst.msk [vmem:[%s197 + $0xc8] sm:$0xff] %vm582, %v2977
      %3042 = vst.msk [vmem:[%s197 + $0xd0] sm:$0xff] %vm582, %v2978
      %3043 = vst.msk [vmem:[%s197 + $0xd8] sm:$0xff] %vm582, %v2979
      %3044 = vst.msk [vmem:[%s197 + $0xe0] sm:$0xff] %vm582, %v2980
      %3045 = vst.msk [vmem:[%s197 + $0xe8] sm:$0xff] %vm582, %v2981
      %3046 = vst.msk [vmem:[%s197 + $0xf0] sm:$0xff] %vm582, %v2982
      %3047 = vst.msk [vmem:[%s197 + $0xf8] sm:$0xff] %vm582, %v2983
      %3048 = vst.msk [vmem:[%s197 + $0x100] sm:$0xff] %vm582, %v2984
      %3049 = vst.msk [vmem:[%s197 + $0x108] sm:$0xff] %vm582, %v2985
      %3050 = vst.msk [vmem:[%s197 + $0x110] sm:$0xff] %vm582, %v2986
      %3051 = vst.msk [vmem:[%s197 + $0x118] sm:$0xff] %vm582, %v2987
      %3052 = vst.msk [vmem:[%s197 + $0x120] sm:$0xff] %vm582, %v2988
      %3053 = vst.msk [vmem:[%s197 + $0x128] sm:$0xff] %vm582, %v2989
      %3054 = vst.msk [vmem:[%s197 + $0x130] sm:$0xff] %vm582, %v2990
      %3055 = vst.msk [vmem:[%s197 + $0x138] sm:$0xff] %vm582, %v2991
      %3056 = vst.msk [vmem:[%s197 + $0x140] sm:$0xff] %vm582, %v2992
      %3057 = vst.msk [vmem:[%s197 + $0x148] sm:$0xff] %vm582, %v2993
      %3058 = vst.msk [vmem:[%s197 + $0x150] sm:$0xff] %vm582, %v2994
      %3059 = vst.msk [vmem:[%s197 + $0x158] sm:$0xff] %vm582, %v2995
      %3060 = vst.msk [vmem:[%s197 + $0x160] sm:$0xff] %vm582, %v2996
      %3061 = vst.msk [vmem:[%s197 + $0x168] sm:$0xff] %vm582, %v2997
      %3062 = vst.msk [vmem:[%s197 + $0x170] sm:$0xff] %vm582, %v2998
      %3063 = vst.msk [vmem:[%s197 + $0x178] sm:$0xff] %vm582, %v2999
      %3064 = vst.msk [vmem:[%s197 + $0x180] sm:$0xff] %vm582, %v3000
      %3065 = vst.msk [vmem:[%s197 + $0x188] sm:$0xff] %vm582, %v3001
      %3066 = vst.msk [vmem:[%s197 + $0x190] sm:$0xff] %vm582, %v3002
      %3067 = vst.msk [vmem:[%s197 + $0x198] sm:$0xff] %vm582, %v3003
      %3068 = vst.msk [vmem:[%s197 + $0x1a0] sm:$0xff] %vm582, %v3004
      %3069 = vst.msk [vmem:[%s197 + $0x1a8] sm:$0xff] %vm582, %v3005
      %3070 = vst.msk [vmem:[%s197 + $0x1b0] sm:$0xff] %vm582, %v3006
      %3071 = vst.msk [vmem:[%s197 + $0x1b8] sm:$0xff] %vm582, %v3007
      %3072 = vst.msk [vmem:[%s197 + $0x1c0] sm:$0xff] %vm582, %v3008
      %3073 = vst.msk [vmem:[%s197 + $0x1c8] sm:$0xff] %vm582, %v3009
      %3074 = vst.msk [vmem:[%s197 + $0x1d0] sm:$0xff] %vm582, %v3010
      %3075 = vst.msk [vmem:[%s197 + $0x1d8] sm:$0xff] %vm582, %v3011
      %3076 = vst.msk [vmem:[%s197 + $0x1e0] sm:$0xff] %vm582, %v3012
      %3077 = vst.msk [vmem:[%s197 + $0x1e8] sm:$0xff] %vm582, %v3013
      %3078 = vst.msk [vmem:[%s197 + $0x1f0] sm:$0xff] %vm582, %v3014
      %3079 = vst.msk [vmem:[%s197 + $0x1f8] sm:$0xff] %vm582, %v3015
      %p3080 = scmp.lt.s32.totalorder %s15, 1
      %s3081 = scalar_select %p3080, %s15, 1
      %s3082 = smul.addr %s3081, 64
      %s3083 = smul.addr %s3082, 8
      %s3084 = scalar_lea.vmem %s4, %s3083
      // Predicated region
      $region37: #{upsampling_forward.1} parent=35 // pred_check
        %p3085 = pneg %p122
      $region38: #{upsampling_forward.1} parent=35 // pred_check_branch
        %3087 = sbr.rel (%p3085) target = $region40
      $region39: #{upsampling_forward.1} parent=35 // pred_region
        _
      $region40: #{upsampling_forward.1} parent=35 // pred_fallthru
        _
    $region36: #{upsampling_forward.1} parent=5 // pred_fallthru
      _
    %p3088 = scmp.le.s32.totalorder 2, %s10
    // Predicated region
    $region41: #{upsampling_forward.1} parent=5 // pred_check
      %p3089 = pneg %p3088
    $region42: #{upsampling_forward.1} parent=5 // pred_check_branch
      %3091 = sbr.rel (%p3089) target = $region44
    $region43: #{upsampling_forward.1} parent=5 // pred_region
      %s3092 = ssub.s32 %s10, 2
      // Predicated region
      $region45: #{upsampling_forward.1} parent=43 // pred_check
        %p3093 = pneg %p128
      $region46: #{upsampling_forward.1} parent=43 // pred_check_branch
        %3095 = sbr.rel (%p3093) target = $region48
      $region47: #{upsampling_forward.1} parent=43 // pred_region
        %p3096 = scmp.lt.s32.totalorder %s16, 1
        %s3097 = scalar_select %p3096, %s16, 1
        %s3098 = smul.addr %s3097, 64
        %s3099 = smul.addr %s3098, 8
        %s3100 = scalar_lea.vmem %s4, %s3099
      $region48: #{upsampling_forward.1} parent=43 // pred_fallthru
        _
    $region44: #{upsampling_forward.1} parent=5 // pred_fallthru
      _
  $region6: #{upsampling_forward.1} parent=0 // loop_footer
    %s14 = sadd.s32 1, %s10
  $region7: #{upsampling_forward.1} parent=0 // loop_footer_branch
    %9 = sbr.rel target = $region3
  $region8: #{upsampling_forward.1} parent=0 // loop_exit
    _

</llo_original>
